<compile_context>
chip_gen: v7x
topology: tpu7x:2x2x1
jax: 0.10.0
libtpu: 0.0.40
codegen_flags: <defaults>
</compile_context>

<pallas_src>
import math
import jax
import jax.numpy as jnp
from jax.experimental import pallas as pl
from jax.experimental.pallas import tpu as pltpu  # noqa: F401  (imported per convention)

F32 = jnp.float32


# -----------------------------------------------------------------------------
# Wrapper-side parameter packing: many tiny tensors -> two padded 2-D arrays.
# -----------------------------------------------------------------------------

class _Pack:
    """Accumulates 2-D f32 blocks into one (rows, width) array; returns row offsets."""

    def __init__(self, width):
        self.width = width
        self.blocks = []
        self.off = 0

    def add(self, arr2d):
        arr2d = jnp.asarray(arr2d, F32)
        r, c = arr2d.shape
        pad_r = (-r) % 8                      # keep every entry sublane-aligned
        pad_c = self.width - c
        assert pad_c >= 0, (c, self.width)
        if pad_r or pad_c:
            arr2d = jnp.pad(arr2d, ((0, pad_r), (0, pad_c)))
        off = self.off
        self.blocks.append(arr2d)
        self.off += r + pad_r
        return off

    def finalize(self):
        return jnp.concatenate(self.blocks, axis=0)


def _uniform(key, shape, bound):
    return jax.random.uniform(key, shape, minval=-bound, maxval=bound, dtype=F32)


# -----------------------------------------------------------------------------
# Parameter construction (mirrors the nn.Module __init__ shapes) with wrapper-side
# pre-folding of the residual projection and of tconv2 @ fc.
# -----------------------------------------------------------------------------

def build_stgcn_params(key, blocks, window, kt, n, control_str, a_hat):
    keys = iter(jax.random.split(key, 64))

    # pass 1: static time extents -> pack widths
    t_tmp, cnt_tmp = window, 0
    n_layer_ts = []
    for ch in control_str:
        if ch == 'T':
            t_tmp -= kt - 1
            cnt_tmp += 2
        elif ch == 'N':
            n_layer_ts.append(t_tmp)
        elif ch == 'D':
            cnt_tmp += 1
    t_out = t_tmp
    c_final = blocks[cnt_tmp - 1]
    t_ln_max = max(n_layer_ts) if n_layer_ts else 0

    p32 = _Pack(max(kt * max(blocks), n, window, 8))                # narrow pack
    pw = _Pack(max([t * n for t in n_layer_ts] + [t_out * c_final]))  # lane-wide pack

    a_off = p32.add(jnp.asarray(a_hat, F32).T)                      # shared A_hat^T

    r_off = e_off = 0
    if n_layer_ts:   # shared per-time-block pooling (L,T) / broadcast (T,L) operators
        r_off = p32.add(jnp.kron(jnp.eye(t_ln_max, dtype=F32), jnp.ones((n, 1), F32)))
        e_off = pw.add(jnp.kron(jnp.eye(t_ln_max, dtype=F32), jnp.ones((1, n), F32)))

    descs = []
    cnt, t_cur = 0, window
    for ch in control_str:
        if ch == 'T':
            c_in, c_out = blocks[cnt], blocks[cnt + 1]
            t_new = t_cur - (kt - 1)
            bound = 1.0 / math.sqrt(c_in * kt)
            w = _uniform(next(keys), (2 * c_out, kt * c_in), bound)   # P|Q rows, taps on cols
            b = _uniform(next(keys), (2 * c_out, 1), bound)
            if c_in > c_out:                                          # 1x1 conv_self residual
                sb = 1.0 / math.sqrt(c_in)
                ws = _uniform(next(keys), (c_out, c_in), sb)
                bs = _uniform(next(keys), (c_out, 1), sb)
            else:                                                     # identity / zero-pad
                ws = jnp.eye(c_out, c_in, dtype=F32)
                bs = jnp.zeros((c_out, 1), F32)
            w = w.at[:c_out, (kt - 1) * c_in:kt * c_in].add(ws)       # fold x_self into last-tap P
            b = b.at[:c_out, :].add(bs)
            descs.append(('T', dict(kt=kt, c_in=c_in, c_out=c_out, t_out=t_new,
                                    w=p32.add(w), b=p32.add(b))))
            cnt += 2
            t_cur = t_new
        elif ch == 'S':
            c = blocks[cnt]
            wg = _uniform(next(keys), (c, c), math.sqrt(6.0 / (c + c)))   # xavier (DGL GraphConv)
            bg = jnp.zeros((c, 1), F32)
            descs.append(('S', dict(c=c, t=t_cur, a=a_off,
                                    w=p32.add(wg), b=p32.add(bg))))
        elif ch == 'N':
            c = blocks[cnt]
            gamma = jnp.ones((n, c), F32)                             # nn.LayerNorm defaults
            beta = jnp.zeros((n, c), F32)
            descs.append(('N', dict(c=c, t=t_cur, r=r_off, e=e_off,
                                    g=pw.add(jnp.tile(gamma.T, (1, t_cur))),
                                    be=pw.add(jnp.tile(beta.T, (1, t_cur))))))
        elif ch == 'D':
            descs.append(('D', None))
            cnt += 1

    # OutputLayer: tconv1 (full-T) -> LayerNorm([n, c]) -> folded (tconv2 @ fc)
    c = blocks[cnt - 1]
    b1b = 1.0 / math.sqrt(c * t_out)
    w1 = _uniform(next(keys), (c, t_out * c), b1b)        # [out_ch] x [t-major, in_ch-minor]
    bias1 = _uniform(next(keys), (c, 1), b1b)
    gamma_o = jnp.ones((n, c), F32)
    beta_o = jnp.zeros((n, c), F32)
    b2b = 1.0 / math.sqrt(c)
    w2 = _uniform(next(keys), (c, c), b2b)
    bias2 = _uniform(next(keys), (c, 1), b2b)
    wf = _uniform(next(keys), (1, c), b2b)
    bf = _uniform(next(keys), (1, 1), b2b)
    descs.append(('O', dict(c=c, t=t_out,
                            w1=pw.add(w1), b1=p32.add(bias1),
                            g=p32.add(gamma_o.T), be=p32.add(beta_o.T),
                            wo=p32.add(wf @ w2), bo=p32.add(wf @ bias2 + bf))))

    return descs, (p32.finalize(), pw.finalize())


# -----------------------------------------------------------------------------
# Fused kernel factory: layer structure / offsets are static Python, so the body
# is generated by tracing a Python loop over the layer descriptors.
# -----------------------------------------------------------------------------

def make_fused_kernel(descs, n, batch):

    def kernel(x_ref, p32_ref, pw_ref, o_ref):

        def forward_one(x):                               # x: (c, T*N) lane-dense, f32
            y_out = None
            for kind, m in descs:
                if kind == 'T':
                    kt, c_in, c_out = m['kt'], m['c_in'], m['c_out']
                    l_new = m['t_out'] * n
                    w = p32_ref[m['w']:m['w'] + 2 * c_out, :kt * c_in]
                    bias = p32_ref[m['b']:m['b'] + 2 * c_out, 0:1]
                    if c_in == 1:
                        # K=1 matmul == broadcast outer product (pure VPU, no MXU).
                        pq = w[:, 0:1] * x[:, 0:l_new]
                        for k in range(1, kt):
                            pq = pq + w[:, k:k + 1] * x[:, k * n:k * n + l_new]
                    else:
                        pq = jnp.dot(w[:, 0:c_in], x[:, 0:l_new],
                                     preferred_element_type=jnp.float32)
                        for k in range(1, kt):
                            pq = pq + jnp.dot(w[:, k * c_in:(k + 1) * c_in],
                                              x[:, k * n:k * n + l_new],
                                              preferred_element_type=jnp.float32)
                    pq = pq + bias
                    # gated: (P + x_self) * sigmoid(Q); x_self pre-folded into the P rows
                    x = pq[:c_out, :] * jax.nn.sigmoid(pq[c_out:, :])

                elif kind == 'S':
                    c, t = m['c'], m['t']
                    w = p32_ref[m['w']:m['w'] + c, :c]
                    bias = p32_ref[m['b']:m['b'] + c, 0:1]
                    a_t = p32_ref[m['a']:m['a'] + n, :n]                  # A_hat^T (N, N)
                    h = jnp.dot(w, x, preferred_element_type=jnp.float32)  # channel mix (c, t*n)
                    # node mix: stack time blocks on rows -> ONE (t*c, N) x (N, N) matmul
                    hs = jnp.concatenate(
                        [h[:, tt * n:(tt + 1) * n] for tt in range(t)], axis=0)
                    ys = jnp.dot(hs, a_t, preferred_element_type=jnp.float32)
                    y = jnp.concatenate(
                        [ys[tt * c:(tt + 1) * c, :] for tt in range(t)], axis=1)
                    x = jnp.maximum(y + bias, 0.0)

                elif kind == 'N':
                    c, t = m['c'], m['t']
                    L = t * n
                    g = pw_ref[m['g']:m['g'] + c, :L]
                    be = pw_ref[m['be']:m['be'] + c, :L]
                    pool = p32_ref[m['r']:m['r'] + L, :t]                 # (L, t) block sum
                    scat = pw_ref[m['e']:m['e'] + t, :L]                  # (t, L) block broadcast
                    inv = 1.0 / float(n * c)
                    s = jnp.concatenate(
                        [jnp.sum(x, axis=0, keepdims=True),
                         jnp.sum(x * x, axis=0, keepdims=True)], axis=0)  # dense (2, L) stats
                    blk = jnp.dot(s, pool, preferred_element_type=jnp.float32)        # (2, t)
                    full = jnp.dot(blk, scat, preferred_element_type=jnp.float32) * inv
                    mu = full[0:1, :]
                    var = full[1:2, :] - mu * mu
                    x = (x - mu) * jax.lax.rsqrt(var + 1e-5) * g + be

                elif kind == 'D':
                    # TODO(synk): training-mode stochastic dropout (pltpu PRNG) not
                    # implemented; inference-mode dropout == identity.
                    pass

                elif kind == 'O':
                    c, t = m['c'], m['t']
                    w1 = pw_ref[m['w1']:m['w1'] + c, :t * c]
                    b1 = p32_ref[m['b1']:m['b1'] + c, 0:1]
                    g = p32_ref[m['g']:m['g'] + c, :n]
                    be = p32_ref[m['be']:m['be'] + c, :n]
                    wo = p32_ref[m['wo']:m['wo'] + 1, :c]
                    bo = p32_ref[m['bo']:m['bo'] + 1, 0:1]
                    xs = jnp.concatenate(
                        [x[:, tt * n:(tt + 1) * n] for tt in range(t)], axis=0)  # (t*c, n)
                    h = jnp.dot(w1, xs, preferred_element_type=jnp.float32) + b1  # (c, n)
                    mu = jnp.mean(h, keepdims=True)
                    var = jnp.mean((h - mu) ** 2, keepdims=True)
                    h = (h - mu) * jax.lax.rsqrt(var + 1e-5) * g + be
                    y_out = jnp.dot(wo, h, preferred_element_type=jnp.float32) + bo  # (1, n)
            return y_out

        outs = [forward_one(x_ref[b].astype(jnp.float32)) for b in range(batch)]
        o_ref[...] = jnp.concatenate(outs, axis=0).astype(o_ref.dtype)   # one (B, N) store

    return kernel


# -----------------------------------------------------------------------------
# Forward: single grid-less pallas_call; all operands fully VMEM-resident.
# -----------------------------------------------------------------------------

def stgcn_forward(x_nchw, descs, packs):
    B, C0, T0, Nn = x_nchw.shape
    p32, pw = packs
    kernel = make_fused_kernel(descs, Nn, B)
    out = pl.pallas_call(
        kernel,
        out_shape=jax.ShapeDtypeStruct((B, Nn), x_nchw.dtype),
    )(x_nchw.reshape(B, C0, T0 * Nn), p32, pw)     # lane-dense input, zero-cost reshape
    # Back to the PyTorch NCHW output convention: (B, 1, 1, N)
    return out.reshape(B, 1, 1, Nn)


# -----------------------------------------------------------------------------
# Main
# -----------------------------------------------------------------------------

if __name__ == "__main__":
    B, n, window, kt = 2, 16, 12, 2
    control_str = 'TSTNDTSTND'
    blocks = [1, 8, 8, 16, 16, 16, 8, 8, 16, 16]

    key = jax.random.PRNGKey(0)
    k_x, k_p = jax.random.split(key)

    # Input in PyTorch NCHW convention: (batch, in_channels, window, nodes)
    x = jax.random.normal(k_x, (B, blocks[0], window, n), dtype=jnp.float32)

    # Synthetic graph: ring + self-loops, symmetric normalization D^-1/2 (A+I) D^-1/2
    idx = jnp.arange(n)
    adj = jnp.zeros((n, n), jnp.float32)
    adj = adj.at[idx, (idx + 1) % n].set(1.0)
    adj = adj.at[(idx + 1) % n, idx].set(1.0)
    adj = adj + jnp.eye(n, dtype=jnp.float32)
    dinv = 1.0 / jnp.sqrt(adj.sum(axis=1))
    a_hat = adj * dinv[:, None] * dinv[None, :]

    descs, packs = build_stgcn_params(k_p, blocks, window, kt, n, control_str, a_hat)

    y = stgcn_forward(x, descs, packs)
    y = jax.block_until_ready(y)
    assert y.shape == (B, 1, 1, n), y.shape
    assert bool(jnp.all(jnp.isfinite(y)))
    print("KERNEL_OK")
</pallas_src>

<mosaic_0001>
module attributes {stable_mosaic.version = 11 : i64} {
  func.func @kernel(%arg0: memref<2x1x192xf32, #tpu.memory_space<vmem>>, %arg1: memref<464x32xf32, #tpu.memory_space<vmem>>, %arg2: memref<96x160xf32, #tpu.memory_space<vmem>>, %arg3: memref<2x16xf32, #tpu.memory_space<vmem>>) attributes {dimension_semantics = [], scalar_prefetch = 0 : i64, scratch_operands = 0 : i64, tpu.core_type = #tpu.core_type<tc>} {
    %c0 = arith.constant 0 : index
    %c0_0 = arith.constant 0 : index
    %c0_1 = arith.constant 0 : index
    %0 = vector.load %arg0[%c0, %c0_0, %c0_1] : memref<2x1x192xf32, #tpu.memory_space<vmem>>, vector<1x1x192xf32>
    %1 = vector.shape_cast %0 : vector<1x1x192xf32> to vector<1x192xf32>
    %c176 = arith.constant 176 : index
    %c0_2 = arith.constant 0 : index
    %2 = vector.load %arg1[%c176, %c0_2] : memref<464x32xf32, #tpu.memory_space<vmem>>, vector<16x2xf32>
    %c192 = arith.constant 192 : index
    %c0_3 = arith.constant 0 : index
    %3 = vector.load %arg1[%c192, %c0_3] : memref<464x32xf32, #tpu.memory_space<vmem>>, vector<16x1xf32>
    %4 = vector.extract_strided_slice %2 {offsets = [0, 0], sizes = [16, 1], strides = [1, 1]} : vector<16x2xf32> to vector<16x1xf32>
    %5 = vector.extract_strided_slice %1 {offsets = [0, 0], sizes = [1, 176], strides = [1, 1]} : vector<1x192xf32> to vector<1x176xf32>
    %6 = vector.broadcast %4 : vector<16x1xf32> to vector<16x176xf32>
    %7 = vector.broadcast %5 : vector<1x176xf32> to vector<16x176xf32>
    %8 = arith.mulf %6, %7 : vector<16x176xf32>
    %9 = vector.extract_strided_slice %2 {offsets = [0, 1], sizes = [16, 1], strides = [1, 1]} : vector<16x2xf32> to vector<16x1xf32>
    %10 = vector.extract_strided_slice %1 {offsets = [0, 16], sizes = [1, 176], strides = [1, 1]} : vector<1x192xf32> to vector<1x176xf32>
    %11 = vector.broadcast %9 : vector<16x1xf32> to vector<16x176xf32>
    %12 = vector.broadcast %10 : vector<1x176xf32> to vector<16x176xf32>
    %13 = arith.mulf %11, %12 : vector<16x176xf32>
    %14 = arith.addf %8, %13 : vector<16x176xf32>
    %15 = vector.broadcast %3 : vector<16x1xf32> to vector<16x176xf32>
    %16 = arith.addf %14, %15 : vector<16x176xf32>
    %17 = vector.extract_strided_slice %16 {offsets = [0, 0], sizes = [8, 176], strides = [1, 1]} : vector<16x176xf32> to vector<8x176xf32>
    %18 = vector.extract_strided_slice %16 {offsets = [8, 0], sizes = [8, 176], strides = [1, 1]} : vector<16x176xf32> to vector<8x176xf32>
    %19 = arith.negf %18 : vector<8x176xf32>
    %20 = math.exp %19 : vector<8x176xf32>
    %cst = arith.constant 1.000000e+00 : f32
    %21 = vector.broadcast %cst : f32 to vector<8x176xf32>
    %22 = arith.addf %21, %20 : vector<8x176xf32>
    %23 = arith.divf %21, %22 : vector<8x176xf32>
    %24 = arith.mulf %17, %23 : vector<8x176xf32>
    %c208 = arith.constant 208 : index
    %c0_4 = arith.constant 0 : index
    %25 = vector.load %arg1[%c208, %c0_4] : memref<464x32xf32, #tpu.memory_space<vmem>>, vector<8x8xf32>
    %c216 = arith.constant 216 : index
    %c0_5 = arith.constant 0 : index
    %26 = vector.load %arg1[%c216, %c0_5] : memref<464x32xf32, #tpu.memory_space<vmem>>, vector<8x1xf32>
    %c0_6 = arith.constant 0 : index
    %c0_7 = arith.constant 0 : index
    %27 = vector.load %arg1[%c0_6, %c0_7] : memref<464x32xf32, #tpu.memory_space<vmem>>, vector<16x16xf32>
    %cst_8 = arith.constant dense<0.000000e+00> : vector<8x176xf32>
    %28 = tpu.matmul %25, %24, %cst_8 {dimension_numbers = #tpu.dot_dimension_numbers<[1], [0], [0], [1], [0, 0, 1, 1], [], []>} : vector<8x8xf32>, vector<8x176xf32>, vector<8x176xf32> -> vector<8x176xf32>
    %29 = vector.extract_strided_slice %28 {offsets = [0, 0], sizes = [8, 16], strides = [1, 1]} : vector<8x176xf32> to vector<8x16xf32>
    %30 = vector.extract_strided_slice %28 {offsets = [0, 16], sizes = [8, 16], strides = [1, 1]} : vector<8x176xf32> to vector<8x16xf32>
    %31 = vector.extract_strided_slice %28 {offsets = [0, 32], sizes = [8, 16], strides = [1, 1]} : vector<8x176xf32> to vector<8x16xf32>
    %32 = vector.extract_strided_slice %28 {offsets = [0, 48], sizes = [8, 16], strides = [1, 1]} : vector<8x176xf32> to vector<8x16xf32>
    %33 = vector.extract_strided_slice %28 {offsets = [0, 64], sizes = [8, 16], strides = [1, 1]} : vector<8x176xf32> to vector<8x16xf32>
    %34 = vector.extract_strided_slice %28 {offsets = [0, 80], sizes = [8, 16], strides = [1, 1]} : vector<8x176xf32> to vector<8x16xf32>
    %35 = vector.extract_strided_slice %28 {offsets = [0, 96], sizes = [8, 16], strides = [1, 1]} : vector<8x176xf32> to vector<8x16xf32>
    %36 = vector.extract_strided_slice %28 {offsets = [0, 112], sizes = [8, 16], strides = [1, 1]} : vector<8x176xf32> to vector<8x16xf32>
    %37 = vector.extract_strided_slice %28 {offsets = [0, 128], sizes = [8, 16], strides = [1, 1]} : vector<8x176xf32> to vector<8x16xf32>
    %38 = vector.extract_strided_slice %28 {offsets = [0, 144], sizes = [8, 16], strides = [1, 1]} : vector<8x176xf32> to vector<8x16xf32>
    %39 = vector.extract_strided_slice %28 {offsets = [0, 160], sizes = [8, 16], strides = [1, 1]} : vector<8x176xf32> to vector<8x16xf32>
    %40 = tpu.concatenate %29, %30, %31, %32, %33, %34, %35, %36, %37, %38, %39 in 0 : vector<8x16xf32>, vector<8x16xf32>, vector<8x16xf32>, vector<8x16xf32>, vector<8x16xf32>, vector<8x16xf32>, vector<8x16xf32>, vector<8x16xf32>, vector<8x16xf32>, vector<8x16xf32>, vector<8x16xf32> -> vector<88x16xf32>
    %cst_9 = arith.constant dense<0.000000e+00> : vector<88x16xf32>
    %41 = tpu.matmul %40, %27, %cst_9 {dimension_numbers = #tpu.dot_dimension_numbers<[1], [0], [0], [1], [0, 0, 1, 1], [], []>} : vector<88x16xf32>, vector<16x16xf32>, vector<88x16xf32> -> vector<88x16xf32>
    %42 = vector.extract_strided_slice %41 {offsets = [0, 0], sizes = [8, 16], strides = [1, 1]} : vector<88x16xf32> to vector<8x16xf32>
    %43 = vector.extract_strided_slice %41 {offsets = [8, 0], sizes = [8, 16], strides = [1, 1]} : vector<88x16xf32> to vector<8x16xf32>
    %44 = vector.extract_strided_slice %41 {offsets = [16, 0], sizes = [8, 16], strides = [1, 1]} : vector<88x16xf32> to vector<8x16xf32>
    %45 = vector.extract_strided_slice %41 {offsets = [24, 0], sizes = [8, 16], strides = [1, 1]} : vector<88x16xf32> to vector<8x16xf32>
    %46 = vector.extract_strided_slice %41 {offsets = [32, 0], sizes = [8, 16], strides = [1, 1]} : vector<88x16xf32> to vector<8x16xf32>
    %47 = vector.extract_strided_slice %41 {offsets = [40, 0], sizes = [8, 16], strides = [1, 1]} : vector<88x16xf32> to vector<8x16xf32>
    %48 = vector.extract_strided_slice %41 {offsets = [48, 0], sizes = [8, 16], strides = [1, 1]} : vector<88x16xf32> to vector<8x16xf32>
    %49 = vector.extract_strided_slice %41 {offsets = [56, 0], sizes = [8, 16], strides = [1, 1]} : vector<88x16xf32> to vector<8x16xf32>
    %50 = vector.extract_strided_slice %41 {offsets = [64, 0], sizes = [8, 16], strides = [1, 1]} : vector<88x16xf32> to vector<8x16xf32>
    %51 = vector.extract_strided_slice %41 {offsets = [72, 0], sizes = [8, 16], strides = [1, 1]} : vector<88x16xf32> to vector<8x16xf32>
    %52 = vector.extract_strided_slice %41 {offsets = [80, 0], sizes = [8, 16], strides = [1, 1]} : vector<88x16xf32> to vector<8x16xf32>
    %53 = tpu.concatenate %42, %43, %44, %45, %46, %47, %48, %49, %50, %51, %52 in 1 : vector<8x16xf32>, vector<8x16xf32>, vector<8x16xf32>, vector<8x16xf32>, vector<8x16xf32>, vector<8x16xf32>, vector<8x16xf32>, vector<8x16xf32>, vector<8x16xf32>, vector<8x16xf32>, vector<8x16xf32> -> vector<8x176xf32>
    %54 = vector.broadcast %26 : vector<8x1xf32> to vector<8x176xf32>
    %55 = arith.addf %53, %54 : vector<8x176xf32>
    %cst_10 = arith.constant 0.000000e+00 : f32
    %56 = vector.broadcast %cst_10 : f32 to vector<8x176xf32>
    %57 = arith.maximumf %55, %56 : vector<8x176xf32>
    %c224 = arith.constant 224 : index
    %c0_11 = arith.constant 0 : index
    %58 = vector.load %arg1[%c224, %c0_11] : memref<464x32xf32, #tpu.memory_space<vmem>>, vector<32x16xf32>
    %c256 = arith.constant 256 : index
    %c0_12 = arith.constant 0 : index
    %59 = vector.load %arg1[%c256, %c0_12] : memref<464x32xf32, #tpu.memory_space<vmem>>, vector<32x1xf32>
    %60 = vector.extract_strided_slice %58 {offsets = [0, 0], sizes = [32, 8], strides = [1, 1]} : vector<32x16xf32> to vector<32x8xf32>
    %61 = vector.extract_strided_slice %57 {offsets = [0, 0], sizes = [8, 160], strides = [1, 1]} : vector<8x176xf32> to vector<8x160xf32>
    %cst_13 = arith.constant dense<0.000000e+00> : vector<32x160xf32>
    %62 = tpu.matmul %60, %61, %cst_13 {dimension_numbers = #tpu.dot_dimension_numbers<[1], [0], [0], [1], [0, 0, 1, 1], [], []>} : vector<32x8xf32>, vector<8x160xf32>, vector<32x160xf32> -> vector<32x160xf32>
    %63 = vector.extract_strided_slice %58 {offsets = [0, 8], sizes = [32, 8], strides = [1, 1]} : vector<32x16xf32> to vector<32x8xf32>
    %64 = vector.extract_strided_slice %57 {offsets = [0, 16], sizes = [8, 160], strides = [1, 1]} : vector<8x176xf32> to vector<8x160xf32>
    %cst_14 = arith.constant dense<0.000000e+00> : vector<32x160xf32>
    %65 = tpu.matmul %63, %64, %cst_14 {dimension_numbers = #tpu.dot_dimension_numbers<[1], [0], [0], [1], [0, 0, 1, 1], [], []>} : vector<32x8xf32>, vector<8x160xf32>, vector<32x160xf32> -> vector<32x160xf32>
    %66 = arith.addf %62, %65 : vector<32x160xf32>
    %67 = vector.broadcast %59 : vector<32x1xf32> to vector<32x160xf32>
    %68 = arith.addf %66, %67 : vector<32x160xf32>
    %69 = vector.extract_strided_slice %68 {offsets = [0, 0], sizes = [16, 160], strides = [1, 1]} : vector<32x160xf32> to vector<16x160xf32>
    %70 = vector.extract_strided_slice %68 {offsets = [16, 0], sizes = [16, 160], strides = [1, 1]} : vector<32x160xf32> to vector<16x160xf32>
    %71 = arith.negf %70 : vector<16x160xf32>
    %72 = math.exp %71 : vector<16x160xf32>
    %cst_15 = arith.constant 1.000000e+00 : f32
    %73 = vector.broadcast %cst_15 : f32 to vector<16x160xf32>
    %74 = arith.addf %73, %72 : vector<16x160xf32>
    %75 = arith.divf %73, %74 : vector<16x160xf32>
    %76 = arith.mulf %69, %75 : vector<16x160xf32>
    %c16 = arith.constant 16 : index
    %c0_16 = arith.constant 0 : index
    %77 = vector.load %arg2[%c16, %c0_16] : memref<96x160xf32, #tpu.memory_space<vmem>>, vector<16x160xf32>
    %c32 = arith.constant 32 : index
    %c0_17 = arith.constant 0 : index
    %78 = vector.load %arg2[%c32, %c0_17] : memref<96x160xf32, #tpu.memory_space<vmem>>, vector<16x160xf32>
    %c16_18 = arith.constant 16 : index
    %c0_19 = arith.constant 0 : index
    %79 = vector.load %arg1[%c16_18, %c0_19] : memref<464x32xf32, #tpu.memory_space<vmem>>, vector<160x10xf32>
    %c0_20 = arith.constant 0 : index
    %c0_21 = arith.constant 0 : index
    %80 = vector.load %arg2[%c0_20, %c0_21] : memref<96x160xf32, #tpu.memory_space<vmem>>, vector<10x160xf32>
    %cst_22 = arith.constant dense<0.000000e+00> : vector<160xf32>
    %81 = vector.multi_reduction <add>, %76, %cst_22 [0] : vector<16x160xf32> to vector<160xf32>
    %82 = vector.shape_cast %81 : vector<160xf32> to vector<1x160xf32>
    %83 = arith.mulf %76, %76 : vector<16x160xf32>
    %cst_23 = arith.constant dense<0.000000e+00> : vector<160xf32>
    %84 = vector.multi_reduction <add>, %83, %cst_23 [0] : vector<16x160xf32> to vector<160xf32>
    %85 = vector.shape_cast %84 : vector<160xf32> to vector<1x160xf32>
    %86 = tpu.concatenate %82, %85 in 0 : vector<1x160xf32>, vector<1x160xf32> -> vector<2x160xf32>
    %cst_24 = arith.constant dense<0.000000e+00> : vector<2x10xf32>
    %87 = tpu.matmul %86, %79, %cst_24 {dimension_numbers = #tpu.dot_dimension_numbers<[1], [0], [0], [1], [0, 0, 1, 1], [], []>} : vector<2x160xf32>, vector<160x10xf32>, vector<2x10xf32> -> vector<2x10xf32>
    %cst_25 = arith.constant dense<0.000000e+00> : vector<2x160xf32>
    %88 = tpu.matmul %87, %80, %cst_25 {dimension_numbers = #tpu.dot_dimension_numbers<[1], [0], [0], [1], [0, 0, 1, 1], [], []>} : vector<2x10xf32>, vector<10x160xf32>, vector<2x160xf32> -> vector<2x160xf32>
    %cst_26 = arith.constant 3.906250e-03 : f32
    %89 = vector.broadcast %cst_26 : f32 to vector<2x160xf32>
    %90 = arith.mulf %88, %89 : vector<2x160xf32>
    %91 = vector.extract_strided_slice %90 {offsets = [0, 0], sizes = [1, 160], strides = [1, 1]} : vector<2x160xf32> to vector<1x160xf32>
    %92 = vector.extract_strided_slice %90 {offsets = [1, 0], sizes = [1, 160], strides = [1, 1]} : vector<2x160xf32> to vector<1x160xf32>
    %93 = arith.mulf %91, %91 : vector<1x160xf32>
    %94 = arith.subf %92, %93 : vector<1x160xf32>
    %95 = vector.broadcast %91 : vector<1x160xf32> to vector<16x160xf32>
    %96 = arith.subf %76, %95 : vector<16x160xf32>
    %cst_27 = arith.constant 9.99999974E-6 : f32
    %97 = vector.broadcast %cst_27 : f32 to vector<1x160xf32>
    %98 = arith.addf %94, %97 : vector<1x160xf32>
    %99 = math.rsqrt %98 : vector<1x160xf32>
    %100 = vector.broadcast %99 : vector<1x160xf32> to vector<16x160xf32>
    %101 = arith.mulf %96, %100 : vector<16x160xf32>
    %102 = arith.mulf %101, %77 : vector<16x160xf32>
    %103 = arith.addf %102, %78 : vector<16x160xf32>
    %c288 = arith.constant 288 : index
    %c0_28 = arith.constant 0 : index
    %104 = vector.load %arg1[%c288, %c0_28] : memref<464x32xf32, #tpu.memory_space<vmem>>, vector<16x32xf32>
    %c304 = arith.constant 304 : index
    %c0_29 = arith.constant 0 : index
    %105 = vector.load %arg1[%c304, %c0_29] : memref<464x32xf32, #tpu.memory_space<vmem>>, vector<16x1xf32>
    %106 = vector.extract_strided_slice %104 {offsets = [0, 0], sizes = [16, 16], strides = [1, 1]} : vector<16x32xf32> to vector<16x16xf32>
    %107 = vector.extract_strided_slice %103 {offsets = [0, 0], sizes = [16, 144], strides = [1, 1]} : vector<16x160xf32> to vector<16x144xf32>
    %cst_30 = arith.constant dense<0.000000e+00> : vector<16x144xf32>
    %108 = tpu.matmul %106, %107, %cst_30 {dimension_numbers = #tpu.dot_dimension_numbers<[1], [0], [0], [1], [0, 0, 1, 1], [], []>} : vector<16x16xf32>, vector<16x144xf32>, vector<16x144xf32> -> vector<16x144xf32>
    %109 = vector.extract_strided_slice %104 {offsets = [0, 16], sizes = [16, 16], strides = [1, 1]} : vector<16x32xf32> to vector<16x16xf32>
    %110 = vector.extract_strided_slice %103 {offsets = [0, 16], sizes = [16, 144], strides = [1, 1]} : vector<16x160xf32> to vector<16x144xf32>
    %cst_31 = arith.constant dense<0.000000e+00> : vector<16x144xf32>
    %111 = tpu.matmul %109, %110, %cst_31 {dimension_numbers = #tpu.dot_dimension_numbers<[1], [0], [0], [1], [0, 0, 1, 1], [], []>} : vector<16x16xf32>, vector<16x144xf32>, vector<16x144xf32> -> vector<16x144xf32>
    %112 = arith.addf %108, %111 : vector<16x144xf32>
    %113 = vector.broadcast %105 : vector<16x1xf32> to vector<16x144xf32>
    %114 = arith.addf %112, %113 : vector<16x144xf32>
    %115 = vector.extract_strided_slice %114 {offsets = [0, 0], sizes = [8, 144], strides = [1, 1]} : vector<16x144xf32> to vector<8x144xf32>
    %116 = vector.extract_strided_slice %114 {offsets = [8, 0], sizes = [8, 144], strides = [1, 1]} : vector<16x144xf32> to vector<8x144xf32>
    %117 = arith.negf %116 : vector<8x144xf32>
    %118 = math.exp %117 : vector<8x144xf32>
    %cst_32 = arith.constant 1.000000e+00 : f32
    %119 = vector.broadcast %cst_32 : f32 to vector<8x144xf32>
    %120 = arith.addf %119, %118 : vector<8x144xf32>
    %121 = arith.divf %119, %120 : vector<8x144xf32>
    %122 = arith.mulf %115, %121 : vector<8x144xf32>
    %c320 = arith.constant 320 : index
    %c0_33 = arith.constant 0 : index
    %123 = vector.load %arg1[%c320, %c0_33] : memref<464x32xf32, #tpu.memory_space<vmem>>, vector<8x8xf32>
    %c328 = arith.constant 328 : index
    %c0_34 = arith.constant 0 : index
    %124 = vector.load %arg1[%c328, %c0_34] : memref<464x32xf32, #tpu.memory_space<vmem>>, vector<8x1xf32>
    %c0_35 = arith.constant 0 : index
    %c0_36 = arith.constant 0 : index
    %125 = vector.load %arg1[%c0_35, %c0_36] : memref<464x32xf32, #tpu.memory_space<vmem>>, vector<16x16xf32>
    %cst_37 = arith.constant dense<0.000000e+00> : vector<8x144xf32>
    %126 = tpu.matmul %123, %122, %cst_37 {dimension_numbers = #tpu.dot_dimension_numbers<[1], [0], [0], [1], [0, 0, 1, 1], [], []>} : vector<8x8xf32>, vector<8x144xf32>, vector<8x144xf32> -> vector<8x144xf32>
    %127 = vector.extract_strided_slice %126 {offsets = [0, 0], sizes = [8, 16], strides = [1, 1]} : vector<8x144xf32> to vector<8x16xf32>
    %128 = vector.extract_strided_slice %126 {offsets = [0, 16], sizes = [8, 16], strides = [1, 1]} : vector<8x144xf32> to vector<8x16xf32>
    %129 = vector.extract_strided_slice %126 {offsets = [0, 32], sizes = [8, 16], strides = [1, 1]} : vector<8x144xf32> to vector<8x16xf32>
    %130 = vector.extract_strided_slice %126 {offsets = [0, 48], sizes = [8, 16], strides = [1, 1]} : vector<8x144xf32> to vector<8x16xf32>
    %131 = vector.extract_strided_slice %126 {offsets = [0, 64], sizes = [8, 16], strides = [1, 1]} : vector<8x144xf32> to vector<8x16xf32>
    %132 = vector.extract_strided_slice %126 {offsets = [0, 80], sizes = [8, 16], strides = [1, 1]} : vector<8x144xf32> to vector<8x16xf32>
    %133 = vector.extract_strided_slice %126 {offsets = [0, 96], sizes = [8, 16], strides = [1, 1]} : vector<8x144xf32> to vector<8x16xf32>
    %134 = vector.extract_strided_slice %126 {offsets = [0, 112], sizes = [8, 16], strides = [1, 1]} : vector<8x144xf32> to vector<8x16xf32>
    %135 = vector.extract_strided_slice %126 {offsets = [0, 128], sizes = [8, 16], strides = [1, 1]} : vector<8x144xf32> to vector<8x16xf32>
    %136 = tpu.concatenate %127, %128, %129, %130, %131, %132, %133, %134, %135 in 0 : vector<8x16xf32>, vector<8x16xf32>, vector<8x16xf32>, vector<8x16xf32>, vector<8x16xf32>, vector<8x16xf32>, vector<8x16xf32>, vector<8x16xf32>, vector<8x16xf32> -> vector<72x16xf32>
    %cst_38 = arith.constant dense<0.000000e+00> : vector<72x16xf32>
    %137 = tpu.matmul %136, %125, %cst_38 {dimension_numbers = #tpu.dot_dimension_numbers<[1], [0], [0], [1], [0, 0, 1, 1], [], []>} : vector<72x16xf32>, vector<16x16xf32>, vector<72x16xf32> -> vector<72x16xf32>
    %138 = vector.extract_strided_slice %137 {offsets = [0, 0], sizes = [8, 16], strides = [1, 1]} : vector<72x16xf32> to vector<8x16xf32>
    %139 = vector.extract_strided_slice %137 {offsets = [8, 0], sizes = [8, 16], strides = [1, 1]} : vector<72x16xf32> to vector<8x16xf32>
    %140 = vector.extract_strided_slice %137 {offsets = [16, 0], sizes = [8, 16], strides = [1, 1]} : vector<72x16xf32> to vector<8x16xf32>
    %141 = vector.extract_strided_slice %137 {offsets = [24, 0], sizes = [8, 16], strides = [1, 1]} : vector<72x16xf32> to vector<8x16xf32>
    %142 = vector.extract_strided_slice %137 {offsets = [32, 0], sizes = [8, 16], strides = [1, 1]} : vector<72x16xf32> to vector<8x16xf32>
    %143 = vector.extract_strided_slice %137 {offsets = [40, 0], sizes = [8, 16], strides = [1, 1]} : vector<72x16xf32> to vector<8x16xf32>
    %144 = vector.extract_strided_slice %137 {offsets = [48, 0], sizes = [8, 16], strides = [1, 1]} : vector<72x16xf32> to vector<8x16xf32>
    %145 = vector.extract_strided_slice %137 {offsets = [56, 0], sizes = [8, 16], strides = [1, 1]} : vector<72x16xf32> to vector<8x16xf32>
    %146 = vector.extract_strided_slice %137 {offsets = [64, 0], sizes = [8, 16], strides = [1, 1]} : vector<72x16xf32> to vector<8x16xf32>
    %147 = tpu.concatenate %138, %139, %140, %141, %142, %143, %144, %145, %146 in 1 : vector<8x16xf32>, vector<8x16xf32>, vector<8x16xf32>, vector<8x16xf32>, vector<8x16xf32>, vector<8x16xf32>, vector<8x16xf32>, vector<8x16xf32>, vector<8x16xf32> -> vector<8x144xf32>
    %148 = vector.broadcast %124 : vector<8x1xf32> to vector<8x144xf32>
    %149 = arith.addf %147, %148 : vector<8x144xf32>
    %cst_39 = arith.constant 0.000000e+00 : f32
    %150 = vector.broadcast %cst_39 : f32 to vector<8x144xf32>
    %151 = arith.maximumf %149, %150 : vector<8x144xf32>
    %c336 = arith.constant 336 : index
    %c0_40 = arith.constant 0 : index
    %152 = vector.load %arg1[%c336, %c0_40] : memref<464x32xf32, #tpu.memory_space<vmem>>, vector<32x16xf32>
    %c368 = arith.constant 368 : index
    %c0_41 = arith.constant 0 : index
    %153 = vector.load %arg1[%c368, %c0_41] : memref<464x32xf32, #tpu.memory_space<vmem>>, vector<32x1xf32>
    %154 = vector.extract_strided_slice %152 {offsets = [0, 0], sizes = [32, 8], strides = [1, 1]} : vector<32x16xf32> to vector<32x8xf32>
    %155 = vector.extract_strided_slice %151 {offsets = [0, 0], sizes = [8, 128], strides = [1, 1]} : vector<8x144xf32> to vector<8x128xf32>
    %cst_42 = arith.constant dense<0.000000e+00> : vector<32x128xf32>
    %156 = tpu.matmul %154, %155, %cst_42 {dimension_numbers = #tpu.dot_dimension_numbers<[1], [0], [0], [1], [0, 0, 1, 1], [], []>} : vector<32x8xf32>, vector<8x128xf32>, vector<32x128xf32> -> vector<32x128xf32>
    %157 = vector.extract_strided_slice %152 {offsets = [0, 8], sizes = [32, 8], strides = [1, 1]} : vector<32x16xf32> to vector<32x8xf32>
    %158 = vector.extract_strided_slice %151 {offsets = [0, 16], sizes = [8, 128], strides = [1, 1]} : vector<8x144xf32> to vector<8x128xf32>
    %cst_43 = arith.constant dense<0.000000e+00> : vector<32x128xf32>
    %159 = tpu.matmul %157, %158, %cst_43 {dimension_numbers = #tpu.dot_dimension_numbers<[1], [0], [0], [1], [0, 0, 1, 1], [], []>} : vector<32x8xf32>, vector<8x128xf32>, vector<32x128xf32> -> vector<32x128xf32>
    %160 = arith.addf %156, %159 : vector<32x128xf32>
    %161 = vector.broadcast %153 : vector<32x1xf32> to vector<32x128xf32>
    %162 = arith.addf %160, %161 : vector<32x128xf32>
    %163 = vector.extract_strided_slice %162 {offsets = [0, 0], sizes = [16, 128], strides = [1, 1]} : vector<32x128xf32> to vector<16x128xf32>
    %164 = vector.extract_strided_slice %162 {offsets = [16, 0], sizes = [16, 128], strides = [1, 1]} : vector<32x128xf32> to vector<16x128xf32>
    %165 = arith.negf %164 : vector<16x128xf32>
    %166 = math.exp %165 : vector<16x128xf32>
    %cst_44 = arith.constant 1.000000e+00 : f32
    %167 = vector.broadcast %cst_44 : f32 to vector<16x128xf32>
    %168 = arith.addf %167, %166 : vector<16x128xf32>
    %169 = arith.divf %167, %168 : vector<16x128xf32>
    %170 = arith.mulf %163, %169 : vector<16x128xf32>
    %c48 = arith.constant 48 : index
    %c0_45 = arith.constant 0 : index
    %171 = vector.load %arg2[%c48, %c0_45] : memref<96x160xf32, #tpu.memory_space<vmem>>, vector<16x128xf32>
    %c64 = arith.constant 64 : index
    %c0_46 = arith.constant 0 : index
    %172 = vector.load %arg2[%c64, %c0_46] : memref<96x160xf32, #tpu.memory_space<vmem>>, vector<16x128xf32>
    %c16_47 = arith.constant 16 : index
    %c0_48 = arith.constant 0 : index
    %173 = vector.load %arg1[%c16_47, %c0_48] : memref<464x32xf32, #tpu.memory_space<vmem>>, vector<128x8xf32>
    %c0_49 = arith.constant 0 : index
    %c0_50 = arith.constant 0 : index
    %174 = vector.load %arg2[%c0_49, %c0_50] : memref<96x160xf32, #tpu.memory_space<vmem>>, vector<8x128xf32>
    %cst_51 = arith.constant dense<0.000000e+00> : vector<128xf32>
    %175 = vector.multi_reduction <add>, %170, %cst_51 [0] : vector<16x128xf32> to vector<128xf32>
    %176 = vector.shape_cast %175 : vector<128xf32> to vector<1x128xf32>
    %177 = arith.mulf %170, %170 : vector<16x128xf32>
    %cst_52 = arith.constant dense<0.000000e+00> : vector<128xf32>
    %178 = vector.multi_reduction <add>, %177, %cst_52 [0] : vector<16x128xf32> to vector<128xf32>
    %179 = vector.shape_cast %178 : vector<128xf32> to vector<1x128xf32>
    %180 = tpu.concatenate %176, %179 in 0 : vector<1x128xf32>, vector<1x128xf32> -> vector<2x128xf32>
    %cst_53 = arith.constant dense<0.000000e+00> : vector<2x8xf32>
    %181 = tpu.matmul %180, %173, %cst_53 {dimension_numbers = #tpu.dot_dimension_numbers<[1], [0], [0], [1], [0, 0, 1, 1], [], []>} : vector<2x128xf32>, vector<128x8xf32>, vector<2x8xf32> -> vector<2x8xf32>
    %cst_54 = arith.constant dense<0.000000e+00> : vector<2x128xf32>
    %182 = tpu.matmul %181, %174, %cst_54 {dimension_numbers = #tpu.dot_dimension_numbers<[1], [0], [0], [1], [0, 0, 1, 1], [], []>} : vector<2x8xf32>, vector<8x128xf32>, vector<2x128xf32> -> vector<2x128xf32>
    %cst_55 = arith.constant 3.906250e-03 : f32
    %183 = vector.broadcast %cst_55 : f32 to vector<2x128xf32>
    %184 = arith.mulf %182, %183 : vector<2x128xf32>
    %185 = vector.extract_strided_slice %184 {offsets = [0, 0], sizes = [1, 128], strides = [1, 1]} : vector<2x128xf32> to vector<1x128xf32>
    %186 = vector.extract_strided_slice %184 {offsets = [1, 0], sizes = [1, 128], strides = [1, 1]} : vector<2x128xf32> to vector<1x128xf32>
    %187 = arith.mulf %185, %185 : vector<1x128xf32>
    %188 = arith.subf %186, %187 : vector<1x128xf32>
    %189 = vector.broadcast %185 : vector<1x128xf32> to vector<16x128xf32>
    %190 = arith.subf %170, %189 : vector<16x128xf32>
    %cst_56 = arith.constant 9.99999974E-6 : f32
    %191 = vector.broadcast %cst_56 : f32 to vector<1x128xf32>
    %192 = arith.addf %188, %191 : vector<1x128xf32>
    %193 = math.rsqrt %192 : vector<1x128xf32>
    %194 = vector.broadcast %193 : vector<1x128xf32> to vector<16x128xf32>
    %195 = arith.mulf %190, %194 : vector<16x128xf32>
    %196 = arith.mulf %195, %171 : vector<16x128xf32>
    %197 = arith.addf %196, %172 : vector<16x128xf32>
    %c80 = arith.constant 80 : index
    %c0_57 = arith.constant 0 : index
    %198 = vector.load %arg2[%c80, %c0_57] : memref<96x160xf32, #tpu.memory_space<vmem>>, vector<16x128xf32>
    %c400 = arith.constant 400 : index
    %c0_58 = arith.constant 0 : index
    %199 = vector.load %arg1[%c400, %c0_58] : memref<464x32xf32, #tpu.memory_space<vmem>>, vector<16x1xf32>
    %c416 = arith.constant 416 : index
    %c0_59 = arith.constant 0 : index
    %200 = vector.load %arg1[%c416, %c0_59] : memref<464x32xf32, #tpu.memory_space<vmem>>, vector<16x16xf32>
    %c432 = arith.constant 432 : index
    %c0_60 = arith.constant 0 : index
    %201 = vector.load %arg1[%c432, %c0_60] : memref<464x32xf32, #tpu.memory_space<vmem>>, vector<16x16xf32>
    %c448 = arith.constant 448 : index
    %c0_61 = arith.constant 0 : index
    %202 = vector.load %arg1[%c448, %c0_61] : memref<464x32xf32, #tpu.memory_space<vmem>>, vector<1x16xf32>
    %c456 = arith.constant 456 : index
    %c0_62 = arith.constant 0 : index
    %203 = vector.load %arg1[%c456, %c0_62] : memref<464x32xf32, #tpu.memory_space<vmem>>, vector<1x1xf32>
    %204 = vector.extract_strided_slice %197 {offsets = [0, 0], sizes = [16, 16], strides = [1, 1]} : vector<16x128xf32> to vector<16x16xf32>
    %205 = vector.extract_strided_slice %197 {offsets = [0, 16], sizes = [16, 16], strides = [1, 1]} : vector<16x128xf32> to vector<16x16xf32>
    %206 = vector.extract_strided_slice %197 {offsets = [0, 32], sizes = [16, 16], strides = [1, 1]} : vector<16x128xf32> to vector<16x16xf32>
    %207 = vector.extract_strided_slice %197 {offsets = [0, 48], sizes = [16, 16], strides = [1, 1]} : vector<16x128xf32> to vector<16x16xf32>
    %208 = vector.extract_strided_slice %197 {offsets = [0, 64], sizes = [16, 16], strides = [1, 1]} : vector<16x128xf32> to vector<16x16xf32>
    %209 = vector.extract_strided_slice %197 {offsets = [0, 80], sizes = [16, 16], strides = [1, 1]} : vector<16x128xf32> to vector<16x16xf32>
    %210 = vector.extract_strided_slice %197 {offsets = [0, 96], sizes = [16, 16], strides = [1, 1]} : vector<16x128xf32> to vector<16x16xf32>
    %211 = vector.extract_strided_slice %197 {offsets = [0, 112], sizes = [16, 16], strides = [1, 1]} : vector<16x128xf32> to vector<16x16xf32>
    %212 = tpu.concatenate %204, %205, %206, %207, %208, %209, %210, %211 in 0 : vector<16x16xf32>, vector<16x16xf32>, vector<16x16xf32>, vector<16x16xf32>, vector<16x16xf32>, vector<16x16xf32>, vector<16x16xf32>, vector<16x16xf32> -> vector<128x16xf32>
    %cst_63 = arith.constant dense<0.000000e+00> : vector<16x16xf32>
    %213 = tpu.matmul %198, %212, %cst_63 {dimension_numbers = #tpu.dot_dimension_numbers<[1], [0], [0], [1], [0, 0, 1, 1], [], []>} : vector<16x128xf32>, vector<128x16xf32>, vector<16x16xf32> -> vector<16x16xf32>
    %214 = vector.broadcast %199 : vector<16x1xf32> to vector<16x16xf32>
    %215 = arith.addf %213, %214 : vector<16x16xf32>
    %216 = vector.shape_cast %215 : vector<16x16xf32> to vector<1x16x16xf32>
    %cst_64 = arith.constant dense<0.000000e+00> : vector<1xf32>
    %217 = vector.multi_reduction <add>, %216, %cst_64 [1, 2] : vector<1x16x16xf32> to vector<1xf32>
    %218 = vector.shape_cast %217 : vector<1xf32> to vector<1x1x1xf32>
    %219 = vector.extract %218[0, 0, 0] : f32 from vector<1x1x1xf32>
    %220 = vector.broadcast %219 : f32 to vector<1x1xf32>
    %cst_65 = arith.constant 2.560000e+02 : f32
    %221 = vector.broadcast %cst_65 : f32 to vector<1x1xf32>
    %222 = arith.divf %220, %221 : vector<1x1xf32>
    %223 = vector.broadcast %222 : vector<1x1xf32> to vector<16x16xf32>
    %224 = arith.subf %215, %223 : vector<16x16xf32>
    %225 = arith.mulf %224, %224 : vector<16x16xf32>
    %226 = vector.shape_cast %225 : vector<16x16xf32> to vector<1x16x16xf32>
    %cst_66 = arith.constant dense<0.000000e+00> : vector<1xf32>
    %227 = vector.multi_reduction <add>, %226, %cst_66 [1, 2] : vector<1x16x16xf32> to vector<1xf32>
    %228 = vector.shape_cast %227 : vector<1xf32> to vector<1x1x1xf32>
    %229 = vector.extract %228[0, 0, 0] : f32 from vector<1x1x1xf32>
    %230 = vector.broadcast %229 : f32 to vector<1x1xf32>
    %cst_67 = arith.constant 2.560000e+02 : f32
    %231 = vector.broadcast %cst_67 : f32 to vector<1x1xf32>
    %232 = arith.divf %230, %231 : vector<1x1xf32>
    %233 = vector.broadcast %222 : vector<1x1xf32> to vector<16x16xf32>
    %234 = arith.subf %215, %233 : vector<16x16xf32>
    %cst_68 = arith.constant 9.99999974E-6 : f32
    %235 = vector.broadcast %cst_68 : f32 to vector<1x1xf32>
    %236 = arith.addf %232, %235 : vector<1x1xf32>
    %237 = math.rsqrt %236 : vector<1x1xf32>
    %238 = vector.broadcast %237 : vector<1x1xf32> to vector<16x16xf32>
    %239 = arith.mulf %234, %238 : vector<16x16xf32>
    %240 = arith.mulf %239, %200 : vector<16x16xf32>
    %241 = arith.addf %240, %201 : vector<16x16xf32>
    %cst_69 = arith.constant dense<0.000000e+00> : vector<1x16xf32>
    %242 = tpu.matmul %202, %241, %cst_69 {dimension_numbers = #tpu.dot_dimension_numbers<[1], [0], [0], [1], [0, 0, 1, 1], [], []>} : vector<1x16xf32>, vector<16x16xf32>, vector<1x16xf32> -> vector<1x16xf32>
    %243 = vector.broadcast %203 : vector<1x1xf32> to vector<1x16xf32>
    %244 = arith.addf %242, %243 : vector<1x16xf32>
    %c1 = arith.constant 1 : index
    %c0_70 = arith.constant 0 : index
    %c0_71 = arith.constant 0 : index
    %245 = vector.load %arg0[%c1, %c0_70, %c0_71] : memref<2x1x192xf32, #tpu.memory_space<vmem>>, vector<1x1x192xf32>
    %246 = vector.shape_cast %245 : vector<1x1x192xf32> to vector<1x192xf32>
    %c176_72 = arith.constant 176 : index
    %c0_73 = arith.constant 0 : index
    %247 = vector.load %arg1[%c176_72, %c0_73] : memref<464x32xf32, #tpu.memory_space<vmem>>, vector<16x2xf32>
    %c192_74 = arith.constant 192 : index
    %c0_75 = arith.constant 0 : index
    %248 = vector.load %arg1[%c192_74, %c0_75] : memref<464x32xf32, #tpu.memory_space<vmem>>, vector<16x1xf32>
    %249 = vector.extract_strided_slice %247 {offsets = [0, 0], sizes = [16, 1], strides = [1, 1]} : vector<16x2xf32> to vector<16x1xf32>
    %250 = vector.extract_strided_slice %246 {offsets = [0, 0], sizes = [1, 176], strides = [1, 1]} : vector<1x192xf32> to vector<1x176xf32>
    %251 = vector.broadcast %249 : vector<16x1xf32> to vector<16x176xf32>
    %252 = vector.broadcast %250 : vector<1x176xf32> to vector<16x176xf32>
    %253 = arith.mulf %251, %252 : vector<16x176xf32>
    %254 = vector.extract_strided_slice %247 {offsets = [0, 1], sizes = [16, 1], strides = [1, 1]} : vector<16x2xf32> to vector<16x1xf32>
    %255 = vector.extract_strided_slice %246 {offsets = [0, 16], sizes = [1, 176], strides = [1, 1]} : vector<1x192xf32> to vector<1x176xf32>
    %256 = vector.broadcast %254 : vector<16x1xf32> to vector<16x176xf32>
    %257 = vector.broadcast %255 : vector<1x176xf32> to vector<16x176xf32>
    %258 = arith.mulf %256, %257 : vector<16x176xf32>
    %259 = arith.addf %253, %258 : vector<16x176xf32>
    %260 = vector.broadcast %248 : vector<16x1xf32> to vector<16x176xf32>
    %261 = arith.addf %259, %260 : vector<16x176xf32>
    %262 = vector.extract_strided_slice %261 {offsets = [0, 0], sizes = [8, 176], strides = [1, 1]} : vector<16x176xf32> to vector<8x176xf32>
    %263 = vector.extract_strided_slice %261 {offsets = [8, 0], sizes = [8, 176], strides = [1, 1]} : vector<16x176xf32> to vector<8x176xf32>
    %264 = arith.negf %263 : vector<8x176xf32>
    %265 = math.exp %264 : vector<8x176xf32>
    %cst_76 = arith.constant 1.000000e+00 : f32
    %266 = vector.broadcast %cst_76 : f32 to vector<8x176xf32>
    %267 = arith.addf %266, %265 : vector<8x176xf32>
    %268 = arith.divf %266, %267 : vector<8x176xf32>
    %269 = arith.mulf %262, %268 : vector<8x176xf32>
    %c208_77 = arith.constant 208 : index
    %c0_78 = arith.constant 0 : index
    %270 = vector.load %arg1[%c208_77, %c0_78] : memref<464x32xf32, #tpu.memory_space<vmem>>, vector<8x8xf32>
    %c216_79 = arith.constant 216 : index
    %c0_80 = arith.constant 0 : index
    %271 = vector.load %arg1[%c216_79, %c0_80] : memref<464x32xf32, #tpu.memory_space<vmem>>, vector<8x1xf32>
    %c0_81 = arith.constant 0 : index
    %c0_82 = arith.constant 0 : index
    %272 = vector.load %arg1[%c0_81, %c0_82] : memref<464x32xf32, #tpu.memory_space<vmem>>, vector<16x16xf32>
    %cst_83 = arith.constant dense<0.000000e+00> : vector<8x176xf32>
    %273 = tpu.matmul %270, %269, %cst_83 {dimension_numbers = #tpu.dot_dimension_numbers<[1], [0], [0], [1], [0, 0, 1, 1], [], []>} : vector<8x8xf32>, vector<8x176xf32>, vector<8x176xf32> -> vector<8x176xf32>
    %274 = vector.extract_strided_slice %273 {offsets = [0, 0], sizes = [8, 16], strides = [1, 1]} : vector<8x176xf32> to vector<8x16xf32>
    %275 = vector.extract_strided_slice %273 {offsets = [0, 16], sizes = [8, 16], strides = [1, 1]} : vector<8x176xf32> to vector<8x16xf32>
    %276 = vector.extract_strided_slice %273 {offsets = [0, 32], sizes = [8, 16], strides = [1, 1]} : vector<8x176xf32> to vector<8x16xf32>
    %277 = vector.extract_strided_slice %273 {offsets = [0, 48], sizes = [8, 16], strides = [1, 1]} : vector<8x176xf32> to vector<8x16xf32>
    %278 = vector.extract_strided_slice %273 {offsets = [0, 64], sizes = [8, 16], strides = [1, 1]} : vector<8x176xf32> to vector<8x16xf32>
    %279 = vector.extract_strided_slice %273 {offsets = [0, 80], sizes = [8, 16], strides = [1, 1]} : vector<8x176xf32> to vector<8x16xf32>
    %280 = vector.extract_strided_slice %273 {offsets = [0, 96], sizes = [8, 16], strides = [1, 1]} : vector<8x176xf32> to vector<8x16xf32>
    %281 = vector.extract_strided_slice %273 {offsets = [0, 112], sizes = [8, 16], strides = [1, 1]} : vector<8x176xf32> to vector<8x16xf32>
    %282 = vector.extract_strided_slice %273 {offsets = [0, 128], sizes = [8, 16], strides = [1, 1]} : vector<8x176xf32> to vector<8x16xf32>
    %283 = vector.extract_strided_slice %273 {offsets = [0, 144], sizes = [8, 16], strides = [1, 1]} : vector<8x176xf32> to vector<8x16xf32>
    %284 = vector.extract_strided_slice %273 {offsets = [0, 160], sizes = [8, 16], strides = [1, 1]} : vector<8x176xf32> to vector<8x16xf32>
    %285 = tpu.concatenate %274, %275, %276, %277, %278, %279, %280, %281, %282, %283, %284 in 0 : vector<8x16xf32>, vector<8x16xf32>, vector<8x16xf32>, vector<8x16xf32>, vector<8x16xf32>, vector<8x16xf32>, vector<8x16xf32>, vector<8x16xf32>, vector<8x16xf32>, vector<8x16xf32>, vector<8x16xf32> -> vector<88x16xf32>
    %cst_84 = arith.constant dense<0.000000e+00> : vector<88x16xf32>
    %286 = tpu.matmul %285, %272, %cst_84 {dimension_numbers = #tpu.dot_dimension_numbers<[1], [0], [0], [1], [0, 0, 1, 1], [], []>} : vector<88x16xf32>, vector<16x16xf32>, vector<88x16xf32> -> vector<88x16xf32>
    %287 = vector.extract_strided_slice %286 {offsets = [0, 0], sizes = [8, 16], strides = [1, 1]} : vector<88x16xf32> to vector<8x16xf32>
    %288 = vector.extract_strided_slice %286 {offsets = [8, 0], sizes = [8, 16], strides = [1, 1]} : vector<88x16xf32> to vector<8x16xf32>
    %289 = vector.extract_strided_slice %286 {offsets = [16, 0], sizes = [8, 16], strides = [1, 1]} : vector<88x16xf32> to vector<8x16xf32>
    %290 = vector.extract_strided_slice %286 {offsets = [24, 0], sizes = [8, 16], strides = [1, 1]} : vector<88x16xf32> to vector<8x16xf32>
    %291 = vector.extract_strided_slice %286 {offsets = [32, 0], sizes = [8, 16], strides = [1, 1]} : vector<88x16xf32> to vector<8x16xf32>
    %292 = vector.extract_strided_slice %286 {offsets = [40, 0], sizes = [8, 16], strides = [1, 1]} : vector<88x16xf32> to vector<8x16xf32>
    %293 = vector.extract_strided_slice %286 {offsets = [48, 0], sizes = [8, 16], strides = [1, 1]} : vector<88x16xf32> to vector<8x16xf32>
    %294 = vector.extract_strided_slice %286 {offsets = [56, 0], sizes = [8, 16], strides = [1, 1]} : vector<88x16xf32> to vector<8x16xf32>
    %295 = vector.extract_strided_slice %286 {offsets = [64, 0], sizes = [8, 16], strides = [1, 1]} : vector<88x16xf32> to vector<8x16xf32>
    %296 = vector.extract_strided_slice %286 {offsets = [72, 0], sizes = [8, 16], strides = [1, 1]} : vector<88x16xf32> to vector<8x16xf32>
    %297 = vector.extract_strided_slice %286 {offsets = [80, 0], sizes = [8, 16], strides = [1, 1]} : vector<88x16xf32> to vector<8x16xf32>
    %298 = tpu.concatenate %287, %288, %289, %290, %291, %292, %293, %294, %295, %296, %297 in 1 : vector<8x16xf32>, vector<8x16xf32>, vector<8x16xf32>, vector<8x16xf32>, vector<8x16xf32>, vector<8x16xf32>, vector<8x16xf32>, vector<8x16xf32>, vector<8x16xf32>, vector<8x16xf32>, vector<8x16xf32> -> vector<8x176xf32>
    %299 = vector.broadcast %271 : vector<8x1xf32> to vector<8x176xf32>
    %300 = arith.addf %298, %299 : vector<8x176xf32>
    %cst_85 = arith.constant 0.000000e+00 : f32
    %301 = vector.broadcast %cst_85 : f32 to vector<8x176xf32>
    %302 = arith.maximumf %300, %301 : vector<8x176xf32>
    %c224_86 = arith.constant 224 : index
    %c0_87 = arith.constant 0 : index
    %303 = vector.load %arg1[%c224_86, %c0_87] : memref<464x32xf32, #tpu.memory_space<vmem>>, vector<32x16xf32>
    %c256_88 = arith.constant 256 : index
    %c0_89 = arith.constant 0 : index
    %304 = vector.load %arg1[%c256_88, %c0_89] : memref<464x32xf32, #tpu.memory_space<vmem>>, vector<32x1xf32>
    %305 = vector.extract_strided_slice %303 {offsets = [0, 0], sizes = [32, 8], strides = [1, 1]} : vector<32x16xf32> to vector<32x8xf32>
    %306 = vector.extract_strided_slice %302 {offsets = [0, 0], sizes = [8, 160], strides = [1, 1]} : vector<8x176xf32> to vector<8x160xf32>
    %cst_90 = arith.constant dense<0.000000e+00> : vector<32x160xf32>
    %307 = tpu.matmul %305, %306, %cst_90 {dimension_numbers = #tpu.dot_dimension_numbers<[1], [0], [0], [1], [0, 0, 1, 1], [], []>} : vector<32x8xf32>, vector<8x160xf32>, vector<32x160xf32> -> vector<32x160xf32>
    %308 = vector.extract_strided_slice %303 {offsets = [0, 8], sizes = [32, 8], strides = [1, 1]} : vector<32x16xf32> to vector<32x8xf32>
    %309 = vector.extract_strided_slice %302 {offsets = [0, 16], sizes = [8, 160], strides = [1, 1]} : vector<8x176xf32> to vector<8x160xf32>
    %cst_91 = arith.constant dense<0.000000e+00> : vector<32x160xf32>
    %310 = tpu.matmul %308, %309, %cst_91 {dimension_numbers = #tpu.dot_dimension_numbers<[1], [0], [0], [1], [0, 0, 1, 1], [], []>} : vector<32x8xf32>, vector<8x160xf32>, vector<32x160xf32> -> vector<32x160xf32>
    %311 = arith.addf %307, %310 : vector<32x160xf32>
    %312 = vector.broadcast %304 : vector<32x1xf32> to vector<32x160xf32>
    %313 = arith.addf %311, %312 : vector<32x160xf32>
    %314 = vector.extract_strided_slice %313 {offsets = [0, 0], sizes = [16, 160], strides = [1, 1]} : vector<32x160xf32> to vector<16x160xf32>
    %315 = vector.extract_strided_slice %313 {offsets = [16, 0], sizes = [16, 160], strides = [1, 1]} : vector<32x160xf32> to vector<16x160xf32>
    %316 = arith.negf %315 : vector<16x160xf32>
    %317 = math.exp %316 : vector<16x160xf32>
    %cst_92 = arith.constant 1.000000e+00 : f32
    %318 = vector.broadcast %cst_92 : f32 to vector<16x160xf32>
    %319 = arith.addf %318, %317 : vector<16x160xf32>
    %320 = arith.divf %318, %319 : vector<16x160xf32>
    %321 = arith.mulf %314, %320 : vector<16x160xf32>
    %c16_93 = arith.constant 16 : index
    %c0_94 = arith.constant 0 : index
    %322 = vector.load %arg2[%c16_93, %c0_94] : memref<96x160xf32, #tpu.memory_space<vmem>>, vector<16x160xf32>
    %c32_95 = arith.constant 32 : index
    %c0_96 = arith.constant 0 : index
    %323 = vector.load %arg2[%c32_95, %c0_96] : memref<96x160xf32, #tpu.memory_space<vmem>>, vector<16x160xf32>
    %c16_97 = arith.constant 16 : index
    %c0_98 = arith.constant 0 : index
    %324 = vector.load %arg1[%c16_97, %c0_98] : memref<464x32xf32, #tpu.memory_space<vmem>>, vector<160x10xf32>
    %c0_99 = arith.constant 0 : index
    %c0_100 = arith.constant 0 : index
    %325 = vector.load %arg2[%c0_99, %c0_100] : memref<96x160xf32, #tpu.memory_space<vmem>>, vector<10x160xf32>
    %cst_101 = arith.constant dense<0.000000e+00> : vector<160xf32>
    %326 = vector.multi_reduction <add>, %321, %cst_101 [0] : vector<16x160xf32> to vector<160xf32>
    %327 = vector.shape_cast %326 : vector<160xf32> to vector<1x160xf32>
    %328 = arith.mulf %321, %321 : vector<16x160xf32>
    %cst_102 = arith.constant dense<0.000000e+00> : vector<160xf32>
    %329 = vector.multi_reduction <add>, %328, %cst_102 [0] : vector<16x160xf32> to vector<160xf32>
    %330 = vector.shape_cast %329 : vector<160xf32> to vector<1x160xf32>
    %331 = tpu.concatenate %327, %330 in 0 : vector<1x160xf32>, vector<1x160xf32> -> vector<2x160xf32>
    %cst_103 = arith.constant dense<0.000000e+00> : vector<2x10xf32>
    %332 = tpu.matmul %331, %324, %cst_103 {dimension_numbers = #tpu.dot_dimension_numbers<[1], [0], [0], [1], [0, 0, 1, 1], [], []>} : vector<2x160xf32>, vector<160x10xf32>, vector<2x10xf32> -> vector<2x10xf32>
    %cst_104 = arith.constant dense<0.000000e+00> : vector<2x160xf32>
    %333 = tpu.matmul %332, %325, %cst_104 {dimension_numbers = #tpu.dot_dimension_numbers<[1], [0], [0], [1], [0, 0, 1, 1], [], []>} : vector<2x10xf32>, vector<10x160xf32>, vector<2x160xf32> -> vector<2x160xf32>
    %cst_105 = arith.constant 3.906250e-03 : f32
    %334 = vector.broadcast %cst_105 : f32 to vector<2x160xf32>
    %335 = arith.mulf %333, %334 : vector<2x160xf32>
    %336 = vector.extract_strided_slice %335 {offsets = [0, 0], sizes = [1, 160], strides = [1, 1]} : vector<2x160xf32> to vector<1x160xf32>
    %337 = vector.extract_strided_slice %335 {offsets = [1, 0], sizes = [1, 160], strides = [1, 1]} : vector<2x160xf32> to vector<1x160xf32>
    %338 = arith.mulf %336, %336 : vector<1x160xf32>
    %339 = arith.subf %337, %338 : vector<1x160xf32>
    %340 = vector.broadcast %336 : vector<1x160xf32> to vector<16x160xf32>
    %341 = arith.subf %321, %340 : vector<16x160xf32>
    %cst_106 = arith.constant 9.99999974E-6 : f32
    %342 = vector.broadcast %cst_106 : f32 to vector<1x160xf32>
    %343 = arith.addf %339, %342 : vector<1x160xf32>
    %344 = math.rsqrt %343 : vector<1x160xf32>
    %345 = vector.broadcast %344 : vector<1x160xf32> to vector<16x160xf32>
    %346 = arith.mulf %341, %345 : vector<16x160xf32>
    %347 = arith.mulf %346, %322 : vector<16x160xf32>
    %348 = arith.addf %347, %323 : vector<16x160xf32>
    %c288_107 = arith.constant 288 : index
    %c0_108 = arith.constant 0 : index
    %349 = vector.load %arg1[%c288_107, %c0_108] : memref<464x32xf32, #tpu.memory_space<vmem>>, vector<16x32xf32>
    %c304_109 = arith.constant 304 : index
    %c0_110 = arith.constant 0 : index
    %350 = vector.load %arg1[%c304_109, %c0_110] : memref<464x32xf32, #tpu.memory_space<vmem>>, vector<16x1xf32>
    %351 = vector.extract_strided_slice %349 {offsets = [0, 0], sizes = [16, 16], strides = [1, 1]} : vector<16x32xf32> to vector<16x16xf32>
    %352 = vector.extract_strided_slice %348 {offsets = [0, 0], sizes = [16, 144], strides = [1, 1]} : vector<16x160xf32> to vector<16x144xf32>
    %cst_111 = arith.constant dense<0.000000e+00> : vector<16x144xf32>
    %353 = tpu.matmul %351, %352, %cst_111 {dimension_numbers = #tpu.dot_dimension_numbers<[1], [0], [0], [1], [0, 0, 1, 1], [], []>} : vector<16x16xf32>, vector<16x144xf32>, vector<16x144xf32> -> vector<16x144xf32>
    %354 = vector.extract_strided_slice %349 {offsets = [0, 16], sizes = [16, 16], strides = [1, 1]} : vector<16x32xf32> to vector<16x16xf32>
    %355 = vector.extract_strided_slice %348 {offsets = [0, 16], sizes = [16, 144], strides = [1, 1]} : vector<16x160xf32> to vector<16x144xf32>
    %cst_112 = arith.constant dense<0.000000e+00> : vector<16x144xf32>
    %356 = tpu.matmul %354, %355, %cst_112 {dimension_numbers = #tpu.dot_dimension_numbers<[1], [0], [0], [1], [0, 0, 1, 1], [], []>} : vector<16x16xf32>, vector<16x144xf32>, vector<16x144xf32> -> vector<16x144xf32>
    %357 = arith.addf %353, %356 : vector<16x144xf32>
    %358 = vector.broadcast %350 : vector<16x1xf32> to vector<16x144xf32>
    %359 = arith.addf %357, %358 : vector<16x144xf32>
    %360 = vector.extract_strided_slice %359 {offsets = [0, 0], sizes = [8, 144], strides = [1, 1]} : vector<16x144xf32> to vector<8x144xf32>
    %361 = vector.extract_strided_slice %359 {offsets = [8, 0], sizes = [8, 144], strides = [1, 1]} : vector<16x144xf32> to vector<8x144xf32>
    %362 = arith.negf %361 : vector<8x144xf32>
    %363 = math.exp %362 : vector<8x144xf32>
    %cst_113 = arith.constant 1.000000e+00 : f32
    %364 = vector.broadcast %cst_113 : f32 to vector<8x144xf32>
    %365 = arith.addf %364, %363 : vector<8x144xf32>
    %366 = arith.divf %364, %365 : vector<8x144xf32>
    %367 = arith.mulf %360, %366 : vector<8x144xf32>
    %c320_114 = arith.constant 320 : index
    %c0_115 = arith.constant 0 : index
    %368 = vector.load %arg1[%c320_114, %c0_115] : memref<464x32xf32, #tpu.memory_space<vmem>>, vector<8x8xf32>
    %c328_116 = arith.constant 328 : index
    %c0_117 = arith.constant 0 : index
    %369 = vector.load %arg1[%c328_116, %c0_117] : memref<464x32xf32, #tpu.memory_space<vmem>>, vector<8x1xf32>
    %c0_118 = arith.constant 0 : index
    %c0_119 = arith.constant 0 : index
    %370 = vector.load %arg1[%c0_118, %c0_119] : memref<464x32xf32, #tpu.memory_space<vmem>>, vector<16x16xf32>
    %cst_120 = arith.constant dense<0.000000e+00> : vector<8x144xf32>
    %371 = tpu.matmul %368, %367, %cst_120 {dimension_numbers = #tpu.dot_dimension_numbers<[1], [0], [0], [1], [0, 0, 1, 1], [], []>} : vector<8x8xf32>, vector<8x144xf32>, vector<8x144xf32> -> vector<8x144xf32>
    %372 = vector.extract_strided_slice %371 {offsets = [0, 0], sizes = [8, 16], strides = [1, 1]} : vector<8x144xf32> to vector<8x16xf32>
    %373 = vector.extract_strided_slice %371 {offsets = [0, 16], sizes = [8, 16], strides = [1, 1]} : vector<8x144xf32> to vector<8x16xf32>
    %374 = vector.extract_strided_slice %371 {offsets = [0, 32], sizes = [8, 16], strides = [1, 1]} : vector<8x144xf32> to vector<8x16xf32>
    %375 = vector.extract_strided_slice %371 {offsets = [0, 48], sizes = [8, 16], strides = [1, 1]} : vector<8x144xf32> to vector<8x16xf32>
    %376 = vector.extract_strided_slice %371 {offsets = [0, 64], sizes = [8, 16], strides = [1, 1]} : vector<8x144xf32> to vector<8x16xf32>
    %377 = vector.extract_strided_slice %371 {offsets = [0, 80], sizes = [8, 16], strides = [1, 1]} : vector<8x144xf32> to vector<8x16xf32>
    %378 = vector.extract_strided_slice %371 {offsets = [0, 96], sizes = [8, 16], strides = [1, 1]} : vector<8x144xf32> to vector<8x16xf32>
    %379 = vector.extract_strided_slice %371 {offsets = [0, 112], sizes = [8, 16], strides = [1, 1]} : vector<8x144xf32> to vector<8x16xf32>
    %380 = vector.extract_strided_slice %371 {offsets = [0, 128], sizes = [8, 16], strides = [1, 1]} : vector<8x144xf32> to vector<8x16xf32>
    %381 = tpu.concatenate %372, %373, %374, %375, %376, %377, %378, %379, %380 in 0 : vector<8x16xf32>, vector<8x16xf32>, vector<8x16xf32>, vector<8x16xf32>, vector<8x16xf32>, vector<8x16xf32>, vector<8x16xf32>, vector<8x16xf32>, vector<8x16xf32> -> vector<72x16xf32>
    %cst_121 = arith.constant dense<0.000000e+00> : vector<72x16xf32>
    %382 = tpu.matmul %381, %370, %cst_121 {dimension_numbers = #tpu.dot_dimension_numbers<[1], [0], [0], [1], [0, 0, 1, 1], [], []>} : vector<72x16xf32>, vector<16x16xf32>, vector<72x16xf32> -> vector<72x16xf32>
    %383 = vector.extract_strided_slice %382 {offsets = [0, 0], sizes = [8, 16], strides = [1, 1]} : vector<72x16xf32> to vector<8x16xf32>
    %384 = vector.extract_strided_slice %382 {offsets = [8, 0], sizes = [8, 16], strides = [1, 1]} : vector<72x16xf32> to vector<8x16xf32>
    %385 = vector.extract_strided_slice %382 {offsets = [16, 0], sizes = [8, 16], strides = [1, 1]} : vector<72x16xf32> to vector<8x16xf32>
    %386 = vector.extract_strided_slice %382 {offsets = [24, 0], sizes = [8, 16], strides = [1, 1]} : vector<72x16xf32> to vector<8x16xf32>
    %387 = vector.extract_strided_slice %382 {offsets = [32, 0], sizes = [8, 16], strides = [1, 1]} : vector<72x16xf32> to vector<8x16xf32>
    %388 = vector.extract_strided_slice %382 {offsets = [40, 0], sizes = [8, 16], strides = [1, 1]} : vector<72x16xf32> to vector<8x16xf32>
    %389 = vector.extract_strided_slice %382 {offsets = [48, 0], sizes = [8, 16], strides = [1, 1]} : vector<72x16xf32> to vector<8x16xf32>
    %390 = vector.extract_strided_slice %382 {offsets = [56, 0], sizes = [8, 16], strides = [1, 1]} : vector<72x16xf32> to vector<8x16xf32>
    %391 = vector.extract_strided_slice %382 {offsets = [64, 0], sizes = [8, 16], strides = [1, 1]} : vector<72x16xf32> to vector<8x16xf32>
    %392 = tpu.concatenate %383, %384, %385, %386, %387, %388, %389, %390, %391 in 1 : vector<8x16xf32>, vector<8x16xf32>, vector<8x16xf32>, vector<8x16xf32>, vector<8x16xf32>, vector<8x16xf32>, vector<8x16xf32>, vector<8x16xf32>, vector<8x16xf32> -> vector<8x144xf32>
    %393 = vector.broadcast %369 : vector<8x1xf32> to vector<8x144xf32>
    %394 = arith.addf %392, %393 : vector<8x144xf32>
    %cst_122 = arith.constant 0.000000e+00 : f32
    %395 = vector.broadcast %cst_122 : f32 to vector<8x144xf32>
    %396 = arith.maximumf %394, %395 : vector<8x144xf32>
    %c336_123 = arith.constant 336 : index
    %c0_124 = arith.constant 0 : index
    %397 = vector.load %arg1[%c336_123, %c0_124] : memref<464x32xf32, #tpu.memory_space<vmem>>, vector<32x16xf32>
    %c368_125 = arith.constant 368 : index
    %c0_126 = arith.constant 0 : index
    %398 = vector.load %arg1[%c368_125, %c0_126] : memref<464x32xf32, #tpu.memory_space<vmem>>, vector<32x1xf32>
    %399 = vector.extract_strided_slice %397 {offsets = [0, 0], sizes = [32, 8], strides = [1, 1]} : vector<32x16xf32> to vector<32x8xf32>
    %400 = vector.extract_strided_slice %396 {offsets = [0, 0], sizes = [8, 128], strides = [1, 1]} : vector<8x144xf32> to vector<8x128xf32>
    %cst_127 = arith.constant dense<0.000000e+00> : vector<32x128xf32>
    %401 = tpu.matmul %399, %400, %cst_127 {dimension_numbers = #tpu.dot_dimension_numbers<[1], [0], [0], [1], [0, 0, 1, 1], [], []>} : vector<32x8xf32>, vector<8x128xf32>, vector<32x128xf32> -> vector<32x128xf32>
    %402 = vector.extract_strided_slice %397 {offsets = [0, 8], sizes = [32, 8], strides = [1, 1]} : vector<32x16xf32> to vector<32x8xf32>
    %403 = vector.extract_strided_slice %396 {offsets = [0, 16], sizes = [8, 128], strides = [1, 1]} : vector<8x144xf32> to vector<8x128xf32>
    %cst_128 = arith.constant dense<0.000000e+00> : vector<32x128xf32>
    %404 = tpu.matmul %402, %403, %cst_128 {dimension_numbers = #tpu.dot_dimension_numbers<[1], [0], [0], [1], [0, 0, 1, 1], [], []>} : vector<32x8xf32>, vector<8x128xf32>, vector<32x128xf32> -> vector<32x128xf32>
    %405 = arith.addf %401, %404 : vector<32x128xf32>
    %406 = vector.broadcast %398 : vector<32x1xf32> to vector<32x128xf32>
    %407 = arith.addf %405, %406 : vector<32x128xf32>
    %408 = vector.extract_strided_slice %407 {offsets = [0, 0], sizes = [16, 128], strides = [1, 1]} : vector<32x128xf32> to vector<16x128xf32>
    %409 = vector.extract_strided_slice %407 {offsets = [16, 0], sizes = [16, 128], strides = [1, 1]} : vector<32x128xf32> to vector<16x128xf32>
    %410 = arith.negf %409 : vector<16x128xf32>
    %411 = math.exp %410 : vector<16x128xf32>
    %cst_129 = arith.constant 1.000000e+00 : f32
    %412 = vector.broadcast %cst_129 : f32 to vector<16x128xf32>
    %413 = arith.addf %412, %411 : vector<16x128xf32>
    %414 = arith.divf %412, %413 : vector<16x128xf32>
    %415 = arith.mulf %408, %414 : vector<16x128xf32>
    %c48_130 = arith.constant 48 : index
    %c0_131 = arith.constant 0 : index
    %416 = vector.load %arg2[%c48_130, %c0_131] : memref<96x160xf32, #tpu.memory_space<vmem>>, vector<16x128xf32>
    %c64_132 = arith.constant 64 : index
    %c0_133 = arith.constant 0 : index
    %417 = vector.load %arg2[%c64_132, %c0_133] : memref<96x160xf32, #tpu.memory_space<vmem>>, vector<16x128xf32>
    %c16_134 = arith.constant 16 : index
    %c0_135 = arith.constant 0 : index
    %418 = vector.load %arg1[%c16_134, %c0_135] : memref<464x32xf32, #tpu.memory_space<vmem>>, vector<128x8xf32>
    %c0_136 = arith.constant 0 : index
    %c0_137 = arith.constant 0 : index
    %419 = vector.load %arg2[%c0_136, %c0_137] : memref<96x160xf32, #tpu.memory_space<vmem>>, vector<8x128xf32>
    %cst_138 = arith.constant dense<0.000000e+00> : vector<128xf32>
    %420 = vector.multi_reduction <add>, %415, %cst_138 [0] : vector<16x128xf32> to vector<128xf32>
    %421 = vector.shape_cast %420 : vector<128xf32> to vector<1x128xf32>
    %422 = arith.mulf %415, %415 : vector<16x128xf32>
    %cst_139 = arith.constant dense<0.000000e+00> : vector<128xf32>
    %423 = vector.multi_reduction <add>, %422, %cst_139 [0] : vector<16x128xf32> to vector<128xf32>
    %424 = vector.shape_cast %423 : vector<128xf32> to vector<1x128xf32>
    %425 = tpu.concatenate %421, %424 in 0 : vector<1x128xf32>, vector<1x128xf32> -> vector<2x128xf32>
    %cst_140 = arith.constant dense<0.000000e+00> : vector<2x8xf32>
    %426 = tpu.matmul %425, %418, %cst_140 {dimension_numbers = #tpu.dot_dimension_numbers<[1], [0], [0], [1], [0, 0, 1, 1], [], []>} : vector<2x128xf32>, vector<128x8xf32>, vector<2x8xf32> -> vector<2x8xf32>
    %cst_141 = arith.constant dense<0.000000e+00> : vector<2x128xf32>
    %427 = tpu.matmul %426, %419, %cst_141 {dimension_numbers = #tpu.dot_dimension_numbers<[1], [0], [0], [1], [0, 0, 1, 1], [], []>} : vector<2x8xf32>, vector<8x128xf32>, vector<2x128xf32> -> vector<2x128xf32>
    %cst_142 = arith.constant 3.906250e-03 : f32
    %428 = vector.broadcast %cst_142 : f32 to vector<2x128xf32>
    %429 = arith.mulf %427, %428 : vector<2x128xf32>
    %430 = vector.extract_strided_slice %429 {offsets = [0, 0], sizes = [1, 128], strides = [1, 1]} : vector<2x128xf32> to vector<1x128xf32>
    %431 = vector.extract_strided_slice %429 {offsets = [1, 0], sizes = [1, 128], strides = [1, 1]} : vector<2x128xf32> to vector<1x128xf32>
    %432 = arith.mulf %430, %430 : vector<1x128xf32>
    %433 = arith.subf %431, %432 : vector<1x128xf32>
    %434 = vector.broadcast %430 : vector<1x128xf32> to vector<16x128xf32>
    %435 = arith.subf %415, %434 : vector<16x128xf32>
    %cst_143 = arith.constant 9.99999974E-6 : f32
    %436 = vector.broadcast %cst_143 : f32 to vector<1x128xf32>
    %437 = arith.addf %433, %436 : vector<1x128xf32>
    %438 = math.rsqrt %437 : vector<1x128xf32>
    %439 = vector.broadcast %438 : vector<1x128xf32> to vector<16x128xf32>
    %440 = arith.mulf %435, %439 : vector<16x128xf32>
    %441 = arith.mulf %440, %416 : vector<16x128xf32>
    %442 = arith.addf %441, %417 : vector<16x128xf32>
    %c80_144 = arith.constant 80 : index
    %c0_145 = arith.constant 0 : index
    %443 = vector.load %arg2[%c80_144, %c0_145] : memref<96x160xf32, #tpu.memory_space<vmem>>, vector<16x128xf32>
    %c400_146 = arith.constant 400 : index
    %c0_147 = arith.constant 0 : index
    %444 = vector.load %arg1[%c400_146, %c0_147] : memref<464x32xf32, #tpu.memory_space<vmem>>, vector<16x1xf32>
    %c416_148 = arith.constant 416 : index
    %c0_149 = arith.constant 0 : index
    %445 = vector.load %arg1[%c416_148, %c0_149] : memref<464x32xf32, #tpu.memory_space<vmem>>, vector<16x16xf32>
    %c432_150 = arith.constant 432 : index
    %c0_151 = arith.constant 0 : index
    %446 = vector.load %arg1[%c432_150, %c0_151] : memref<464x32xf32, #tpu.memory_space<vmem>>, vector<16x16xf32>
    %c448_152 = arith.constant 448 : index
    %c0_153 = arith.constant 0 : index
    %447 = vector.load %arg1[%c448_152, %c0_153] : memref<464x32xf32, #tpu.memory_space<vmem>>, vector<1x16xf32>
    %c456_154 = arith.constant 456 : index
    %c0_155 = arith.constant 0 : index
    %448 = vector.load %arg1[%c456_154, %c0_155] : memref<464x32xf32, #tpu.memory_space<vmem>>, vector<1x1xf32>
    %449 = vector.extract_strided_slice %442 {offsets = [0, 0], sizes = [16, 16], strides = [1, 1]} : vector<16x128xf32> to vector<16x16xf32>
    %450 = vector.extract_strided_slice %442 {offsets = [0, 16], sizes = [16, 16], strides = [1, 1]} : vector<16x128xf32> to vector<16x16xf32>
    %451 = vector.extract_strided_slice %442 {offsets = [0, 32], sizes = [16, 16], strides = [1, 1]} : vector<16x128xf32> to vector<16x16xf32>
    %452 = vector.extract_strided_slice %442 {offsets = [0, 48], sizes = [16, 16], strides = [1, 1]} : vector<16x128xf32> to vector<16x16xf32>
    %453 = vector.extract_strided_slice %442 {offsets = [0, 64], sizes = [16, 16], strides = [1, 1]} : vector<16x128xf32> to vector<16x16xf32>
    %454 = vector.extract_strided_slice %442 {offsets = [0, 80], sizes = [16, 16], strides = [1, 1]} : vector<16x128xf32> to vector<16x16xf32>
    %455 = vector.extract_strided_slice %442 {offsets = [0, 96], sizes = [16, 16], strides = [1, 1]} : vector<16x128xf32> to vector<16x16xf32>
    %456 = vector.extract_strided_slice %442 {offsets = [0, 112], sizes = [16, 16], strides = [1, 1]} : vector<16x128xf32> to vector<16x16xf32>
    %457 = tpu.concatenate %449, %450, %451, %452, %453, %454, %455, %456 in 0 : vector<16x16xf32>, vector<16x16xf32>, vector<16x16xf32>, vector<16x16xf32>, vector<16x16xf32>, vector<16x16xf32>, vector<16x16xf32>, vector<16x16xf32> -> vector<128x16xf32>
    %cst_156 = arith.constant dense<0.000000e+00> : vector<16x16xf32>
    %458 = tpu.matmul %443, %457, %cst_156 {dimension_numbers = #tpu.dot_dimension_numbers<[1], [0], [0], [1], [0, 0, 1, 1], [], []>} : vector<16x128xf32>, vector<128x16xf32>, vector<16x16xf32> -> vector<16x16xf32>
    %459 = vector.broadcast %444 : vector<16x1xf32> to vector<16x16xf32>
    %460 = arith.addf %458, %459 : vector<16x16xf32>
    %461 = vector.shape_cast %460 : vector<16x16xf32> to vector<1x16x16xf32>
    %cst_157 = arith.constant dense<0.000000e+00> : vector<1xf32>
    %462 = vector.multi_reduction <add>, %461, %cst_157 [1, 2] : vector<1x16x16xf32> to vector<1xf32>
    %463 = vector.shape_cast %462 : vector<1xf32> to vector<1x1x1xf32>
    %464 = vector.extract %463[0, 0, 0] : f32 from vector<1x1x1xf32>
    %465 = vector.broadcast %464 : f32 to vector<1x1xf32>
    %cst_158 = arith.constant 2.560000e+02 : f32
    %466 = vector.broadcast %cst_158 : f32 to vector<1x1xf32>
    %467 = arith.divf %465, %466 : vector<1x1xf32>
    %468 = vector.broadcast %467 : vector<1x1xf32> to vector<16x16xf32>
    %469 = arith.subf %460, %468 : vector<16x16xf32>
    %470 = arith.mulf %469, %469 : vector<16x16xf32>
    %471 = vector.shape_cast %470 : vector<16x16xf32> to vector<1x16x16xf32>
    %cst_159 = arith.constant dense<0.000000e+00> : vector<1xf32>
    %472 = vector.multi_reduction <add>, %471, %cst_159 [1, 2] : vector<1x16x16xf32> to vector<1xf32>
    %473 = vector.shape_cast %472 : vector<1xf32> to vector<1x1x1xf32>
    %474 = vector.extract %473[0, 0, 0] : f32 from vector<1x1x1xf32>
    %475 = vector.broadcast %474 : f32 to vector<1x1xf32>
    %cst_160 = arith.constant 2.560000e+02 : f32
    %476 = vector.broadcast %cst_160 : f32 to vector<1x1xf32>
    %477 = arith.divf %475, %476 : vector<1x1xf32>
    %478 = vector.broadcast %467 : vector<1x1xf32> to vector<16x16xf32>
    %479 = arith.subf %460, %478 : vector<16x16xf32>
    %cst_161 = arith.constant 9.99999974E-6 : f32
    %480 = vector.broadcast %cst_161 : f32 to vector<1x1xf32>
    %481 = arith.addf %477, %480 : vector<1x1xf32>
    %482 = math.rsqrt %481 : vector<1x1xf32>
    %483 = vector.broadcast %482 : vector<1x1xf32> to vector<16x16xf32>
    %484 = arith.mulf %479, %483 : vector<16x16xf32>
    %485 = arith.mulf %484, %445 : vector<16x16xf32>
    %486 = arith.addf %485, %446 : vector<16x16xf32>
    %cst_162 = arith.constant dense<0.000000e+00> : vector<1x16xf32>
    %487 = tpu.matmul %447, %486, %cst_162 {dimension_numbers = #tpu.dot_dimension_numbers<[1], [0], [0], [1], [0, 0, 1, 1], [], []>} : vector<1x16xf32>, vector<16x16xf32>, vector<1x16xf32> -> vector<1x16xf32>
    %488 = vector.broadcast %448 : vector<1x1xf32> to vector<1x16xf32>
    %489 = arith.addf %487, %488 : vector<1x16xf32>
    %490 = tpu.concatenate %244, %489 in 0 : vector<1x16xf32>, vector<1x16xf32> -> vector<2x16xf32>
    %c0_163 = arith.constant 0 : index
    %c0_164 = arith.constant 0 : index
    %491 = vector.load %arg3[%c0_163, %c0_164] : memref<2x16xf32, #tpu.memory_space<vmem>>, vector<2x16xf32>
    tpu.vector_store %arg3[%c0_163, %c0_164], %490 {strides = array<i32>} : memref<2x16xf32, #tpu.memory_space<vmem>>, vector<2x16xf32>,
    return
  }
}

</mosaic_0001>

<llo_original>
// kernel: tpu_custom_call.1
$region0: #{tpu_custom_call.1}
  #allocation0 [shape = 'u32[]', space=smem, size = 0x4, offset = 0x4, fixed_abs, tag = 'smem constant byte address 0x4 - core index']
  #allocation1 [shape = 'u32[144,128]{1,0:T(1,128)}', space=vmem, size = 0x12000, scoped, tag = 'internal scratch']
  %s0 = inlined_call_operand.vmem [shape: f32[2,1,192], index: 0, kind: input, shape index: {}]
  %s1 = inlined_call_operand.vmem [shape: f32[464,32], index: 1, kind: input, shape index: {}]
  %s2 = inlined_call_operand.vmem [shape: f32[96,160], index: 2, kind: input, shape index: {}]
  %s3 = inlined_call_operand.hbm [shape: f32[2,16], index: 3, kind: output, shape index: {}]
  %s4 = sld [smem:[#allocation0]]
  $region22: #{tpu_custom_call.1} parent=0
    _
  %s6 = ssub.s32 1, %s4
  %s7 = scalar_select 0, %s6, %s4
  $region1: #{tpu_custom_call.1} parent=0
    #allocation2 [shape = 'u8[1024]{0}', space=vmem, size = 0x400, scoped, tag = 'output window, operand 0, single buffered']
    #allocation3 [shape = 's32[1]{0}', space=sflag, size = 0x4, scoped, tag = 'scoped memory for tpu_custom_call.1']
    %8 = vsyncpa [#allocation3], 0
    // Predicated region
    $region2: #{tpu_custom_call.1} parent=1 // pred_check
      _
    $region3: #{tpu_custom_call.1} parent=1 // pred_check_branch
      %10 = sbr.rel (0) target = $region5
    $region4: #{tpu_custom_call.1} parent=1 // pred_region
      _
    $region5: #{tpu_custom_call.1} parent=1 // pred_fallthru
      _
    // Predicated region
    $region6: #{tpu_custom_call.1} parent=1 // pred_check
      _
    $region7: #{tpu_custom_call.1} parent=1 // pred_check_branch
      %12 = sbr.rel (0) target = $region9
    $region8: #{tpu_custom_call.1} parent=1 // pred_region
      _
    $region9: #{tpu_custom_call.1} parent=1 // pred_fallthru
      _
    // Predicated region
    $region10: #{tpu_custom_call.1} parent=1 // pred_check
      _
    $region11: #{tpu_custom_call.1} parent=1 // pred_check_branch
      %14 = sbr.rel (0) target = $region13
    $region12: #{tpu_custom_call.1} parent=1 // pred_region
      _
    $region13: #{tpu_custom_call.1} parent=1 // pred_fallthru
      _
    %v15 = vld [vmem:[%s0] sm:$0x3]
    %v16 = vld [vmem:[%s1 + $0xb0] sm:$0xff]
    %v17 = vld [vmem:[%s1 + $0xb8] sm:$0xff]
    %v18 = vld [vmem:[%s1 + $0xc0] sm:$0xff]
    %v19 = vld [vmem:[%s1 + $0xc8] sm:$0xff]
    %21 = vset.pattern.permute.xlu0 0
    %22 = vperm.xlu0 %21, %v16
    %v23 = vpop.permute.xlu0 %22
    %26 = vset.pattern.permute.xlu0 0
    %27 = vperm.xlu0 %26, %v17
    %v28 = vpop.permute.xlu0 %27
    %v31 = vlaneseq
    %v32 = vshrl.u32 %v31, 7
    %v33 = vsub.s32 0, %v32
    %v34 = vrot.slane %v15, %v33
    %v35 = vlaneseq
    %v36 = vshrl.u32 %v35, 7
    %v37 = vsub.s32 1, %v36
    %v38 = vrot.slane %v15, %v37
    %v41 = vmul.f32 %v23, %v34
    %v42 = vmul.f32 %v23, %v38
    %v43 = vmul.f32 %v28, %v34
    %v44 = vmul.f32 %v28, %v38
    %45 = vset.pattern.permute.xlu0 1
    %46 = vperm.xlu0 %45, %v16
    %v47 = vpop.permute.xlu0 %46
    %49 = vset.pattern.permute.xlu0 1
    %50 = vperm.xlu0 %49, %v17
    %v51 = vpop.permute.xlu0 %50
    %v53 = vmul.f32 %v47, %v34
    %v54 = vmul.f32 %v47, %v38
    %v55 = vmul.f32 %v51, %v34
    %v56 = vmul.f32 %v51, %v38
    %61 = vrot.lane.b32.xlu0 %v53, 112
    %v62 = vpop.permute.xlu0 %61
    %63 = vrot.lane.b32.xlu0 %v54, 112
    %v64 = vpop.permute.xlu0 %63
    %65 = vrot.lane.b32.xlu0 %v55, 112
    %v66 = vpop.permute.xlu0 %65
    %67 = vrot.lane.b32.xlu0 %v56, 112
    %v68 = vpop.permute.xlu0 %67
    %vm69 = vcmask 916480
    %v70 = vsel %vm69, %v62, %v64
    %v71 = vsel %vm69, %v66, %v68
    %v76 = vadd.f32 %v41, %v70
    %v77 = vadd.f32 %v42, %v64
    %v78 = vadd.f32 %v43, %v71
    %v79 = vadd.f32 %v44, %v68
    %81 = vset.pattern.permute.xlu0 0
    %82 = vperm.xlu0 %81, %v18
    %v83 = vpop.permute.xlu0 %82
    %86 = vset.pattern.permute.xlu0 0
    %87 = vperm.xlu0 %86, %v19
    %v88 = vpop.permute.xlu0 %87
    %v90 = vadd.f32 %v76, %v83
    %v91 = vadd.f32 %v77, %v83
    %v92 = vadd.f32 %v78, %v88
    %v93 = vadd.f32 %v79, %v88
    %v94 = vxor.u32 %v92, 2147483648
    %v95 = vxor.u32 %v93, 2147483648
    %v96 = vmul.f32 %v94, 1.442695
    %v97 = vpow.pop %v96
    %v98 = vmul.f32 %v95, 1.442695
    %v99 = vpow.pop %v98
    %v100 = vadd.f32 %v97, 1.0
    %v101 = vadd.f32 %v99, 1.0
    %v102 = vrcp.pop %v100
    %v103 = vmul.f32 1.0, %v102
    %v104 = vrcp.pop %v101
    %v105 = vmul.f32 1.0, %v104
    %v106 = vmul.f32 %v90, %v103
    %v107 = vmul.f32 %v91, %v105
    %v108 = vld [vmem:[%s1 + $0xd0] sm:$0xff]
    %v109 = vld [vmem:[%s1 + $0xd8] sm:$0xff]
    %v110 = vld [vmem:[%s1] sm:$0xff]
    %v111 = vld [vmem:[%s1 + $0x8] sm:$0xff]
    %vm112 = vcmask 64512
    %v114 = vsel %vm112, %v108, 0
    %116 = vmatprep.subr.mxu0 %v107
    %117 = vmatpush1.msra.mxu0 %v106
    %118 = vmatprep.subr.mxu0 0.0
    %119 = vmatpush1.msra.mxu0 0.0
    %120 = vmatprep.subr.mxu0 0.0
    %121 = vmatpush1.msra.mxu0 0.0
    %122 = vmatprep.subr.mxu0 0.0
    %123 = vmatpush1.msra.mxu0 0.0
    %124 = vmatprep.subr.mxu0 0.0
    %125 = vmatpush1.msra.mxu0 0.0
    %126 = vmatprep.subr.mxu0 0.0
    %127 = vmatpush1.msra.mxu0 0.0
    %128 = vmatprep.subr.mxu0 0.0
    %129 = vmatpush1.msra.mxu0 0.0
    %130 = vmatprep.subr.mxu0 0.0
    %131 = vmatpush1.msra.mxu0 0.0
    %132 = vmatprep.subr.mxu0 0.0
    %133 = vmatpush1.msra.mxu0 0.0
    %134 = vmatprep.subr.mxu0 0.0
    %135 = vmatpush1.msra.mxu0 0.0
    %136 = vmatprep.subr.mxu0 0.0
    %137 = vmatpush1.msra.mxu0 0.0
    %138 = vmatprep.subr.mxu0 0.0
    %139 = vmatpush1.msra.mxu0 0.0
    %140 = vmatprep.subr.mxu0 0.0
    %141 = vmatpush1.msra.mxu0 0.0
    %142 = vmatprep.subr.mxu0 0.0
    %143 = vmatpush1.msra.mxu0 0.0
    %144 = vmatprep.subr.mxu0 0.0
    %145 = vmatpush1.msra.mxu0 0.0
    %146 = vmatprep.subr.mxu0 0.0
    %147 = vmatpush1.msra.mxu0 0.0
    %148 = vmatprep.subr.mxu0 0.0
    %149 = vmatpush1.msra.mxu0 0.0
    %150 = vmatprep.subr.mxu0 0.0
    %151 = vmatpush1.msra.mxu0 0.0
    %152 = vmatprep.subr.mxu0 0.0
    %153 = vmatpush1.msra.mxu0 0.0
    %154 = vmatprep.subr.mxu0 0.0
    %155 = vmatpush1.msra.mxu0 0.0
    %156 = vmatprep.subr.mxu0 0.0
    %157 = vmatpush1.msra.mxu0 0.0
    %158 = vmatprep.subr.mxu0 0.0
    %159 = vmatpush1.msra.mxu0 0.0
    %160 = vmatprep.subr.mxu0 0.0
    %161 = vmatpush1.msra.mxu0 0.0
    %162 = vmatprep.subr.mxu0 0.0
    %163 = vmatpush1.msra.mxu0 0.0
    %164 = vmatprep.subr.mxu0 0.0
    %165 = vmatpush1.msra.mxu0 0.0
    %166 = vmatprep.subr.mxu0 0.0
    %167 = vmatpush1.msra.mxu0 0.0
    %168 = vmatprep.subr.mxu0 0.0
    %169 = vmatpush1.msra.mxu0 0.0
    %170 = vmatprep.subr.mxu0 0.0
    %171 = vmatpush1.msra.mxu0 0.0
    %172 = vmatprep.subr.mxu0 0.0
    %173 = vmatpush1.msra.mxu0 0.0
    %174 = vmatprep.subr.mxu0 0.0
    %175 = vmatpush1.msra.mxu0 0.0
    %176 = vmatprep.subr.mxu0 0.0
    %177 = vmatpush1.msra.mxu0 0.0
    %178 = vmatprep.subr.mxu0 0.0
    %179 = vmatpush1.msra.mxu0 0.0
    %180 = vmatprep.mubr.f32.mxu0 0.0
    %181 = vmatmul.mubr.f32.gmra.mrb[0].mxu0 %v114
    %v182 = vpop.f32.mrb[0].mxu0
    %v183 = vadd.f32 0.0, %v182
    %v184 = vpop.f32.mrb[0].mxu0
    %v185 = vadd.f32 0.0, %v184
    %186 = vdwg.mxu0
    %188 = vrot.lane.b32.xlu0 %v183, 112
    %v189 = vpop.permute.xlu0 %188
    %190 = vrot.lane.b32.xlu0 %v183, 96
    %v191 = vpop.permute.xlu0 %190
    %192 = vrot.lane.b32.xlu0 %v183, 80
    %v193 = vpop.permute.xlu0 %192
    %194 = vrot.lane.b32.xlu0 %v183, 64
    %v195 = vpop.permute.xlu0 %194
    %196 = vrot.lane.b32.xlu0 %v183, 48
    %v197 = vpop.permute.xlu0 %196
    %198 = vrot.lane.b32.xlu0 %v183, 32
    %v199 = vpop.permute.xlu0 %198
    %200 = vrot.lane.b32.xlu0 %v183, 16
    %v201 = vpop.permute.xlu0 %200
    %203 = vrot.lane.b32.xlu0 %v185, 112
    %v204 = vpop.permute.xlu0 %203
    %205 = vrot.lane.b32.xlu0 %v185, 96
    %v206 = vpop.permute.xlu0 %205
    %vm207 = vcmask 130048
    %v208 = vsel %vm207, %v183, 0
    %v210 = vsel %vm207, %v189, 0
    %v212 = vsel %vm207, %v191, 0
    %v214 = vsel %vm207, %v193, 0
    %v216 = vsel %vm207, %v195, 0
    %v218 = vsel %vm207, %v197, 0
    %v220 = vsel %vm207, %v199, 0
    %v222 = vsel %vm207, %v201, 0
    %v224 = vsel %vm207, %v185, 0
    %v226 = vsel %vm207, %v204, 0
    %v228 = vsel %vm207, %v206, 0
    %230 = vmatprep.subr.mxu0 0.0
    %231 = vmatpush1.msra.mxu0 %v110
    %232 = vmatprep.subr.mxu0 0.0
    %233 = vmatpush1.msra.mxu0 %v111
    %234 = vmatprep.subr.mxu0 0.0
    %235 = vmatpush1.msra.mxu0 0.0
    %236 = vmatprep.subr.mxu0 0.0
    %237 = vmatpush1.msra.mxu0 0.0
    %238 = vmatprep.subr.mxu0 0.0
    %239 = vmatpush1.msra.mxu0 0.0
    %240 = vmatprep.subr.mxu0 0.0
    %241 = vmatpush1.msra.mxu0 0.0
    %242 = vmatprep.subr.mxu0 0.0
    %243 = vmatpush1.msra.mxu0 0.0
    %244 = vmatprep.subr.mxu0 0.0
    %245 = vmatpush1.msra.mxu0 0.0
    %246 = vmatprep.subr.mxu0 0.0
    %247 = vmatpush1.msra.mxu0 0.0
    %248 = vmatprep.subr.mxu0 0.0
    %249 = vmatpush1.msra.mxu0 0.0
    %250 = vmatprep.subr.mxu0 0.0
    %251 = vmatpush1.msra.mxu0 0.0
    %252 = vmatprep.subr.mxu0 0.0
    %253 = vmatpush1.msra.mxu0 0.0
    %254 = vmatprep.subr.mxu0 0.0
    %255 = vmatpush1.msra.mxu0 0.0
    %256 = vmatprep.subr.mxu0 0.0
    %257 = vmatpush1.msra.mxu0 0.0
    %258 = vmatprep.subr.mxu0 0.0
    %259 = vmatpush1.msra.mxu0 0.0
    %260 = vmatprep.subr.mxu0 0.0
    %261 = vmatpush1.msra.mxu0 0.0
    %262 = vmatprep.subr.mxu0 0.0
    %263 = vmatpush1.msra.mxu0 0.0
    %264 = vmatprep.subr.mxu0 0.0
    %265 = vmatpush1.msra.mxu0 0.0
    %266 = vmatprep.subr.mxu0 0.0
    %267 = vmatpush1.msra.mxu0 0.0
    %268 = vmatprep.subr.mxu0 0.0
    %269 = vmatpush1.msra.mxu0 0.0
    %270 = vmatprep.subr.mxu0 0.0
    %271 = vmatpush1.msra.mxu0 0.0
    %272 = vmatprep.subr.mxu0 0.0
    %273 = vmatpush1.msra.mxu0 0.0
    %274 = vmatprep.subr.mxu0 0.0
    %275 = vmatpush1.msra.mxu0 0.0
    %276 = vmatprep.subr.mxu0 0.0
    %277 = vmatpush1.msra.mxu0 0.0
    %278 = vmatprep.subr.mxu0 0.0
    %279 = vmatpush1.msra.mxu0 0.0
    %280 = vmatprep.subr.mxu0 0.0
    %281 = vmatpush1.msra.mxu0 0.0
    %282 = vmatprep.subr.mxu0 0.0
    %283 = vmatpush1.msra.mxu0 0.0
    %284 = vmatprep.subr.mxu0 0.0
    %285 = vmatpush1.msra.mxu0 0.0
    %286 = vmatprep.subr.mxu0 0.0
    %287 = vmatpush1.msra.mxu0 0.0
    %288 = vmatprep.subr.mxu0 0.0
    %289 = vmatpush1.msra.mxu0 0.0
    %290 = vmatprep.subr.mxu0 0.0
    %291 = vmatpush1.msra.mxu0 0.0
    %292 = vmatprep.subr.mxu0 0.0
    %293 = vmatpush1.msra.mxu0 0.0
    %294 = vmatprep.mubr.f32.mxu0 0.0
    %295 = vmatmul.mubr.f32.gmra.mrb[0].mxu0 %v208
    %v296 = vpop.f32.mrb[0].mxu0
    %v297 = vadd.f32 0.0, %v296
    %v298 = vpop.f32.mrb[0].mxu0
    %299 = vmatprep.mubr.f32.mxu0 0.0
    %300 = vmatmul.mubr.f32.gmra.mrb[0].mxu0 %v210
    %v301 = vpop.f32.mrb[0].mxu0
    %v302 = vadd.f32 0.0, %v301
    %v303 = vpop.f32.mrb[0].mxu0
    %304 = vmatprep.mubr.f32.mxu0 0.0
    %305 = vmatmul.mubr.f32.gmra.mrb[0].mxu0 %v212
    %v306 = vpop.f32.mrb[0].mxu0
    %v307 = vadd.f32 0.0, %v306
    %v308 = vpop.f32.mrb[0].mxu0
    %309 = vmatprep.mubr.f32.mxu0 0.0
    %310 = vmatmul.mubr.f32.gmra.mrb[0].mxu0 %v214
    %v311 = vpop.f32.mrb[0].mxu0
    %v312 = vadd.f32 0.0, %v311
    %v313 = vpop.f32.mrb[0].mxu0
    %314 = vmatprep.mubr.f32.mxu0 0.0
    %315 = vmatmul.mubr.f32.gmra.mrb[0].mxu0 %v216
    %v316 = vpop.f32.mrb[0].mxu0
    %v317 = vadd.f32 0.0, %v316
    %v318 = vpop.f32.mrb[0].mxu0
    %319 = vmatprep.mubr.f32.mxu0 0.0
    %320 = vmatmul.mubr.f32.gmra.mrb[0].mxu0 %v218
    %v321 = vpop.f32.mrb[0].mxu0
    %v322 = vadd.f32 0.0, %v321
    %v323 = vpop.f32.mrb[0].mxu0
    %324 = vmatprep.mubr.f32.mxu0 0.0
    %325 = vmatmul.mubr.f32.gmra.mrb[0].mxu0 %v220
    %v326 = vpop.f32.mrb[0].mxu0
    %v327 = vadd.f32 0.0, %v326
    %v328 = vpop.f32.mrb[0].mxu0
    %329 = vmatprep.mubr.f32.mxu0 0.0
    %330 = vmatmul.mubr.f32.gmra.mrb[0].mxu0 %v222
    %v331 = vpop.f32.mrb[0].mxu0
    %v332 = vadd.f32 0.0, %v331
    %v333 = vpop.f32.mrb[0].mxu0
    %334 = vmatprep.mubr.f32.mxu0 0.0
    %335 = vmatmul.mubr.f32.gmra.mrb[0].mxu0 %v224
    %v336 = vpop.f32.mrb[0].mxu0
    %v337 = vadd.f32 0.0, %v336
    %v338 = vpop.f32.mrb[0].mxu0
    %339 = vmatprep.mubr.f32.mxu0 0.0
    %340 = vmatmul.mubr.f32.gmra.mrb[0].mxu0 %v226
    %v341 = vpop.f32.mrb[0].mxu0
    %v342 = vadd.f32 0.0, %v341
    %v343 = vpop.f32.mrb[0].mxu0
    %344 = vmatprep.mubr.f32.mxu0 0.0
    %345 = vmatmul.mubr.f32.gmra.mrb[0].mxu0 %v228
    %v346 = vpop.f32.mrb[0].mxu0
    %v347 = vadd.f32 0.0, %v346
    %v348 = vpop.f32.mrb[0].mxu0
    %349 = vdwg.mxu0
    %351 = vrot.lane.b32.xlu0 %v302, 16
    %v352 = vpop.permute.xlu0 %351
    %355 = vrot.lane.b32.xlu0 %v307, 32
    %v356 = vpop.permute.xlu0 %355
    %359 = vrot.lane.b32.xlu0 %v312, 48
    %v360 = vpop.permute.xlu0 %359
    %363 = vrot.lane.b32.xlu0 %v317, 64
    %v364 = vpop.permute.xlu0 %363
    %367 = vrot.lane.b32.xlu0 %v322, 80
    %v368 = vpop.permute.xlu0 %367
    %371 = vrot.lane.b32.xlu0 %v327, 96
    %v372 = vpop.permute.xlu0 %371
    %375 = vrot.lane.b32.xlu0 %v332, 112
    %v376 = vpop.permute.xlu0 %375
    %379 = vrot.lane.b32.xlu0 %v342, 16
    %v380 = vpop.permute.xlu0 %379
    %383 = vrot.lane.b32.xlu0 %v347, 32
    %v384 = vpop.permute.xlu0 %383
    %v386 = vsel %vm207, %v297, %v352
    %vm387 = vcmask 261120
    %v388 = vsel %vm387, %v386, %v356
    %vm389 = vcmask 392192
    %v390 = vsel %vm389, %v388, %v360
    %vm391 = vcmask 523264
    %v392 = vsel %vm391, %v390, %v364
    %vm393 = vcmask 654336
    %v394 = vsel %vm393, %v392, %v368
    %vm395 = vcmask 785408
    %v396 = vsel %vm395, %v394, %v372
    %v397 = vsel %vm69, %v396, %v376
    %v398 = vsel %vm207, %v337, %v380
    %v399 = vsel %vm387, %v398, %v384
    %401 = vset.pattern.permute.xlu0 0
    %402 = vperm.xlu0 %401, %v109
    %v403 = vpop.permute.xlu0 %402
    %v405 = vadd.f32 %v397, %v403
    %v406 = vadd.f32 %v399, %v403
    %v407 = vmax.f32 %v405, 0.0
    %v408 = vmax.f32 %v406, 0.0
    %v409 = vld [vmem:[%s1 + $0xe0] sm:$0xff]
    %v410 = vld [vmem:[%s1 + $0xe8] sm:$0xff]
    %v411 = vld [vmem:[%s1 + $0xf0] sm:$0xff]
    %v412 = vld [vmem:[%s1 + $0xf8] sm:$0xff]
    %v413 = vld [vmem:[%s1 + $0x100] sm:$0xff]
    %v414 = vld [vmem:[%s1 + $0x108] sm:$0xff]
    %v415 = vld [vmem:[%s1 + $0x110] sm:$0xff]
    %v416 = vld [vmem:[%s1 + $0x118] sm:$0xff]
    %421 = vrot.lane.b32.xlu0 %v409, 120
    %v422 = vpop.permute.xlu0 %421
    %423 = vrot.lane.b32.xlu0 %v410, 120
    %v424 = vpop.permute.xlu0 %423
    %425 = vrot.lane.b32.xlu0 %v411, 120
    %v426 = vpop.permute.xlu0 %425
    %427 = vrot.lane.b32.xlu0 %v412, 120
    %v428 = vpop.permute.xlu0 %427
    %431 = vrot.lane.b32.xlu0 %v407, 112
    %v432 = vpop.permute.xlu0 %431
    %433 = vrot.lane.b32.xlu0 %v408, 112
    %v434 = vpop.permute.xlu0 %433
    %v435 = vsel %vm69, %v432, %v434
    %v438 = vsel %vm112, %v422, 0
    %v440 = vsel %vm112, %v424, 0
    %v442 = vsel %vm112, %v426, 0
    %v444 = vsel %vm112, %v428, 0
    %446 = vmatprep.subr.mxu0 %v434
    %447 = vmatpush1.msra.mxu0 %v435
    %448 = vmatprep.subr.mxu0 0.0
    %449 = vmatpush1.msra.mxu0 0.0
    %450 = vmatprep.subr.mxu0 0.0
    %451 = vmatpush1.msra.mxu0 0.0
    %452 = vmatprep.subr.mxu0 0.0
    %453 = vmatpush1.msra.mxu0 0.0
    %454 = vmatprep.subr.mxu0 0.0
    %455 = vmatpush1.msra.mxu0 0.0
    %456 = vmatprep.subr.mxu0 0.0
    %457 = vmatpush1.msra.mxu0 0.0
    %458 = vmatprep.subr.mxu0 0.0
    %459 = vmatpush1.msra.mxu0 0.0
    %460 = vmatprep.subr.mxu0 0.0
    %461 = vmatpush1.msra.mxu0 0.0
    %462 = vmatprep.subr.mxu0 0.0
    %463 = vmatpush1.msra.mxu0 0.0
    %464 = vmatprep.subr.mxu0 0.0
    %465 = vmatpush1.msra.mxu0 0.0
    %466 = vmatprep.subr.mxu0 0.0
    %467 = vmatpush1.msra.mxu0 0.0
    %468 = vmatprep.subr.mxu0 0.0
    %469 = vmatpush1.msra.mxu0 0.0
    %470 = vmatprep.subr.mxu0 0.0
    %471 = vmatpush1.msra.mxu0 0.0
    %472 = vmatprep.subr.mxu0 0.0
    %473 = vmatpush1.msra.mxu0 0.0
    %474 = vmatprep.subr.mxu0 0.0
    %475 = vmatpush1.msra.mxu0 0.0
    %476 = vmatprep.subr.mxu0 0.0
    %477 = vmatpush1.msra.mxu0 0.0
    %478 = vmatprep.subr.mxu0 0.0
    %479 = vmatpush1.msra.mxu0 0.0
    %480 = vmatprep.subr.mxu0 0.0
    %481 = vmatpush1.msra.mxu0 0.0
    %482 = vmatprep.subr.mxu0 0.0
    %483 = vmatpush1.msra.mxu0 0.0
    %484 = vmatprep.subr.mxu0 0.0
    %485 = vmatpush1.msra.mxu0 0.0
    %486 = vmatprep.subr.mxu0 0.0
    %487 = vmatpush1.msra.mxu0 0.0
    %488 = vmatprep.subr.mxu0 0.0
    %489 = vmatpush1.msra.mxu0 0.0
    %490 = vmatprep.subr.mxu0 0.0
    %491 = vmatpush1.msra.mxu0 0.0
    %492 = vmatprep.subr.mxu0 0.0
    %493 = vmatpush1.msra.mxu0 0.0
    %494 = vmatprep.subr.mxu0 0.0
    %495 = vmatpush1.msra.mxu0 0.0
    %496 = vmatprep.subr.mxu0 0.0
    %497 = vmatpush1.msra.mxu0 0.0
    %498 = vmatprep.subr.mxu0 0.0
    %499 = vmatpush1.msra.mxu0 0.0
    %500 = vmatprep.subr.mxu0 0.0
    %501 = vmatpush1.msra.mxu0 0.0
    %502 = vmatprep.subr.mxu0 0.0
    %503 = vmatpush1.msra.mxu0 0.0
    %504 = vmatprep.subr.mxu0 0.0
    %505 = vmatpush1.msra.mxu0 0.0
    %506 = vmatprep.subr.mxu0 0.0
    %507 = vmatpush1.msra.mxu0 0.0
    %508 = vmatprep.subr.mxu0 0.0
    %509 = vmatpush1.msra.mxu0 0.0
    %510 = vmatprep.mubr.f32.mxu0 0.0
    %511 = vmatmul.mubr.f32.gmra.mrb[0].mxu0 %v438
    %v512 = vpop.f32.mrb[0].mxu0
    %v513 = vadd.f32 0.0, %v512
    %v514 = vpop.f32.mrb[0].mxu0
    %v515 = vadd.f32 0.0, %v514
    %516 = vmatprep.mubr.f32.mxu0 0.0
    %517 = vmatmul.mubr.f32.gmra.mrb[0].mxu0 %v440
    %v518 = vpop.f32.mrb[0].mxu0
    %v519 = vadd.f32 0.0, %v518
    %v520 = vpop.f32.mrb[0].mxu0
    %v521 = vadd.f32 0.0, %v520
    %522 = vmatprep.mubr.f32.mxu0 0.0
    %523 = vmatmul.mubr.f32.gmra.mrb[0].mxu0 %v442
    %v524 = vpop.f32.mrb[0].mxu0
    %v525 = vadd.f32 0.0, %v524
    %v526 = vpop.f32.mrb[0].mxu0
    %v527 = vadd.f32 0.0, %v526
    %528 = vmatprep.mubr.f32.mxu0 0.0
    %529 = vmatmul.mubr.f32.gmra.mrb[0].mxu0 %v444
    %v530 = vpop.f32.mrb[0].mxu0
    %v531 = vadd.f32 0.0, %v530
    %v532 = vpop.f32.mrb[0].mxu0
    %v533 = vadd.f32 0.0, %v532
    %534 = vdwg.mxu0
    %v535 = vsel %vm112, %v409, 0
    %v537 = vsel %vm112, %v410, 0
    %v539 = vsel %vm112, %v411, 0
    %v541 = vsel %vm112, %v412, 0
    %543 = vmatprep.subr.mxu0 %v408
    %544 = vmatpush1.msra.mxu0 %v407
    %545 = vmatprep.subr.mxu0 0.0
    %546 = vmatpush1.msra.mxu0 0.0
    %547 = vmatprep.subr.mxu0 0.0
    %548 = vmatpush1.msra.mxu0 0.0
    %549 = vmatprep.subr.mxu0 0.0
    %550 = vmatpush1.msra.mxu0 0.0
    %551 = vmatprep.subr.mxu0 0.0
    %552 = vmatpush1.msra.mxu0 0.0
    %553 = vmatprep.subr.mxu0 0.0
    %554 = vmatpush1.msra.mxu0 0.0
    %555 = vmatprep.subr.mxu0 0.0
    %556 = vmatpush1.msra.mxu0 0.0
    %557 = vmatprep.subr.mxu0 0.0
    %558 = vmatpush1.msra.mxu0 0.0
    %559 = vmatprep.subr.mxu0 0.0
    %560 = vmatpush1.msra.mxu0 0.0
    %561 = vmatprep.subr.mxu0 0.0
    %562 = vmatpush1.msra.mxu0 0.0
    %563 = vmatprep.subr.mxu0 0.0
    %564 = vmatpush1.msra.mxu0 0.0
    %565 = vmatprep.subr.mxu0 0.0
    %566 = vmatpush1.msra.mxu0 0.0
    %567 = vmatprep.subr.mxu0 0.0
    %568 = vmatpush1.msra.mxu0 0.0
    %569 = vmatprep.subr.mxu0 0.0
    %570 = vmatpush1.msra.mxu0 0.0
    %571 = vmatprep.subr.mxu0 0.0
    %572 = vmatpush1.msra.mxu0 0.0
    %573 = vmatprep.subr.mxu0 0.0
    %574 = vmatpush1.msra.mxu0 0.0
    %575 = vmatprep.subr.mxu0 0.0
    %576 = vmatpush1.msra.mxu0 0.0
    %577 = vmatprep.subr.mxu0 0.0
    %578 = vmatpush1.msra.mxu0 0.0
    %579 = vmatprep.subr.mxu0 0.0
    %580 = vmatpush1.msra.mxu0 0.0
    %581 = vmatprep.subr.mxu0 0.0
    %582 = vmatpush1.msra.mxu0 0.0
    %583 = vmatprep.subr.mxu0 0.0
    %584 = vmatpush1.msra.mxu0 0.0
    %585 = vmatprep.subr.mxu0 0.0
    %586 = vmatpush1.msra.mxu0 0.0
    %587 = vmatprep.subr.mxu0 0.0
    %588 = vmatpush1.msra.mxu0 0.0
    %589 = vmatprep.subr.mxu0 0.0
    %590 = vmatpush1.msra.mxu0 0.0
    %591 = vmatprep.subr.mxu0 0.0
    %592 = vmatpush1.msra.mxu0 0.0
    %593 = vmatprep.subr.mxu0 0.0
    %594 = vmatpush1.msra.mxu0 0.0
    %595 = vmatprep.subr.mxu0 0.0
    %596 = vmatpush1.msra.mxu0 0.0
    %597 = vmatprep.subr.mxu0 0.0
    %598 = vmatpush1.msra.mxu0 0.0
    %599 = vmatprep.subr.mxu0 0.0
    %600 = vmatpush1.msra.mxu0 0.0
    %601 = vmatprep.subr.mxu0 0.0
    %602 = vmatpush1.msra.mxu0 0.0
    %603 = vmatprep.subr.mxu0 0.0
    %604 = vmatpush1.msra.mxu0 0.0
    %605 = vmatprep.subr.mxu0 0.0
    %606 = vmatpush1.msra.mxu0 0.0
    %607 = vmatprep.mubr.f32.mxu0 0.0
    %608 = vmatmul.mubr.f32.gmra.mrb[0].mxu0 %v535
    %v609 = vpop.f32.mrb[0].mxu0
    %v610 = vadd.f32 %v513, %v609
    %v611 = vpop.f32.mrb[0].mxu0
    %v612 = vadd.f32 %v515, %v611
    %613 = vmatprep.mubr.f32.mxu0 0.0
    %614 = vmatmul.mubr.f32.gmra.mrb[0].mxu0 %v537
    %v615 = vpop.f32.mrb[0].mxu0
    %v616 = vadd.f32 %v519, %v615
    %v617 = vpop.f32.mrb[0].mxu0
    %v618 = vadd.f32 %v521, %v617
    %619 = vmatprep.mubr.f32.mxu0 0.0
    %620 = vmatmul.mubr.f32.gmra.mrb[0].mxu0 %v539
    %v621 = vpop.f32.mrb[0].mxu0
    %v622 = vadd.f32 %v525, %v621
    %v623 = vpop.f32.mrb[0].mxu0
    %v624 = vadd.f32 %v527, %v623
    %625 = vmatprep.mubr.f32.mxu0 0.0
    %626 = vmatmul.mubr.f32.gmra.mrb[0].mxu0 %v541
    %v627 = vpop.f32.mrb[0].mxu0
    %v628 = vadd.f32 %v531, %v627
    %v629 = vpop.f32.mrb[0].mxu0
    %v630 = vadd.f32 %v533, %v629
    %631 = vdwg.mxu0
    %633 = vset.pattern.permute.xlu0 0
    %634 = vperm.xlu0 %633, %v413
    %v635 = vpop.permute.xlu0 %634
    %638 = vset.pattern.permute.xlu0 0
    %639 = vperm.xlu0 %638, %v414
    %v640 = vpop.permute.xlu0 %639
    %643 = vset.pattern.permute.xlu0 0
    %644 = vperm.xlu0 %643, %v415
    %v645 = vpop.permute.xlu0 %644
    %648 = vset.pattern.permute.xlu0 0
    %649 = vperm.xlu0 %648, %v416
    %v650 = vpop.permute.xlu0 %649
    %v652 = vadd.f32 %v610, %v635
    %v653 = vadd.f32 %v612, %v635
    %v654 = vadd.f32 %v616, %v640
    %v655 = vadd.f32 %v618, %v640
    %v656 = vadd.f32 %v622, %v645
    %v657 = vadd.f32 %v624, %v645
    %v658 = vadd.f32 %v628, %v650
    %v659 = vadd.f32 %v630, %v650
    %v660 = vxor.u32 %v656, 2147483648
    %v661 = vxor.u32 %v657, 2147483648
    %v662 = vxor.u32 %v658, 2147483648
    %v663 = vxor.u32 %v659, 2147483648
    %v664 = vmul.f32 %v660, 1.442695
    %v665 = vpow.pop %v664
    %v666 = vmul.f32 %v661, 1.442695
    %v667 = vpow.pop %v666
    %v668 = vmul.f32 %v662, 1.442695
    %v669 = vpow.pop %v668
    %v670 = vmul.f32 %v663, 1.442695
    %v671 = vpow.pop %v670
    %v672 = vadd.f32 %v665, 1.0
    %v673 = vadd.f32 %v667, 1.0
    %v674 = vadd.f32 %v669, 1.0
    %v675 = vadd.f32 %v671, 1.0
    %v676 = vrcp.pop %v672
    %v677 = vmul.f32 1.0, %v676
    %v678 = vrcp.pop %v673
    %v679 = vmul.f32 1.0, %v678
    %v680 = vrcp.pop %v674
    %v681 = vmul.f32 1.0, %v680
    %v682 = vrcp.pop %v675
    %v683 = vmul.f32 1.0, %v682
    %v684 = vmul.f32 %v652, %v677
    %v685 = vmul.f32 %v653, %v679
    %v686 = vmul.f32 %v654, %v681
    %v687 = vmul.f32 %v655, %v683
    %v688 = vld [vmem:[%s2 + $0x20] sm:$0xff]
    %v689 = vld [vmem:[%s2 + $0x28] sm:$0xff]
    %v690 = vld [vmem:[%s2 + $0x30] sm:$0xff]
    %v691 = vld [vmem:[%s2 + $0x38] sm:$0xff]
    %v692 = vld [vmem:[%s2 + $0x40] sm:$0xff]
    %v693 = vld [vmem:[%s2 + $0x48] sm:$0xff]
    %v694 = vld [vmem:[%s2 + $0x50] sm:$0xff]
    %v695 = vld [vmem:[%s2 + $0x58] sm:$0xff]
    %v696 = vld [vmem:[%s1 + $0x10] sm:$0xff]
    %v697 = vld [vmem:[%s1 + $0x18] sm:$0xff]
    %v698 = vld [vmem:[%s1 + $0x20] sm:$0xff]
    %v699 = vld [vmem:[%s1 + $0x28] sm:$0xff]
    %v700 = vld [vmem:[%s1 + $0x30] sm:$0xff]
    %v701 = vld [vmem:[%s1 + $0x38] sm:$0xff]
    %v702 = vld [vmem:[%s1 + $0x40] sm:$0xff]
    %v703 = vld [vmem:[%s1 + $0x48] sm:$0xff]
    %v704 = vld [vmem:[%s1 + $0x50] sm:$0xff]
    %v705 = vld [vmem:[%s1 + $0x58] sm:$0xff]
    %v706 = vld [vmem:[%s1 + $0x60] sm:$0xff]
    %v707 = vld [vmem:[%s1 + $0x68] sm:$0xff]
    %v708 = vld [vmem:[%s1 + $0x70] sm:$0xff]
    %v709 = vld [vmem:[%s1 + $0x78] sm:$0xff]
    %v710 = vld [vmem:[%s1 + $0x80] sm:$0xff]
    %v711 = vld [vmem:[%s1 + $0x88] sm:$0xff]
    %v712 = vld [vmem:[%s1 + $0x90] sm:$0xff]
    %v713 = vld [vmem:[%s1 + $0x98] sm:$0xff]
    %v714 = vld [vmem:[%s1 + $0xa0] sm:$0xff]
    %v715 = vld [vmem:[%s1 + $0xa8] sm:$0xff]
    %v716 = vld [vmem:[%s2] sm:$0xff]
    %v717 = vld [vmem:[%s2 + $0x8] sm:$0xff]
    %v718 = vld [vmem:[%s2 + $0x10] sm:$0x3]
    %v719 = vld [vmem:[%s2 + $0x18] sm:$0x3]
    %v720 = vadd.f32 %v684, %v686
    %v721 = vrot.slane %v720, 4
    %v722 = vadd.f32 %v720, %v721
    %v723 = vrot.slane %v722, 2
    %v724 = vadd.f32 %v722, %v723
    %v725 = vrot.slane %v724, 1
    %v726 = vadd.f32 %v724, %v725
    %v727 = vsel %vm387, %v685, 0.0
    %v728 = vsel %vm387, %v687, 0.0
    %v729 = vadd.f32 %v727, %v728
    %v730 = vrot.slane %v729, 4
    %v731 = vadd.f32 %v729, %v730
    %v732 = vrot.slane %v731, 2
    %v733 = vadd.f32 %v731, %v732
    %v734 = vrot.slane %v733, 1
    %v735 = vadd.f32 %v733, %v734
    %v736 = vmul.f32 %v684, %v684
    %v737 = vmul.f32 %v685, %v685
    %v738 = vmul.f32 %v686, %v686
    %v739 = vmul.f32 %v687, %v687
    %v740 = vadd.f32 %v736, %v738
    %v741 = vrot.slane %v740, 4
    %v742 = vadd.f32 %v740, %v741
    %v743 = vrot.slane %v742, 2
    %v744 = vadd.f32 %v742, %v743
    %v745 = vrot.slane %v744, 1
    %v746 = vadd.f32 %v744, %v745
    %v747 = vsel %vm387, %v737, 0.0
    %v748 = vsel %vm387, %v739, 0.0
    %v749 = vadd.f32 %v747, %v748
    %v750 = vrot.slane %v749, 4
    %v751 = vadd.f32 %v749, %v750
    %v752 = vrot.slane %v751, 2
    %v753 = vadd.f32 %v751, %v752
    %v754 = vrot.slane %v753, 1
    %v755 = vadd.f32 %v753, %v754
    %vm756 = vcmask 1040384
    %v757 = vsel %vm756, %v726, %v746
    %v758 = vsel %vm756, %v735, %v755
    %v760 = vsel %vm387, %v758, 0
    %762 = vmatprep.subr.mxu0 0.0
    %763 = vmatpush1.msra.mxu0 %v696
    %764 = vmatprep.subr.mxu0 0.0
    %765 = vmatpush1.msra.mxu0 %v697
    %766 = vmatprep.subr.mxu0 0.0
    %767 = vmatpush1.msra.mxu0 %v698
    %768 = vmatprep.subr.mxu0 0.0
    %769 = vmatpush1.msra.mxu0 %v699
    %770 = vmatprep.subr.mxu0 0.0
    %771 = vmatpush1.msra.mxu0 %v700
    %772 = vmatprep.subr.mxu0 0.0
    %773 = vmatpush1.msra.mxu0 %v701
    %774 = vmatprep.subr.mxu0 0.0
    %775 = vmatpush1.msra.mxu0 %v702
    %776 = vmatprep.subr.mxu0 0.0
    %777 = vmatpush1.msra.mxu0 %v703
    %778 = vmatprep.subr.mxu0 0.0
    %779 = vmatpush1.msra.mxu0 %v704
    %780 = vmatprep.subr.mxu0 0.0
    %781 = vmatpush1.msra.mxu0 %v705
    %782 = vmatprep.subr.mxu0 0.0
    %783 = vmatpush1.msra.mxu0 %v706
    %784 = vmatprep.subr.mxu0 0.0
    %785 = vmatpush1.msra.mxu0 %v707
    %786 = vmatprep.subr.mxu0 0.0
    %787 = vmatpush1.msra.mxu0 %v708
    %788 = vmatprep.subr.mxu0 0.0
    %789 = vmatpush1.msra.mxu0 %v709
    %790 = vmatprep.subr.mxu0 0.0
    %791 = vmatpush1.msra.mxu0 %v710
    %792 = vmatprep.subr.mxu0 0.0
    %793 = vmatpush1.msra.mxu0 %v711
    %794 = vmatprep.subr.mxu0 0.0
    %795 = vmatpush1.msra.mxu0 %v712
    %796 = vmatprep.subr.mxu0 0.0
    %797 = vmatpush1.msra.mxu0 %v713
    %798 = vmatprep.subr.mxu0 0.0
    %799 = vmatpush1.msra.mxu0 %v714
    %800 = vmatprep.subr.mxu0 0.0
    %801 = vmatpush1.msra.mxu0 %v715
    %802 = vmatprep.subr.mxu0 0.0
    %803 = vmatpush1.msra.mxu0 0.0
    %804 = vmatprep.subr.mxu0 0.0
    %805 = vmatpush1.msra.mxu0 0.0
    %806 = vmatprep.subr.mxu0 0.0
    %807 = vmatpush1.msra.mxu0 0.0
    %808 = vmatprep.subr.mxu0 0.0
    %809 = vmatpush1.msra.mxu0 0.0
    %810 = vmatprep.subr.mxu0 0.0
    %811 = vmatpush1.msra.mxu0 0.0
    %812 = vmatprep.subr.mxu0 0.0
    %813 = vmatpush1.msra.mxu0 0.0
    %814 = vmatprep.subr.mxu0 0.0
    %815 = vmatpush1.msra.mxu0 0.0
    %816 = vmatprep.subr.mxu0 0.0
    %817 = vmatpush1.msra.mxu0 0.0
    %818 = vmatprep.subr.mxu0 0.0
    %819 = vmatpush1.msra.mxu0 0.0
    %820 = vmatprep.subr.mxu0 0.0
    %821 = vmatpush1.msra.mxu0 0.0
    %822 = vmatprep.subr.mxu0 0.0
    %823 = vmatpush1.msra.mxu0 0.0
    %824 = vmatprep.subr.mxu0 0.0
    %825 = vmatpush1.msra.mxu0 0.0
    %826 = vmatprep.mubr.f32.mxu0 %v760
    %827 = vmatmul.mubr.f32.gmra.mrb[0].mxu0 %v757
    %v828 = vpop.f32.mrb[0].mxu0
    %v829 = vadd.f32 0.0, %v828
    %v830 = vpop.f32.mrb[0].mxu0
    %831 = vdwg.mxu0
    %vm832 = vcmask 80896
    %v834 = vsel %vm832, %v829, 0
    %vm836 = vcmask 1041408
    %v838 = vsel %vm836, %v718, 0
    %v841 = vsel %vm836, %v719, 0
    %843 = vmatprep.subr.mxu0 %v717
    %844 = vmatpush1.msra.mxu0 %v716
    %845 = vmatprep.subr.mxu0 %v841
    %846 = vmatpush1.msra.mxu0 %v838
    %847 = vmatprep.subr.mxu0 0.0
    %848 = vmatpush1.msra.mxu0 0.0
    %849 = vmatprep.subr.mxu0 0.0
    %850 = vmatpush1.msra.mxu0 0.0
    %851 = vmatprep.subr.mxu0 0.0
    %852 = vmatpush1.msra.mxu0 0.0
    %853 = vmatprep.subr.mxu0 0.0
    %854 = vmatpush1.msra.mxu0 0.0
    %855 = vmatprep.subr.mxu0 0.0
    %856 = vmatpush1.msra.mxu0 0.0
    %857 = vmatprep.subr.mxu0 0.0
    %858 = vmatpush1.msra.mxu0 0.0
    %859 = vmatprep.subr.mxu0 0.0
    %860 = vmatpush1.msra.mxu0 0.0
    %861 = vmatprep.subr.mxu0 0.0
    %862 = vmatpush1.msra.mxu0 0.0
    %863 = vmatprep.subr.mxu0 0.0
    %864 = vmatpush1.msra.mxu0 0.0
    %865 = vmatprep.subr.mxu0 0.0
    %866 = vmatpush1.msra.mxu0 0.0
    %867 = vmatprep.subr.mxu0 0.0
    %868 = vmatpush1.msra.mxu0 0.0
    %869 = vmatprep.subr.mxu0 0.0
    %870 = vmatpush1.msra.mxu0 0.0
    %871 = vmatprep.subr.mxu0 0.0
    %872 = vmatpush1.msra.mxu0 0.0
    %873 = vmatprep.subr.mxu0 0.0
    %874 = vmatpush1.msra.mxu0 0.0
    %875 = vmatprep.subr.mxu0 0.0
    %876 = vmatpush1.msra.mxu0 0.0
    %877 = vmatprep.subr.mxu0 0.0
    %878 = vmatpush1.msra.mxu0 0.0
    %879 = vmatprep.subr.mxu0 0.0
    %880 = vmatpush1.msra.mxu0 0.0
    %881 = vmatprep.subr.mxu0 0.0
    %882 = vmatpush1.msra.mxu0 0.0
    %883 = vmatprep.subr.mxu0 0.0
    %884 = vmatpush1.msra.mxu0 0.0
    %885 = vmatprep.subr.mxu0 0.0
    %886 = vmatpush1.msra.mxu0 0.0
    %887 = vmatprep.subr.mxu0 0.0
    %888 = vmatpush1.msra.mxu0 0.0
    %889 = vmatprep.subr.mxu0 0.0
    %890 = vmatpush1.msra.mxu0 0.0
    %891 = vmatprep.subr.mxu0 0.0
    %892 = vmatpush1.msra.mxu0 0.0
    %893 = vmatprep.subr.mxu0 0.0
    %894 = vmatpush1.msra.mxu0 0.0
    %895 = vmatprep.subr.mxu0 0.0
    %896 = vmatpush1.msra.mxu0 0.0
    %897 = vmatprep.subr.mxu0 0.0
    %898 = vmatpush1.msra.mxu0 0.0
    %899 = vmatprep.subr.mxu0 0.0
    %900 = vmatpush1.msra.mxu0 0.0
    %901 = vmatprep.subr.mxu0 0.0
    %902 = vmatpush1.msra.mxu0 0.0
    %903 = vmatprep.subr.mxu0 0.0
    %904 = vmatpush1.msra.mxu0 0.0
    %905 = vmatprep.subr.mxu0 0.0
    %906 = vmatpush1.msra.mxu0 0.0
    %907 = vmatprep.mubr.f32.mxu0 0.0
    %908 = vmatmul.mubr.f32.gmra.mrb[0].mxu0 %v834
    %v909 = vpop.f32.mrb[0].mxu0
    %v910 = vadd.f32 0.0, %v909
    %v911 = vpop.f32.mrb[0].mxu0
    %v912 = vadd.f32 0.0, %v911
    %913 = vdwg.mxu0
    %v914 = vmul.f32 %v910, 0.00390625
    %v915 = vmul.f32 %v912, 0.00390625
    %v916 = vmul.f32 %v914, %v914
    %v917 = vmul.f32 %v915, %v915
    %v920 = vrot.slane %v916, 7
    %v921 = vrot.slane %v917, 7
    %v924 = vsub.f32 %v914, %v920
    %v925 = vsub.f32 %v915, %v921
    %v926 = vlaneseq
    %v927 = vshrl.u32 %v926, 7
    %v928 = vsub.s32 0, %v927
    %v929 = vrot.slane %v914, %v928
    %v930 = vlaneseq
    %v931 = vshrl.u32 %v930, 7
    %v932 = vsub.s32 0, %v931
    %v933 = vrot.slane %v915, %v932
    %v934 = vsub.f32 %v684, %v929
    %v935 = vsub.f32 %v685, %v933
    %v936 = vsub.f32 %v686, %v929
    %v937 = vsub.f32 %v687, %v933
    %v938 = vadd.f32 %v924, 1e-05
    %v939 = vadd.f32 %v925, 1e-05
    %v940 = vrsqrt.pop %v938
    %v941 = vrsqrt.pop %v939
    %v942 = vlaneseq
    %v943 = vshrl.u32 %v942, 7
    %v944 = vsub.s32 1, %v943
    %v945 = vrot.slane %v940, %v944
    %v946 = vlaneseq
    %v947 = vshrl.u32 %v946, 7
    %v948 = vsub.s32 1, %v947
    %v949 = vrot.slane %v941, %v948
    %v950 = vmul.f32 %v934, %v945
    %v951 = vmul.f32 %v935, %v949
    %v952 = vmul.f32 %v936, %v945
    %v953 = vmul.f32 %v937, %v949
    %v954 = vmul.f32 %v950, %v688
    %v955 = vmul.f32 %v951, %v689
    %v956 = vmul.f32 %v952, %v690
    %v957 = vmul.f32 %v953, %v691
    %v958 = vadd.f32 %v954, %v692
    %v959 = vadd.f32 %v955, %v693
    %v960 = vadd.f32 %v956, %v694
    %v961 = vadd.f32 %v957, %v695
    %v962 = vld [vmem:[%s1 + $0x120] sm:$0xff]
    %v963 = vld [vmem:[%s1 + $0x128] sm:$0xff]
    %v964 = vld [vmem:[%s1 + $0x130] sm:$0xff]
    %v965 = vld [vmem:[%s1 + $0x138] sm:$0xff]
    %968 = vrot.lane.b32.xlu0 %v962, 112
    %v969 = vpop.permute.xlu0 %968
    %970 = vrot.lane.b32.xlu0 %v963, 112
    %v971 = vpop.permute.xlu0 %970
    %976 = vrot.lane.b32.xlu0 %v958, 112
    %v977 = vpop.permute.xlu0 %976
    %978 = vrot.lane.b32.xlu0 %v959, 112
    %v979 = vpop.permute.xlu0 %978
    %980 = vrot.lane.b32.xlu0 %v960, 112
    %v981 = vpop.permute.xlu0 %980
    %982 = vrot.lane.b32.xlu0 %v961, 112
    %v983 = vpop.permute.xlu0 %982
    %v984 = vsel %vm69, %v977, %v979
    %v985 = vsel %vm69, %v981, %v983
    %v990 = vsel %vm207, %v969, 0
    %v992 = vsel %vm207, %v971, 0
    %994 = vmatprep.subr.mxu0 %v979
    %995 = vmatpush1.msra.mxu0 %v984
    %996 = vmatprep.subr.mxu0 %v983
    %997 = vmatpush1.msra.mxu0 %v985
    %998 = vmatprep.subr.mxu0 0.0
    %999 = vmatpush1.msra.mxu0 0.0
    %1000 = vmatprep.subr.mxu0 0.0
    %1001 = vmatpush1.msra.mxu0 0.0
    %1002 = vmatprep.subr.mxu0 0.0
    %1003 = vmatpush1.msra.mxu0 0.0
    %1004 = vmatprep.subr.mxu0 0.0
    %1005 = vmatpush1.msra.mxu0 0.0
    %1006 = vmatprep.subr.mxu0 0.0
    %1007 = vmatpush1.msra.mxu0 0.0
    %1008 = vmatprep.subr.mxu0 0.0
    %1009 = vmatpush1.msra.mxu0 0.0
    %1010 = vmatprep.subr.mxu0 0.0
    %1011 = vmatpush1.msra.mxu0 0.0
    %1012 = vmatprep.subr.mxu0 0.0
    %1013 = vmatpush1.msra.mxu0 0.0
    %1014 = vmatprep.subr.mxu0 0.0
    %1015 = vmatpush1.msra.mxu0 0.0
    %1016 = vmatprep.subr.mxu0 0.0
    %1017 = vmatpush1.msra.mxu0 0.0
    %1018 = vmatprep.subr.mxu0 0.0
    %1019 = vmatpush1.msra.mxu0 0.0
    %1020 = vmatprep.subr.mxu0 0.0
    %1021 = vmatpush1.msra.mxu0 0.0
    %1022 = vmatprep.subr.mxu0 0.0
    %1023 = vmatpush1.msra.mxu0 0.0
    %1024 = vmatprep.subr.mxu0 0.0
    %1025 = vmatpush1.msra.mxu0 0.0
    %1026 = vmatprep.subr.mxu0 0.0
    %1027 = vmatpush1.msra.mxu0 0.0
    %1028 = vmatprep.subr.mxu0 0.0
    %1029 = vmatpush1.msra.mxu0 0.0
    %1030 = vmatprep.subr.mxu0 0.0
    %1031 = vmatpush1.msra.mxu0 0.0
    %1032 = vmatprep.subr.mxu0 0.0
    %1033 = vmatpush1.msra.mxu0 0.0
    %1034 = vmatprep.subr.mxu0 0.0
    %1035 = vmatpush1.msra.mxu0 0.0
    %1036 = vmatprep.subr.mxu0 0.0
    %1037 = vmatpush1.msra.mxu0 0.0
    %1038 = vmatprep.subr.mxu0 0.0
    %1039 = vmatpush1.msra.mxu0 0.0
    %1040 = vmatprep.subr.mxu0 0.0
    %1041 = vmatpush1.msra.mxu0 0.0
    %1042 = vmatprep.subr.mxu0 0.0
    %1043 = vmatpush1.msra.mxu0 0.0
    %1044 = vmatprep.subr.mxu0 0.0
    %1045 = vmatpush1.msra.mxu0 0.0
    %1046 = vmatprep.subr.mxu0 0.0
    %1047 = vmatpush1.msra.mxu0 0.0
    %1048 = vmatprep.subr.mxu0 0.0
    %1049 = vmatpush1.msra.mxu0 0.0
    %1050 = vmatprep.subr.mxu0 0.0
    %1051 = vmatpush1.msra.mxu0 0.0
    %1052 = vmatprep.subr.mxu0 0.0
    %1053 = vmatpush1.msra.mxu0 0.0
    %1054 = vmatprep.subr.mxu0 0.0
    %1055 = vmatpush1.msra.mxu0 0.0
    %1056 = vmatprep.subr.mxu0 0.0
    %1057 = vmatpush1.msra.mxu0 0.0
    %1058 = vmatprep.mubr.f32.mxu0 0.0
    %1059 = vmatmul.mubr.f32.gmra.mrb[0].mxu0 %v990
    %v1060 = vpop.f32.mrb[0].mxu0
    %v1061 = vadd.f32 0.0, %v1060
    %v1062 = vpop.f32.mrb[0].mxu0
    %v1063 = vadd.f32 0.0, %v1062
    %1064 = vmatprep.mubr.f32.mxu0 0.0
    %1065 = vmatmul.mubr.f32.gmra.mrb[0].mxu0 %v992
    %v1066 = vpop.f32.mrb[0].mxu0
    %v1067 = vadd.f32 0.0, %v1066
    %v1068 = vpop.f32.mrb[0].mxu0
    %v1069 = vadd.f32 0.0, %v1068
    %1070 = vdwg.mxu0
    %v1071 = vsel %vm207, %v962, 0
    %v1073 = vsel %vm207, %v963, 0
    %1075 = vmatprep.subr.mxu0 %v959
    %1076 = vmatpush1.msra.mxu0 %v958
    %1077 = vmatprep.subr.mxu0 %v961
    %1078 = vmatpush1.msra.mxu0 %v960
    %1079 = vmatprep.subr.mxu0 0.0
    %1080 = vmatpush1.msra.mxu0 0.0
    %1081 = vmatprep.subr.mxu0 0.0
    %1082 = vmatpush1.msra.mxu0 0.0
    %1083 = vmatprep.subr.mxu0 0.0
    %1084 = vmatpush1.msra.mxu0 0.0
    %1085 = vmatprep.subr.mxu0 0.0
    %1086 = vmatpush1.msra.mxu0 0.0
    %1087 = vmatprep.subr.mxu0 0.0
    %1088 = vmatpush1.msra.mxu0 0.0
    %1089 = vmatprep.subr.mxu0 0.0
    %1090 = vmatpush1.msra.mxu0 0.0
    %1091 = vmatprep.subr.mxu0 0.0
    %1092 = vmatpush1.msra.mxu0 0.0
    %1093 = vmatprep.subr.mxu0 0.0
    %1094 = vmatpush1.msra.mxu0 0.0
    %1095 = vmatprep.subr.mxu0 0.0
    %1096 = vmatpush1.msra.mxu0 0.0
    %1097 = vmatprep.subr.mxu0 0.0
    %1098 = vmatpush1.msra.mxu0 0.0
    %1099 = vmatprep.subr.mxu0 0.0
    %1100 = vmatpush1.msra.mxu0 0.0
    %1101 = vmatprep.subr.mxu0 0.0
    %1102 = vmatpush1.msra.mxu0 0.0
    %1103 = vmatprep.subr.mxu0 0.0
    %1104 = vmatpush1.msra.mxu0 0.0
    %1105 = vmatprep.subr.mxu0 0.0
    %1106 = vmatpush1.msra.mxu0 0.0
    %1107 = vmatprep.subr.mxu0 0.0
    %1108 = vmatpush1.msra.mxu0 0.0
    %1109 = vmatprep.subr.mxu0 0.0
    %1110 = vmatpush1.msra.mxu0 0.0
    %1111 = vmatprep.subr.mxu0 0.0
    %1112 = vmatpush1.msra.mxu0 0.0
    %1113 = vmatprep.subr.mxu0 0.0
    %1114 = vmatpush1.msra.mxu0 0.0
    %1115 = vmatprep.subr.mxu0 0.0
    %1116 = vmatpush1.msra.mxu0 0.0
    %1117 = vmatprep.subr.mxu0 0.0
    %1118 = vmatpush1.msra.mxu0 0.0
    %1119 = vmatprep.subr.mxu0 0.0
    %1120 = vmatpush1.msra.mxu0 0.0
    %1121 = vmatprep.subr.mxu0 0.0
    %1122 = vmatpush1.msra.mxu0 0.0
    %1123 = vmatprep.subr.mxu0 0.0
    %1124 = vmatpush1.msra.mxu0 0.0
    %1125 = vmatprep.subr.mxu0 0.0
    %1126 = vmatpush1.msra.mxu0 0.0
    %1127 = vmatprep.subr.mxu0 0.0
    %1128 = vmatpush1.msra.mxu0 0.0
    %1129 = vmatprep.subr.mxu0 0.0
    %1130 = vmatpush1.msra.mxu0 0.0
    %1131 = vmatprep.subr.mxu0 0.0
    %1132 = vmatpush1.msra.mxu0 0.0
    %1133 = vmatprep.subr.mxu0 0.0
    %1134 = vmatpush1.msra.mxu0 0.0
    %1135 = vmatprep.subr.mxu0 0.0
    %1136 = vmatpush1.msra.mxu0 0.0
    %1137 = vmatprep.subr.mxu0 0.0
    %1138 = vmatpush1.msra.mxu0 0.0
    %1139 = vmatprep.mubr.f32.mxu0 0.0
    %1140 = vmatmul.mubr.f32.gmra.mrb[0].mxu0 %v1071
    %v1141 = vpop.f32.mrb[0].mxu0
    %v1142 = vadd.f32 %v1061, %v1141
    %v1143 = vpop.f32.mrb[0].mxu0
    %v1144 = vadd.f32 %v1063, %v1143
    %1145 = vmatprep.mubr.f32.mxu0 0.0
    %1146 = vmatmul.mubr.f32.gmra.mrb[0].mxu0 %v1073
    %v1147 = vpop.f32.mrb[0].mxu0
    %v1148 = vadd.f32 %v1067, %v1147
    %v1149 = vpop.f32.mrb[0].mxu0
    %v1150 = vadd.f32 %v1069, %v1149
    %1151 = vdwg.mxu0
    %1153 = vset.pattern.permute.xlu0 0
    %1154 = vperm.xlu0 %1153, %v964
    %v1155 = vpop.permute.xlu0 %1154
    %1158 = vset.pattern.permute.xlu0 0
    %1159 = vperm.xlu0 %1158, %v965
    %v1160 = vpop.permute.xlu0 %1159
    %v1162 = vadd.f32 %v1142, %v1155
    %v1163 = vadd.f32 %v1144, %v1155
    %v1164 = vadd.f32 %v1148, %v1160
    %v1165 = vadd.f32 %v1150, %v1160
    %v1166 = vxor.u32 %v1164, 2147483648
    %v1167 = vxor.u32 %v1165, 2147483648
    %v1168 = vmul.f32 %v1166, 1.442695
    %v1169 = vpow.pop %v1168
    %v1170 = vmul.f32 %v1167, 1.442695
    %v1171 = vpow.pop %v1170
    %v1172 = vadd.f32 %v1169, 1.0
    %v1173 = vadd.f32 %v1171, 1.0
    %v1174 = vrcp.pop %v1172
    %v1175 = vmul.f32 1.0, %v1174
    %v1176 = vrcp.pop %v1173
    %v1177 = vmul.f32 1.0, %v1176
    %v1178 = vmul.f32 %v1162, %v1175
    %v1179 = vmul.f32 %v1163, %v1177
    %v1180 = vld [vmem:[%s1 + $0x140] sm:$0xff]
    %v1181 = vld [vmem:[%s1 + $0x148] sm:$0xff]
    %v1183 = vsel %vm112, %v1180, 0
    %1185 = vmatprep.subr.mxu0 %v1179
    %1186 = vmatpush1.msra.mxu0 %v1178
    %1187 = vmatprep.subr.mxu0 0.0
    %1188 = vmatpush1.msra.mxu0 0.0
    %1189 = vmatprep.subr.mxu0 0.0
    %1190 = vmatpush1.msra.mxu0 0.0
    %1191 = vmatprep.subr.mxu0 0.0
    %1192 = vmatpush1.msra.mxu0 0.0
    %1193 = vmatprep.subr.mxu0 0.0
    %1194 = vmatpush1.msra.mxu0 0.0
    %1195 = vmatprep.subr.mxu0 0.0
    %1196 = vmatpush1.msra.mxu0 0.0
    %1197 = vmatprep.subr.mxu0 0.0
    %1198 = vmatpush1.msra.mxu0 0.0
    %1199 = vmatprep.subr.mxu0 0.0
    %1200 = vmatpush1.msra.mxu0 0.0
    %1201 = vmatprep.subr.mxu0 0.0
    %1202 = vmatpush1.msra.mxu0 0.0
    %1203 = vmatprep.subr.mxu0 0.0
    %1204 = vmatpush1.msra.mxu0 0.0
    %1205 = vmatprep.subr.mxu0 0.0
    %1206 = vmatpush1.msra.mxu0 0.0
    %1207 = vmatprep.subr.mxu0 0.0
    %1208 = vmatpush1.msra.mxu0 0.0
    %1209 = vmatprep.subr.mxu0 0.0
    %1210 = vmatpush1.msra.mxu0 0.0
    %1211 = vmatprep.subr.mxu0 0.0
    %1212 = vmatpush1.msra.mxu0 0.0
    %1213 = vmatprep.subr.mxu0 0.0
    %1214 = vmatpush1.msra.mxu0 0.0
    %1215 = vmatprep.subr.mxu0 0.0
    %1216 = vmatpush1.msra.mxu0 0.0
    %1217 = vmatprep.subr.mxu0 0.0
    %1218 = vmatpush1.msra.mxu0 0.0
    %1219 = vmatprep.subr.mxu0 0.0
    %1220 = vmatpush1.msra.mxu0 0.0
    %1221 = vmatprep.subr.mxu0 0.0
    %1222 = vmatpush1.msra.mxu0 0.0
    %1223 = vmatprep.subr.mxu0 0.0
    %1224 = vmatpush1.msra.mxu0 0.0
    %1225 = vmatprep.subr.mxu0 0.0
    %1226 = vmatpush1.msra.mxu0 0.0
    %1227 = vmatprep.subr.mxu0 0.0
    %1228 = vmatpush1.msra.mxu0 0.0
    %1229 = vmatprep.subr.mxu0 0.0
    %1230 = vmatpush1.msra.mxu0 0.0
    %1231 = vmatprep.subr.mxu0 0.0
    %1232 = vmatpush1.msra.mxu0 0.0
    %1233 = vmatprep.subr.mxu0 0.0
    %1234 = vmatpush1.msra.mxu0 0.0
    %1235 = vmatprep.subr.mxu0 0.0
    %1236 = vmatpush1.msra.mxu0 0.0
    %1237 = vmatprep.subr.mxu0 0.0
    %1238 = vmatpush1.msra.mxu0 0.0
    %1239 = vmatprep.subr.mxu0 0.0
    %1240 = vmatpush1.msra.mxu0 0.0
    %1241 = vmatprep.subr.mxu0 0.0
    %1242 = vmatpush1.msra.mxu0 0.0
    %1243 = vmatprep.subr.mxu0 0.0
    %1244 = vmatpush1.msra.mxu0 0.0
    %1245 = vmatprep.subr.mxu0 0.0
    %1246 = vmatpush1.msra.mxu0 0.0
    %1247 = vmatprep.subr.mxu0 0.0
    %1248 = vmatpush1.msra.mxu0 0.0
    %1249 = vmatprep.mubr.f32.mxu0 0.0
    %1250 = vmatmul.mubr.f32.gmra.mrb[0].mxu0 %v1183
    %v1251 = vpop.f32.mrb[0].mxu0
    %v1252 = vadd.f32 0.0, %v1251
    %v1253 = vpop.f32.mrb[0].mxu0
    %v1254 = vadd.f32 0.0, %v1253
    %1255 = vdwg.mxu0
    %1257 = vrot.lane.b32.xlu0 %v1252, 112
    %v1258 = vpop.permute.xlu0 %1257
    %1259 = vrot.lane.b32.xlu0 %v1252, 96
    %v1260 = vpop.permute.xlu0 %1259
    %1261 = vrot.lane.b32.xlu0 %v1252, 80
    %v1262 = vpop.permute.xlu0 %1261
    %1263 = vrot.lane.b32.xlu0 %v1252, 64
    %v1264 = vpop.permute.xlu0 %1263
    %1265 = vrot.lane.b32.xlu0 %v1252, 48
    %v1266 = vpop.permute.xlu0 %1265
    %1267 = vrot.lane.b32.xlu0 %v1252, 32
    %v1268 = vpop.permute.xlu0 %1267
    %1269 = vrot.lane.b32.xlu0 %v1252, 16
    %v1270 = vpop.permute.xlu0 %1269
    %v1271 = vsel %vm207, %v1252, 0
    %v1273 = vsel %vm207, %v1258, 0
    %v1275 = vsel %vm207, %v1260, 0
    %v1277 = vsel %vm207, %v1262, 0
    %v1279 = vsel %vm207, %v1264, 0
    %v1281 = vsel %vm207, %v1266, 0
    %v1283 = vsel %vm207, %v1268, 0
    %v1285 = vsel %vm207, %v1270, 0
    %v1288 = vsel %vm207, %v1254, 0
    %1290 = vmatprep.subr.mxu0 0.0
    %1291 = vmatpush1.msra.mxu0 %v110
    %1292 = vmatprep.subr.mxu0 0.0
    %1293 = vmatpush1.msra.mxu0 %v111
    %1294 = vmatprep.subr.mxu0 0.0
    %1295 = vmatpush1.msra.mxu0 0.0
    %1296 = vmatprep.subr.mxu0 0.0
    %1297 = vmatpush1.msra.mxu0 0.0
    %1298 = vmatprep.subr.mxu0 0.0
    %1299 = vmatpush1.msra.mxu0 0.0
    %1300 = vmatprep.subr.mxu0 0.0
    %1301 = vmatpush1.msra.mxu0 0.0
    %1302 = vmatprep.subr.mxu0 0.0
    %1303 = vmatpush1.msra.mxu0 0.0
    %1304 = vmatprep.subr.mxu0 0.0
    %1305 = vmatpush1.msra.mxu0 0.0
    %1306 = vmatprep.subr.mxu0 0.0
    %1307 = vmatpush1.msra.mxu0 0.0
    %1308 = vmatprep.subr.mxu0 0.0
    %1309 = vmatpush1.msra.mxu0 0.0
    %1310 = vmatprep.subr.mxu0 0.0
    %1311 = vmatpush1.msra.mxu0 0.0
    %1312 = vmatprep.subr.mxu0 0.0
    %1313 = vmatpush1.msra.mxu0 0.0
    %1314 = vmatprep.subr.mxu0 0.0
    %1315 = vmatpush1.msra.mxu0 0.0
    %1316 = vmatprep.subr.mxu0 0.0
    %1317 = vmatpush1.msra.mxu0 0.0
    %1318 = vmatprep.subr.mxu0 0.0
    %1319 = vmatpush1.msra.mxu0 0.0
    %1320 = vmatprep.subr.mxu0 0.0
    %1321 = vmatpush1.msra.mxu0 0.0
    %1322 = vmatprep.subr.mxu0 0.0
    %1323 = vmatpush1.msra.mxu0 0.0
    %1324 = vmatprep.subr.mxu0 0.0
    %1325 = vmatpush1.msra.mxu0 0.0
    %1326 = vmatprep.subr.mxu0 0.0
    %1327 = vmatpush1.msra.mxu0 0.0
    %1328 = vmatprep.subr.mxu0 0.0
    %1329 = vmatpush1.msra.mxu0 0.0
    %1330 = vmatprep.subr.mxu0 0.0
    %1331 = vmatpush1.msra.mxu0 0.0
    %1332 = vmatprep.subr.mxu0 0.0
    %1333 = vmatpush1.msra.mxu0 0.0
    %1334 = vmatprep.subr.mxu0 0.0
    %1335 = vmatpush1.msra.mxu0 0.0
    %1336 = vmatprep.subr.mxu0 0.0
    %1337 = vmatpush1.msra.mxu0 0.0
    %1338 = vmatprep.subr.mxu0 0.0
    %1339 = vmatpush1.msra.mxu0 0.0
    %1340 = vmatprep.subr.mxu0 0.0
    %1341 = vmatpush1.msra.mxu0 0.0
    %1342 = vmatprep.subr.mxu0 0.0
    %1343 = vmatpush1.msra.mxu0 0.0
    %1344 = vmatprep.subr.mxu0 0.0
    %1345 = vmatpush1.msra.mxu0 0.0
    %1346 = vmatprep.subr.mxu0 0.0
    %1347 = vmatpush1.msra.mxu0 0.0
    %1348 = vmatprep.subr.mxu0 0.0
    %1349 = vmatpush1.msra.mxu0 0.0
    %1350 = vmatprep.subr.mxu0 0.0
    %1351 = vmatpush1.msra.mxu0 0.0
    %1352 = vmatprep.subr.mxu0 0.0
    %1353 = vmatpush1.msra.mxu0 0.0
    %1354 = vmatprep.mubr.f32.mxu0 0.0
    %1355 = vmatmul.mubr.f32.gmra.mrb[0].mxu0 %v1271
    %v1356 = vpop.f32.mrb[0].mxu0
    %v1357 = vadd.f32 0.0, %v1356
    %v1358 = vpop.f32.mrb[0].mxu0
    %1359 = vmatprep.mubr.f32.mxu0 0.0
    %1360 = vmatmul.mubr.f32.gmra.mrb[0].mxu0 %v1273
    %v1361 = vpop.f32.mrb[0].mxu0
    %v1362 = vadd.f32 0.0, %v1361
    %v1363 = vpop.f32.mrb[0].mxu0
    %1364 = vmatprep.mubr.f32.mxu0 0.0
    %1365 = vmatmul.mubr.f32.gmra.mrb[0].mxu0 %v1275
    %v1366 = vpop.f32.mrb[0].mxu0
    %v1367 = vadd.f32 0.0, %v1366
    %v1368 = vpop.f32.mrb[0].mxu0
    %1369 = vmatprep.mubr.f32.mxu0 0.0
    %1370 = vmatmul.mubr.f32.gmra.mrb[0].mxu0 %v1277
    %v1371 = vpop.f32.mrb[0].mxu0
    %v1372 = vadd.f32 0.0, %v1371
    %v1373 = vpop.f32.mrb[0].mxu0
    %1374 = vmatprep.mubr.f32.mxu0 0.0
    %1375 = vmatmul.mubr.f32.gmra.mrb[0].mxu0 %v1279
    %v1376 = vpop.f32.mrb[0].mxu0
    %v1377 = vadd.f32 0.0, %v1376
    %v1378 = vpop.f32.mrb[0].mxu0
    %1379 = vmatprep.mubr.f32.mxu0 0.0
    %1380 = vmatmul.mubr.f32.gmra.mrb[0].mxu0 %v1281
    %v1381 = vpop.f32.mrb[0].mxu0
    %v1382 = vadd.f32 0.0, %v1381
    %v1383 = vpop.f32.mrb[0].mxu0
    %1384 = vmatprep.mubr.f32.mxu0 0.0
    %1385 = vmatmul.mubr.f32.gmra.mrb[0].mxu0 %v1283
    %v1386 = vpop.f32.mrb[0].mxu0
    %v1387 = vadd.f32 0.0, %v1386
    %v1388 = vpop.f32.mrb[0].mxu0
    %1389 = vmatprep.mubr.f32.mxu0 0.0
    %1390 = vmatmul.mubr.f32.gmra.mrb[0].mxu0 %v1285
    %v1391 = vpop.f32.mrb[0].mxu0
    %v1392 = vadd.f32 0.0, %v1391
    %v1393 = vpop.f32.mrb[0].mxu0
    %1394 = vmatprep.mubr.f32.mxu0 0.0
    %1395 = vmatmul.mubr.f32.gmra.mrb[0].mxu0 %v1288
    %v1396 = vpop.f32.mrb[0].mxu0
    %v1397 = vadd.f32 0.0, %v1396
    %v1398 = vpop.f32.mrb[0].mxu0
    %1399 = vdwg.mxu0
    %1401 = vrot.lane.b32.xlu0 %v1362, 16
    %v1402 = vpop.permute.xlu0 %1401
    %1405 = vrot.lane.b32.xlu0 %v1367, 32
    %v1406 = vpop.permute.xlu0 %1405
    %1409 = vrot.lane.b32.xlu0 %v1372, 48
    %v1410 = vpop.permute.xlu0 %1409
    %1413 = vrot.lane.b32.xlu0 %v1377, 64
    %v1414 = vpop.permute.xlu0 %1413
    %1417 = vrot.lane.b32.xlu0 %v1382, 80
    %v1418 = vpop.permute.xlu0 %1417
    %1421 = vrot.lane.b32.xlu0 %v1387, 96
    %v1422 = vpop.permute.xlu0 %1421
    %1425 = vrot.lane.b32.xlu0 %v1392, 112
    %v1426 = vpop.permute.xlu0 %1425
    %v1428 = vsel %vm207, %v1357, %v1402
    %v1429 = vsel %vm387, %v1428, %v1406
    %v1430 = vsel %vm389, %v1429, %v1410
    %v1431 = vsel %vm391, %v1430, %v1414
    %v1432 = vsel %vm393, %v1431, %v1418
    %v1433 = vsel %vm395, %v1432, %v1422
    %v1434 = vsel %vm69, %v1433, %v1426
    %1436 = vset.pattern.permute.xlu0 0
    %1437 = vperm.xlu0 %1436, %v1181
    %v1438 = vpop.permute.xlu0 %1437
    %v1440 = vadd.f32 %v1434, %v1438
    %v1441 = vadd.f32 %v1397, %v1438
    %v1442 = vmax.f32 %v1440, 0.0
    %v1443 = vmax.f32 %v1441, 0.0
    %v1444 = vld [vmem:[%s1 + $0x150] sm:$0xff]
    %v1445 = vld [vmem:[%s1 + $0x158] sm:$0xff]
    %v1446 = vld [vmem:[%s1 + $0x160] sm:$0xff]
    %v1447 = vld [vmem:[%s1 + $0x168] sm:$0xff]
    %v1448 = vld [vmem:[%s1 + $0x170] sm:$0xff]
    %v1449 = vld [vmem:[%s1 + $0x178] sm:$0xff]
    %v1450 = vld [vmem:[%s1 + $0x180] sm:$0xff]
    %v1451 = vld [vmem:[%s1 + $0x188] sm:$0xff]
    %1456 = vrot.lane.b32.xlu0 %v1444, 120
    %v1457 = vpop.permute.xlu0 %1456
    %1458 = vrot.lane.b32.xlu0 %v1445, 120
    %v1459 = vpop.permute.xlu0 %1458
    %1460 = vrot.lane.b32.xlu0 %v1446, 120
    %v1461 = vpop.permute.xlu0 %1460
    %1462 = vrot.lane.b32.xlu0 %v1447, 120
    %v1463 = vpop.permute.xlu0 %1462
    %1466 = vrot.lane.b32.xlu0 %v1442, 112
    %v1467 = vpop.permute.xlu0 %1466
    %1468 = vrot.lane.b32.xlu0 %v1443, 112
    %v1469 = vpop.permute.xlu0 %1468
    %v1470 = vsel %vm69, %v1467, %v1469
    %v1472 = vsel %vm112, %v1457, 0
    %v1474 = vsel %vm112, %v1459, 0
    %v1476 = vsel %vm112, %v1461, 0
    %v1478 = vsel %vm112, %v1463, 0
    %1480 = vmatprep.subr.mxu0 0.0
    %1481 = vmatpush1.msra.mxu0 %v1470
    %1482 = vmatprep.subr.mxu0 0.0
    %1483 = vmatpush1.msra.mxu0 0.0
    %1484 = vmatprep.subr.mxu0 0.0
    %1485 = vmatpush1.msra.mxu0 0.0
    %1486 = vmatprep.subr.mxu0 0.0
    %1487 = vmatpush1.msra.mxu0 0.0
    %1488 = vmatprep.subr.mxu0 0.0
    %1489 = vmatpush1.msra.mxu0 0.0
    %1490 = vmatprep.subr.mxu0 0.0
    %1491 = vmatpush1.msra.mxu0 0.0
    %1492 = vmatprep.subr.mxu0 0.0
    %1493 = vmatpush1.msra.mxu0 0.0
    %1494 = vmatprep.subr.mxu0 0.0
    %1495 = vmatpush1.msra.mxu0 0.0
    %1496 = vmatprep.subr.mxu0 0.0
    %1497 = vmatpush1.msra.mxu0 0.0
    %1498 = vmatprep.subr.mxu0 0.0
    %1499 = vmatpush1.msra.mxu0 0.0
    %1500 = vmatprep.subr.mxu0 0.0
    %1501 = vmatpush1.msra.mxu0 0.0
    %1502 = vmatprep.subr.mxu0 0.0
    %1503 = vmatpush1.msra.mxu0 0.0
    %1504 = vmatprep.subr.mxu0 0.0
    %1505 = vmatpush1.msra.mxu0 0.0
    %1506 = vmatprep.subr.mxu0 0.0
    %1507 = vmatpush1.msra.mxu0 0.0
    %1508 = vmatprep.subr.mxu0 0.0
    %1509 = vmatpush1.msra.mxu0 0.0
    %1510 = vmatprep.subr.mxu0 0.0
    %1511 = vmatpush1.msra.mxu0 0.0
    %1512 = vmatprep.subr.mxu0 0.0
    %1513 = vmatpush1.msra.mxu0 0.0
    %1514 = vmatprep.subr.mxu0 0.0
    %1515 = vmatpush1.msra.mxu0 0.0
    %1516 = vmatprep.subr.mxu0 0.0
    %1517 = vmatpush1.msra.mxu0 0.0
    %1518 = vmatprep.subr.mxu0 0.0
    %1519 = vmatpush1.msra.mxu0 0.0
    %1520 = vmatprep.subr.mxu0 0.0
    %1521 = vmatpush1.msra.mxu0 0.0
    %1522 = vmatprep.subr.mxu0 0.0
    %1523 = vmatpush1.msra.mxu0 0.0
    %1524 = vmatprep.subr.mxu0 0.0
    %1525 = vmatpush1.msra.mxu0 0.0
    %1526 = vmatprep.subr.mxu0 0.0
    %1527 = vmatpush1.msra.mxu0 0.0
    %1528 = vmatprep.subr.mxu0 0.0
    %1529 = vmatpush1.msra.mxu0 0.0
    %1530 = vmatprep.subr.mxu0 0.0
    %1531 = vmatpush1.msra.mxu0 0.0
    %1532 = vmatprep.subr.mxu0 0.0
    %1533 = vmatpush1.msra.mxu0 0.0
    %1534 = vmatprep.subr.mxu0 0.0
    %1535 = vmatpush1.msra.mxu0 0.0
    %1536 = vmatprep.subr.mxu0 0.0
    %1537 = vmatpush1.msra.mxu0 0.0
    %1538 = vmatprep.subr.mxu0 0.0
    %1539 = vmatpush1.msra.mxu0 0.0
    %1540 = vmatprep.subr.mxu0 0.0
    %1541 = vmatpush1.msra.mxu0 0.0
    %1542 = vmatprep.subr.mxu0 0.0
    %1543 = vmatpush1.msra.mxu0 0.0
    %1544 = vmatprep.mubr.f32.mxu0 0.0
    %1545 = vmatmul.mubr.f32.gmra.mrb[0].mxu0 %v1472
    %v1546 = vpop.f32.mrb[0].mxu0
    %v1547 = vadd.f32 0.0, %v1546
    %v1548 = vpop.f32.mrb[0].mxu0
    %1549 = vmatprep.mubr.f32.mxu0 0.0
    %1550 = vmatmul.mubr.f32.gmra.mrb[0].mxu0 %v1474
    %v1551 = vpop.f32.mrb[0].mxu0
    %v1552 = vadd.f32 0.0, %v1551
    %v1553 = vpop.f32.mrb[0].mxu0
    %1554 = vmatprep.mubr.f32.mxu0 0.0
    %1555 = vmatmul.mubr.f32.gmra.mrb[0].mxu0 %v1476
    %v1556 = vpop.f32.mrb[0].mxu0
    %v1557 = vadd.f32 0.0, %v1556
    %v1558 = vpop.f32.mrb[0].mxu0
    %1559 = vmatprep.mubr.f32.mxu0 0.0
    %1560 = vmatmul.mubr.f32.gmra.mrb[0].mxu0 %v1478
    %v1561 = vpop.f32.mrb[0].mxu0
    %v1562 = vadd.f32 0.0, %v1561
    %v1563 = vpop.f32.mrb[0].mxu0
    %1564 = vdwg.mxu0
    %v1565 = vsel %vm112, %v1444, 0
    %v1567 = vsel %vm112, %v1445, 0
    %v1569 = vsel %vm112, %v1446, 0
    %v1571 = vsel %vm112, %v1447, 0
    %1573 = vmatprep.subr.mxu0 0.0
    %1574 = vmatpush1.msra.mxu0 %v1442
    %1575 = vmatprep.subr.mxu0 0.0
    %1576 = vmatpush1.msra.mxu0 0.0
    %1577 = vmatprep.subr.mxu0 0.0
    %1578 = vmatpush1.msra.mxu0 0.0
    %1579 = vmatprep.subr.mxu0 0.0
    %1580 = vmatpush1.msra.mxu0 0.0
    %1581 = vmatprep.subr.mxu0 0.0
    %1582 = vmatpush1.msra.mxu0 0.0
    %1583 = vmatprep.subr.mxu0 0.0
    %1584 = vmatpush1.msra.mxu0 0.0
    %1585 = vmatprep.subr.mxu0 0.0
    %1586 = vmatpush1.msra.mxu0 0.0
    %1587 = vmatprep.subr.mxu0 0.0
    %1588 = vmatpush1.msra.mxu0 0.0
    %1589 = vmatprep.subr.mxu0 0.0
    %1590 = vmatpush1.msra.mxu0 0.0
    %1591 = vmatprep.subr.mxu0 0.0
    %1592 = vmatpush1.msra.mxu0 0.0
    %1593 = vmatprep.subr.mxu0 0.0
    %1594 = vmatpush1.msra.mxu0 0.0
    %1595 = vmatprep.subr.mxu0 0.0
    %1596 = vmatpush1.msra.mxu0 0.0
    %1597 = vmatprep.subr.mxu0 0.0
    %1598 = vmatpush1.msra.mxu0 0.0
    %1599 = vmatprep.subr.mxu0 0.0
    %1600 = vmatpush1.msra.mxu0 0.0
    %1601 = vmatprep.subr.mxu0 0.0
    %1602 = vmatpush1.msra.mxu0 0.0
    %1603 = vmatprep.subr.mxu0 0.0
    %1604 = vmatpush1.msra.mxu0 0.0
    %1605 = vmatprep.subr.mxu0 0.0
    %1606 = vmatpush1.msra.mxu0 0.0
    %1607 = vmatprep.subr.mxu0 0.0
    %1608 = vmatpush1.msra.mxu0 0.0
    %1609 = vmatprep.subr.mxu0 0.0
    %1610 = vmatpush1.msra.mxu0 0.0
    %1611 = vmatprep.subr.mxu0 0.0
    %1612 = vmatpush1.msra.mxu0 0.0
    %1613 = vmatprep.subr.mxu0 0.0
    %1614 = vmatpush1.msra.mxu0 0.0
    %1615 = vmatprep.subr.mxu0 0.0
    %1616 = vmatpush1.msra.mxu0 0.0
    %1617 = vmatprep.subr.mxu0 0.0
    %1618 = vmatpush1.msra.mxu0 0.0
    %1619 = vmatprep.subr.mxu0 0.0
    %1620 = vmatpush1.msra.mxu0 0.0
    %1621 = vmatprep.subr.mxu0 0.0
    %1622 = vmatpush1.msra.mxu0 0.0
    %1623 = vmatprep.subr.mxu0 0.0
    %1624 = vmatpush1.msra.mxu0 0.0
    %1625 = vmatprep.subr.mxu0 0.0
    %1626 = vmatpush1.msra.mxu0 0.0
    %1627 = vmatprep.subr.mxu0 0.0
    %1628 = vmatpush1.msra.mxu0 0.0
    %1629 = vmatprep.subr.mxu0 0.0
    %1630 = vmatpush1.msra.mxu0 0.0
    %1631 = vmatprep.subr.mxu0 0.0
    %1632 = vmatpush1.msra.mxu0 0.0
    %1633 = vmatprep.subr.mxu0 0.0
    %1634 = vmatpush1.msra.mxu0 0.0
    %1635 = vmatprep.subr.mxu0 0.0
    %1636 = vmatpush1.msra.mxu0 0.0
    %1637 = vmatprep.mubr.f32.mxu0 0.0
    %1638 = vmatmul.mubr.f32.gmra.mrb[0].mxu0 %v1565
    %v1639 = vpop.f32.mrb[0].mxu0
    %v1640 = vadd.f32 %v1547, %v1639
    %v1641 = vpop.f32.mrb[0].mxu0
    %1642 = vmatprep.mubr.f32.mxu0 0.0
    %1643 = vmatmul.mubr.f32.gmra.mrb[0].mxu0 %v1567
    %v1644 = vpop.f32.mrb[0].mxu0
    %v1645 = vadd.f32 %v1552, %v1644
    %v1646 = vpop.f32.mrb[0].mxu0
    %1647 = vmatprep.mubr.f32.mxu0 0.0
    %1648 = vmatmul.mubr.f32.gmra.mrb[0].mxu0 %v1569
    %v1649 = vpop.f32.mrb[0].mxu0
    %v1650 = vadd.f32 %v1557, %v1649
    %v1651 = vpop.f32.mrb[0].mxu0
    %1652 = vmatprep.mubr.f32.mxu0 0.0
    %1653 = vmatmul.mubr.f32.gmra.mrb[0].mxu0 %v1571
    %v1654 = vpop.f32.mrb[0].mxu0
    %v1655 = vadd.f32 %v1562, %v1654
    %v1656 = vpop.f32.mrb[0].mxu0
    %1657 = vdwg.mxu0
    %1659 = vset.pattern.permute.xlu0 0
    %1660 = vperm.xlu0 %1659, %v1448
    %v1661 = vpop.permute.xlu0 %1660
    %1664 = vset.pattern.permute.xlu0 0
    %1665 = vperm.xlu0 %1664, %v1449
    %v1666 = vpop.permute.xlu0 %1665
    %1669 = vset.pattern.permute.xlu0 0
    %1670 = vperm.xlu0 %1669, %v1450
    %v1671 = vpop.permute.xlu0 %1670
    %1674 = vset.pattern.permute.xlu0 0
    %1675 = vperm.xlu0 %1674, %v1451
    %v1676 = vpop.permute.xlu0 %1675
    %v1678 = vadd.f32 %v1640, %v1661
    %v1679 = vadd.f32 %v1645, %v1666
    %v1680 = vadd.f32 %v1650, %v1671
    %v1681 = vadd.f32 %v1655, %v1676
    %v1682 = vxor.u32 %v1680, 2147483648
    %v1683 = vxor.u32 %v1681, 2147483648
    %v1684 = vmul.f32 %v1682, 1.442695
    %v1685 = vpow.pop %v1684
    %v1686 = vmul.f32 %v1683, 1.442695
    %v1687 = vpow.pop %v1686
    %v1688 = vadd.f32 %v1685, 1.0
    %v1689 = vadd.f32 %v1687, 1.0
    %v1690 = vrcp.pop %v1688
    %v1691 = vmul.f32 1.0, %v1690
    %v1692 = vrcp.pop %v1689
    %v1693 = vmul.f32 1.0, %v1692
    %v1694 = vmul.f32 %v1678, %v1691
    %v1695 = vmul.f32 %v1679, %v1693
    %v1696 = vld [vmem:[%s2 + $0x60] sm:$0xff]
    %v1697 = vld [vmem:[%s2 + $0x70] sm:$0xff]
    %v1698 = vld [vmem:[%s2 + $0x80] sm:$0xff]
    %v1699 = vld [vmem:[%s2 + $0x90] sm:$0xff]
    %v1700 = vld [vmem:[%s1 + $0x10] sm:$0xff]
    %v1701 = vld [vmem:[%s1 + $0x18] sm:$0xff]
    %v1702 = vld [vmem:[%s1 + $0x20] sm:$0xff]
    %v1703 = vld [vmem:[%s1 + $0x28] sm:$0xff]
    %v1704 = vld [vmem:[%s1 + $0x30] sm:$0xff]
    %v1705 = vld [vmem:[%s1 + $0x38] sm:$0xff]
    %v1706 = vld [vmem:[%s1 + $0x40] sm:$0xff]
    %v1707 = vld [vmem:[%s1 + $0x48] sm:$0xff]
    %v1708 = vld [vmem:[%s1 + $0x50] sm:$0xff]
    %v1709 = vld [vmem:[%s1 + $0x58] sm:$0xff]
    %v1710 = vld [vmem:[%s1 + $0x60] sm:$0xff]
    %v1711 = vld [vmem:[%s1 + $0x68] sm:$0xff]
    %v1712 = vld [vmem:[%s1 + $0x70] sm:$0xff]
    %v1713 = vld [vmem:[%s1 + $0x78] sm:$0xff]
    %v1714 = vld [vmem:[%s1 + $0x80] sm:$0xff]
    %v1715 = vld [vmem:[%s1 + $0x88] sm:$0xff]
    %v1716 = vld [vmem:[%s2] sm:$0xff]
    %v1717 = vadd.f32 %v1694, %v1695
    %v1718 = vrot.slane %v1717, 4
    %v1719 = vadd.f32 %v1717, %v1718
    %v1720 = vrot.slane %v1719, 2
    %v1721 = vadd.f32 %v1719, %v1720
    %v1722 = vrot.slane %v1721, 1
    %v1723 = vadd.f32 %v1721, %v1722
    %v1724 = vmul.f32 %v1694, %v1694
    %v1725 = vmul.f32 %v1695, %v1695
    %v1726 = vadd.f32 %v1724, %v1725
    %v1727 = vrot.slane %v1726, 4
    %v1728 = vadd.f32 %v1726, %v1727
    %v1729 = vrot.slane %v1728, 2
    %v1730 = vadd.f32 %v1728, %v1729
    %v1731 = vrot.slane %v1730, 1
    %v1732 = vadd.f32 %v1730, %v1731
    %v1733 = vsel %vm756, %v1723, %v1732
    %1734 = vmatprep.subr.mxu0 0.0
    %1735 = vmatpush1.msra.mxu0 %v1700
    %1736 = vmatprep.subr.mxu0 0.0
    %1737 = vmatpush1.msra.mxu0 %v1701
    %1738 = vmatprep.subr.mxu0 0.0
    %1739 = vmatpush1.msra.mxu0 %v1702
    %1740 = vmatprep.subr.mxu0 0.0
    %1741 = vmatpush1.msra.mxu0 %v1703
    %1742 = vmatprep.subr.mxu0 0.0
    %1743 = vmatpush1.msra.mxu0 %v1704
    %1744 = vmatprep.subr.mxu0 0.0
    %1745 = vmatpush1.msra.mxu0 %v1705
    %1746 = vmatprep.subr.mxu0 0.0
    %1747 = vmatpush1.msra.mxu0 %v1706
    %1748 = vmatprep.subr.mxu0 0.0
    %1749 = vmatpush1.msra.mxu0 %v1707
    %1750 = vmatprep.subr.mxu0 0.0
    %1751 = vmatpush1.msra.mxu0 %v1708
    %1752 = vmatprep.subr.mxu0 0.0
    %1753 = vmatpush1.msra.mxu0 %v1709
    %1754 = vmatprep.subr.mxu0 0.0
    %1755 = vmatpush1.msra.mxu0 %v1710
    %1756 = vmatprep.subr.mxu0 0.0
    %1757 = vmatpush1.msra.mxu0 %v1711
    %1758 = vmatprep.subr.mxu0 0.0
    %1759 = vmatpush1.msra.mxu0 %v1712
    %1760 = vmatprep.subr.mxu0 0.0
    %1761 = vmatpush1.msra.mxu0 %v1713
    %1762 = vmatprep.subr.mxu0 0.0
    %1763 = vmatpush1.msra.mxu0 %v1714
    %1764 = vmatprep.subr.mxu0 0.0
    %1765 = vmatpush1.msra.mxu0 %v1715
    %1766 = vmatprep.subr.mxu0 0.0
    %1767 = vmatpush1.msra.mxu0 0.0
    %1768 = vmatprep.subr.mxu0 0.0
    %1769 = vmatpush1.msra.mxu0 0.0
    %1770 = vmatprep.subr.mxu0 0.0
    %1771 = vmatpush1.msra.mxu0 0.0
    %1772 = vmatprep.subr.mxu0 0.0
    %1773 = vmatpush1.msra.mxu0 0.0
    %1774 = vmatprep.subr.mxu0 0.0
    %1775 = vmatpush1.msra.mxu0 0.0
    %1776 = vmatprep.subr.mxu0 0.0
    %1777 = vmatpush1.msra.mxu0 0.0
    %1778 = vmatprep.subr.mxu0 0.0
    %1779 = vmatpush1.msra.mxu0 0.0
    %1780 = vmatprep.subr.mxu0 0.0
    %1781 = vmatpush1.msra.mxu0 0.0
    %1782 = vmatprep.subr.mxu0 0.0
    %1783 = vmatpush1.msra.mxu0 0.0
    %1784 = vmatprep.subr.mxu0 0.0
    %1785 = vmatpush1.msra.mxu0 0.0
    %1786 = vmatprep.subr.mxu0 0.0
    %1787 = vmatpush1.msra.mxu0 0.0
    %1788 = vmatprep.subr.mxu0 0.0
    %1789 = vmatpush1.msra.mxu0 0.0
    %1790 = vmatprep.subr.mxu0 0.0
    %1791 = vmatpush1.msra.mxu0 0.0
    %1792 = vmatprep.subr.mxu0 0.0
    %1793 = vmatpush1.msra.mxu0 0.0
    %1794 = vmatprep.subr.mxu0 0.0
    %1795 = vmatpush1.msra.mxu0 0.0
    %1796 = vmatprep.subr.mxu0 0.0
    %1797 = vmatpush1.msra.mxu0 0.0
    %1798 = vmatprep.mubr.f32.mxu0 0.0
    %1799 = vmatmul.mubr.f32.gmra.mrb[0].mxu0 %v1733
    %v1800 = vpop.f32.mrb[0].mxu0
    %v1801 = vadd.f32 0.0, %v1800
    %v1802 = vpop.f32.mrb[0].mxu0
    %1803 = vdwg.mxu0
    %v1805 = vsel %vm112, %v1801, 0
    %1807 = vmatprep.subr.mxu0 0.0
    %1808 = vmatpush1.msra.mxu0 %v1716
    %1809 = vmatprep.subr.mxu0 0.0
    %1810 = vmatpush1.msra.mxu0 0.0
    %1811 = vmatprep.subr.mxu0 0.0
    %1812 = vmatpush1.msra.mxu0 0.0
    %1813 = vmatprep.subr.mxu0 0.0
    %1814 = vmatpush1.msra.mxu0 0.0
    %1815 = vmatprep.subr.mxu0 0.0
    %1816 = vmatpush1.msra.mxu0 0.0
    %1817 = vmatprep.subr.mxu0 0.0
    %1818 = vmatpush1.msra.mxu0 0.0
    %1819 = vmatprep.subr.mxu0 0.0
    %1820 = vmatpush1.msra.mxu0 0.0
    %1821 = vmatprep.subr.mxu0 0.0
    %1822 = vmatpush1.msra.mxu0 0.0
    %1823 = vmatprep.subr.mxu0 0.0
    %1824 = vmatpush1.msra.mxu0 0.0
    %1825 = vmatprep.subr.mxu0 0.0
    %1826 = vmatpush1.msra.mxu0 0.0
    %1827 = vmatprep.subr.mxu0 0.0
    %1828 = vmatpush1.msra.mxu0 0.0
    %1829 = vmatprep.subr.mxu0 0.0
    %1830 = vmatpush1.msra.mxu0 0.0
    %1831 = vmatprep.subr.mxu0 0.0
    %1832 = vmatpush1.msra.mxu0 0.0
    %1833 = vmatprep.subr.mxu0 0.0
    %1834 = vmatpush1.msra.mxu0 0.0
    %1835 = vmatprep.subr.mxu0 0.0
    %1836 = vmatpush1.msra.mxu0 0.0
    %1837 = vmatprep.subr.mxu0 0.0
    %1838 = vmatpush1.msra.mxu0 0.0
    %1839 = vmatprep.subr.mxu0 0.0
    %1840 = vmatpush1.msra.mxu0 0.0
    %1841 = vmatprep.subr.mxu0 0.0
    %1842 = vmatpush1.msra.mxu0 0.0
    %1843 = vmatprep.subr.mxu0 0.0
    %1844 = vmatpush1.msra.mxu0 0.0
    %1845 = vmatprep.subr.mxu0 0.0
    %1846 = vmatpush1.msra.mxu0 0.0
    %1847 = vmatprep.subr.mxu0 0.0
    %1848 = vmatpush1.msra.mxu0 0.0
    %1849 = vmatprep.subr.mxu0 0.0
    %1850 = vmatpush1.msra.mxu0 0.0
    %1851 = vmatprep.subr.mxu0 0.0
    %1852 = vmatpush1.msra.mxu0 0.0
    %1853 = vmatprep.subr.mxu0 0.0
    %1854 = vmatpush1.msra.mxu0 0.0
    %1855 = vmatprep.subr.mxu0 0.0
    %1856 = vmatpush1.msra.mxu0 0.0
    %1857 = vmatprep.subr.mxu0 0.0
    %1858 = vmatpush1.msra.mxu0 0.0
    %1859 = vmatprep.subr.mxu0 0.0
    %1860 = vmatpush1.msra.mxu0 0.0
    %1861 = vmatprep.subr.mxu0 0.0
    %1862 = vmatpush1.msra.mxu0 0.0
    %1863 = vmatprep.subr.mxu0 0.0
    %1864 = vmatpush1.msra.mxu0 0.0
    %1865 = vmatprep.subr.mxu0 0.0
    %1866 = vmatpush1.msra.mxu0 0.0
    %1867 = vmatprep.subr.mxu0 0.0
    %1868 = vmatpush1.msra.mxu0 0.0
    %1869 = vmatprep.subr.mxu0 0.0
    %1870 = vmatpush1.msra.mxu0 0.0
    %1871 = vmatprep.mubr.f32.mxu0 0.0
    %1872 = vmatmul.mubr.f32.gmra.mrb[0].mxu0 %v1805
    %v1873 = vpop.f32.mrb[0].mxu0
    %v1874 = vadd.f32 0.0, %v1873
    %v1875 = vpop.f32.mrb[0].mxu0
    %1876 = vdwg.mxu0
    %v1877 = vmul.f32 %v1874, 0.00390625
    %v1878 = vmul.f32 %v1877, %v1877
    %v1880 = vrot.slane %v1878, 7
    %v1882 = vsub.f32 %v1877, %v1880
    %v1883 = vlaneseq
    %v1884 = vshrl.u32 %v1883, 7
    %v1885 = vsub.s32 0, %v1884
    %v1886 = vrot.slane %v1877, %v1885
    %v1887 = vsub.f32 %v1694, %v1886
    %v1888 = vsub.f32 %v1695, %v1886
    %v1889 = vadd.f32 %v1882, 1e-05
    %v1890 = vrsqrt.pop %v1889
    %v1891 = vlaneseq
    %v1892 = vshrl.u32 %v1891, 7
    %v1893 = vsub.s32 1, %v1892
    %v1894 = vrot.slane %v1890, %v1893
    %v1895 = vmul.f32 %v1887, %v1894
    %v1896 = vmul.f32 %v1888, %v1894
    %v1897 = vmul.f32 %v1895, %v1696
    %v1898 = vmul.f32 %v1896, %v1697
    %v1899 = vadd.f32 %v1897, %v1698
    %v1900 = vadd.f32 %v1898, %v1699
    %v1901 = vld [vmem:[%s2 + $0xa0] sm:$0xff]
    %v1902 = vld [vmem:[%s2 + $0xb0] sm:$0xff]
    %v1903 = vld [vmem:[%s1 + $0x190] sm:$0xff]
    %v1904 = vld [vmem:[%s1 + $0x198] sm:$0xff]
    %v1905 = vld [vmem:[%s1 + $0x1a0] sm:$0xff]
    %v1906 = vld [vmem:[%s1 + $0x1a8] sm:$0xff]
    %v1907 = vld [vmem:[%s1 + $0x1b0] sm:$0xff]
    %v1908 = vld [vmem:[%s1 + $0x1b8] sm:$0xff]
    %v1909 = vld [vmem:[%s1 + $0x1c0] sm:$0x1]
    %v1910 = vld [vmem:[%s1 + $0x1c8] sm:$0x1]
    %1913 = vrot.lane.b32.xlu0 %v1899, 112
    %v1914 = vpop.permute.xlu0 %1913
    %1915 = vrot.lane.b32.xlu0 %v1900, 112
    %v1916 = vpop.permute.xlu0 %1915
    %1919 = vrot.lane.b32.xlu0 %v1899, 96
    %v1920 = vpop.permute.xlu0 %1919
    %1921 = vrot.lane.b32.xlu0 %v1900, 96
    %v1922 = vpop.permute.xlu0 %1921
    %1925 = vrot.lane.b32.xlu0 %v1899, 80
    %v1926 = vpop.permute.xlu0 %1925
    %1927 = vrot.lane.b32.xlu0 %v1900, 80
    %v1928 = vpop.permute.xlu0 %1927
    %1931 = vrot.lane.b32.xlu0 %v1899, 64
    %v1932 = vpop.permute.xlu0 %1931
    %1933 = vrot.lane.b32.xlu0 %v1900, 64
    %v1934 = vpop.permute.xlu0 %1933
    %1937 = vrot.lane.b32.xlu0 %v1899, 48
    %v1938 = vpop.permute.xlu0 %1937
    %1939 = vrot.lane.b32.xlu0 %v1900, 48
    %v1940 = vpop.permute.xlu0 %1939
    %1943 = vrot.lane.b32.xlu0 %v1899, 32
    %v1944 = vpop.permute.xlu0 %1943
    %1945 = vrot.lane.b32.xlu0 %v1900, 32
    %v1946 = vpop.permute.xlu0 %1945
    %1949 = vrot.lane.b32.xlu0 %v1899, 16
    %v1950 = vpop.permute.xlu0 %1949
    %1951 = vrot.lane.b32.xlu0 %v1900, 16
    %v1952 = vpop.permute.xlu0 %1951
    %1956 = vset.pattern.permute.xlu0 0
    %1957 = vperm.xlu0 %1956, %v1903
    %v1958 = vpop.permute.xlu0 %1957
    %1961 = vset.pattern.permute.xlu0 0
    %1962 = vperm.xlu0 %1961, %v1904
    %v1963 = vpop.permute.xlu0 %1962
    %1965 = vmatprep.subr.mxu0 0.0
    %1966 = vmatpush1.msra.mxu0 %v1899
    %1967 = vmatprep.subr.mxu0 0.0
    %1968 = vmatpush1.msra.mxu0 %v1900
    %1969 = vmatprep.subr.mxu0 0.0
    %1970 = vmatpush1.msra.mxu0 %v1914
    %1971 = vmatprep.subr.mxu0 0.0
    %1972 = vmatpush1.msra.mxu0 %v1916
    %1973 = vmatprep.subr.mxu0 0.0
    %1974 = vmatpush1.msra.mxu0 %v1920
    %1975 = vmatprep.subr.mxu0 0.0
    %1976 = vmatpush1.msra.mxu0 %v1922
    %1977 = vmatprep.subr.mxu0 0.0
    %1978 = vmatpush1.msra.mxu0 %v1926
    %1979 = vmatprep.subr.mxu0 0.0
    %1980 = vmatpush1.msra.mxu0 %v1928
    %1981 = vmatprep.subr.mxu0 0.0
    %1982 = vmatpush1.msra.mxu0 %v1932
    %1983 = vmatprep.subr.mxu0 0.0
    %1984 = vmatpush1.msra.mxu0 %v1934
    %1985 = vmatprep.subr.mxu0 0.0
    %1986 = vmatpush1.msra.mxu0 %v1938
    %1987 = vmatprep.subr.mxu0 0.0
    %1988 = vmatpush1.msra.mxu0 %v1940
    %1989 = vmatprep.subr.mxu0 0.0
    %1990 = vmatpush1.msra.mxu0 %v1944
    %1991 = vmatprep.subr.mxu0 0.0
    %1992 = vmatpush1.msra.mxu0 %v1946
    %1993 = vmatprep.subr.mxu0 0.0
    %1994 = vmatpush1.msra.mxu0 %v1950
    %1995 = vmatprep.subr.mxu0 0.0
    %1996 = vmatpush1.msra.mxu0 %v1952
    %1997 = vmatprep.subr.mxu0 0.0
    %1998 = vmatpush1.msra.mxu0 0.0
    %1999 = vmatprep.subr.mxu0 0.0
    %2000 = vmatpush1.msra.mxu0 0.0
    %2001 = vmatprep.subr.mxu0 0.0
    %2002 = vmatpush1.msra.mxu0 0.0
    %2003 = vmatprep.subr.mxu0 0.0
    %2004 = vmatpush1.msra.mxu0 0.0
    %2005 = vmatprep.subr.mxu0 0.0
    %2006 = vmatpush1.msra.mxu0 0.0
    %2007 = vmatprep.subr.mxu0 0.0
    %2008 = vmatpush1.msra.mxu0 0.0
    %2009 = vmatprep.subr.mxu0 0.0
    %2010 = vmatpush1.msra.mxu0 0.0
    %2011 = vmatprep.subr.mxu0 0.0
    %2012 = vmatpush1.msra.mxu0 0.0
    %2013 = vmatprep.subr.mxu0 0.0
    %2014 = vmatpush1.msra.mxu0 0.0
    %2015 = vmatprep.subr.mxu0 0.0
    %2016 = vmatpush1.msra.mxu0 0.0
    %2017 = vmatprep.subr.mxu0 0.0
    %2018 = vmatpush1.msra.mxu0 0.0
    %2019 = vmatprep.subr.mxu0 0.0
    %2020 = vmatpush1.msra.mxu0 0.0
    %2021 = vmatprep.subr.mxu0 0.0
    %2022 = vmatpush1.msra.mxu0 0.0
    %2023 = vmatprep.subr.mxu0 0.0
    %2024 = vmatpush1.msra.mxu0 0.0
    %2025 = vmatprep.subr.mxu0 0.0
    %2026 = vmatpush1.msra.mxu0 0.0
    %2027 = vmatprep.subr.mxu0 0.0
    %2028 = vmatpush1.msra.mxu0 0.0
    %2029 = vmatprep.mubr.f32.mxu0 0.0
    %2030 = vmatmul.mubr.f32.gmra.mrb[0].mxu0 %v1901
    %v2031 = vpop.f32.mrb[0].mxu0
    %v2032 = vadd.f32 %v1958, %v2031
    %v2033 = vpop.f32.mrb[0].mxu0
    %2034 = vmatprep.mubr.f32.mxu0 0.0
    %2035 = vmatmul.mubr.f32.gmra.mrb[0].mxu0 %v1902
    %v2036 = vpop.f32.mrb[0].mxu0
    %v2037 = vadd.f32 %v1963, %v2036
    %v2038 = vpop.f32.mrb[0].mxu0
    %2039 = vdwg.mxu0
    %v2040 = vsel %vm207, %v2032, 0.0
    %v2041 = vsel %vm207, %v2037, 0.0
    %v2042 = vadd.f32 %v2040, %v2041
    %2043 = vadd.xlane.f32.xlu0 %v2042
    %v2044 = vpop.xlane.xlu0 %2043
    %v2045 = vrot.slane %v2044, 4
    %v2046 = vadd.f32 %v2044, %v2045
    %v2047 = vrot.slane %v2046, 2
    %v2048 = vadd.f32 %v2046, %v2047
    %v2049 = vrot.slane %v2048, 1
    %v2050 = vadd.f32 %v2048, %v2049
    %s2051 = vtos %v2050
    %v2052 = vstv %s2051
    %v2053 = vrcp.pop 256.0
    %v2054 = vmul.f32 %v2052, %v2053
    %v2055 = vsub.f32 %v2032, %v2054
    %v2056 = vsub.f32 %v2037, %v2054
    %v2057 = vmul.f32 %v2055, %v2055
    %v2058 = vmul.f32 %v2056, %v2056
    %v2059 = vsel %vm207, %v2057, 0.0
    %v2060 = vsel %vm207, %v2058, 0.0
    %v2061 = vadd.f32 %v2059, %v2060
    %2062 = vadd.xlane.f32.xlu0 %v2061
    %v2063 = vpop.xlane.xlu0 %2062
    %v2064 = vrot.slane %v2063, 4
    %v2065 = vadd.f32 %v2063, %v2064
    %v2066 = vrot.slane %v2065, 2
    %v2067 = vadd.f32 %v2065, %v2066
    %v2068 = vrot.slane %v2067, 1
    %v2069 = vadd.f32 %v2067, %v2068
    %s2070 = vtos %v2069
    %v2071 = vstv %s2070
    %v2072 = vmul.f32 %v2071, %v2053
    %v2073 = vadd.f32 %v2072, 1e-05
    %v2074 = vrsqrt.pop %v2073
    %v2075 = vmul.f32 %v2055, %v2074
    %v2076 = vmul.f32 %v2056, %v2074
    %v2077 = vmul.f32 %v2075, %v1905
    %v2078 = vmul.f32 %v2076, %v1906
    %v2079 = vadd.f32 %v2077, %v1907
    %v2080 = vadd.f32 %v2078, %v1908
    %2082 = vset.pattern.permute.xlu0 0
    %2083 = vperm.xlu0 %2082, %v1910
    %v2084 = vpop.permute.xlu0 %2083
    %v2087 = vsel %vm207, %v1909, 0
    %2089 = vmatprep.subr.mxu0 0.0
    %2090 = vmatpush1.msra.mxu0 %v2079
    %2091 = vmatprep.subr.mxu0 0.0
    %2092 = vmatpush1.msra.mxu0 %v2080
    %2093 = vmatprep.subr.mxu0 0.0
    %2094 = vmatpush1.msra.mxu0 0.0
    %2095 = vmatprep.subr.mxu0 0.0
    %2096 = vmatpush1.msra.mxu0 0.0
    %2097 = vmatprep.subr.mxu0 0.0
    %2098 = vmatpush1.msra.mxu0 0.0
    %2099 = vmatprep.subr.mxu0 0.0
    %2100 = vmatpush1.msra.mxu0 0.0
    %2101 = vmatprep.subr.mxu0 0.0
    %2102 = vmatpush1.msra.mxu0 0.0
    %2103 = vmatprep.subr.mxu0 0.0
    %2104 = vmatpush1.msra.mxu0 0.0
    %2105 = vmatprep.subr.mxu0 0.0
    %2106 = vmatpush1.msra.mxu0 0.0
    %2107 = vmatprep.subr.mxu0 0.0
    %2108 = vmatpush1.msra.mxu0 0.0
    %2109 = vmatprep.subr.mxu0 0.0
    %2110 = vmatpush1.msra.mxu0 0.0
    %2111 = vmatprep.subr.mxu0 0.0
    %2112 = vmatpush1.msra.mxu0 0.0
    %2113 = vmatprep.subr.mxu0 0.0
    %2114 = vmatpush1.msra.mxu0 0.0
    %2115 = vmatprep.subr.mxu0 0.0
    %2116 = vmatpush1.msra.mxu0 0.0
    %2117 = vmatprep.subr.mxu0 0.0
    %2118 = vmatpush1.msra.mxu0 0.0
    %2119 = vmatprep.subr.mxu0 0.0
    %2120 = vmatpush1.msra.mxu0 0.0
    %2121 = vmatprep.subr.mxu0 0.0
    %2122 = vmatpush1.msra.mxu0 0.0
    %2123 = vmatprep.subr.mxu0 0.0
    %2124 = vmatpush1.msra.mxu0 0.0
    %2125 = vmatprep.subr.mxu0 0.0
    %2126 = vmatpush1.msra.mxu0 0.0
    %2127 = vmatprep.subr.mxu0 0.0
    %2128 = vmatpush1.msra.mxu0 0.0
    %2129 = vmatprep.subr.mxu0 0.0
    %2130 = vmatpush1.msra.mxu0 0.0
    %2131 = vmatprep.subr.mxu0 0.0
    %2132 = vmatpush1.msra.mxu0 0.0
    %2133 = vmatprep.subr.mxu0 0.0
    %2134 = vmatpush1.msra.mxu0 0.0
    %2135 = vmatprep.subr.mxu0 0.0
    %2136 = vmatpush1.msra.mxu0 0.0
    %2137 = vmatprep.subr.mxu0 0.0
    %2138 = vmatpush1.msra.mxu0 0.0
    %2139 = vmatprep.subr.mxu0 0.0
    %2140 = vmatpush1.msra.mxu0 0.0
    %2141 = vmatprep.subr.mxu0 0.0
    %2142 = vmatpush1.msra.mxu0 0.0
    %2143 = vmatprep.subr.mxu0 0.0
    %2144 = vmatpush1.msra.mxu0 0.0
    %2145 = vmatprep.subr.mxu0 0.0
    %2146 = vmatpush1.msra.mxu0 0.0
    %2147 = vmatprep.subr.mxu0 0.0
    %2148 = vmatpush1.msra.mxu0 0.0
    %2149 = vmatprep.subr.mxu0 0.0
    %2150 = vmatpush1.msra.mxu0 0.0
    %2151 = vmatprep.subr.mxu0 0.0
    %2152 = vmatpush1.msra.mxu0 0.0
    %2153 = vmatprep.mubr.f32.mxu0 0.0
    %2154 = vmatmul.mubr.f32.gmra.mrb[0].mxu0 %v2087
    %v2155 = vpop.f32.mrb[0].mxu0
    %v2156 = vadd.f32 %v2084, %v2155
    %v2157 = vpop.f32.mrb[0].mxu0
    %2158 = vdwg.mxu0
    %s2159 = scalar_lea.vmem %s0, 2
    %v2160 = vld [vmem:[%s2159] sm:$0x3]
    %v2162 = vlaneseq
    %v2163 = vshrl.u32 %v2162, 7
    %v2164 = vsub.s32 0, %v2163
    %v2165 = vrot.slane %v2160, %v2164
    %v2166 = vlaneseq
    %v2167 = vshrl.u32 %v2166, 7
    %v2168 = vsub.s32 1, %v2167
    %v2169 = vrot.slane %v2160, %v2168
    %v2172 = vmul.f32 %v23, %v2165
    %v2173 = vmul.f32 %v23, %v2169
    %v2174 = vmul.f32 %v28, %v2165
    %v2175 = vmul.f32 %v28, %v2169
    %v2176 = vmul.f32 %v47, %v2165
    %v2177 = vmul.f32 %v47, %v2169
    %v2178 = vmul.f32 %v51, %v2165
    %v2179 = vmul.f32 %v51, %v2169
    %2184 = vrot.lane.b32.xlu0 %v2176, 112
    %v2185 = vpop.permute.xlu0 %2184
    %2186 = vrot.lane.b32.xlu0 %v2177, 112
    %v2187 = vpop.permute.xlu0 %2186
    %2188 = vrot.lane.b32.xlu0 %v2178, 112
    %v2189 = vpop.permute.xlu0 %2188
    %2190 = vrot.lane.b32.xlu0 %v2179, 112
    %v2191 = vpop.permute.xlu0 %2190
    %v2192 = vsel %vm69, %v2185, %v2187
    %v2193 = vsel %vm69, %v2189, %v2191
    %v2198 = vadd.f32 %v2172, %v2192
    %v2199 = vadd.f32 %v2173, %v2187
    %v2200 = vadd.f32 %v2174, %v2193
    %v2201 = vadd.f32 %v2175, %v2191
    %v2202 = vadd.f32 %v2198, %v83
    %v2203 = vadd.f32 %v2199, %v83
    %v2204 = vadd.f32 %v2200, %v88
    %v2205 = vadd.f32 %v2201, %v88
    %v2206 = vxor.u32 %v2204, 2147483648
    %v2207 = vxor.u32 %v2205, 2147483648
    %v2208 = vmul.f32 %v2206, 1.442695
    %v2209 = vpow.pop %v2208
    %v2210 = vmul.f32 %v2207, 1.442695
    %v2211 = vpow.pop %v2210
    %v2212 = vadd.f32 %v2209, 1.0
    %v2213 = vadd.f32 %v2211, 1.0
    %v2214 = vrcp.pop %v2212
    %v2215 = vmul.f32 1.0, %v2214
    %v2216 = vrcp.pop %v2213
    %v2217 = vmul.f32 1.0, %v2216
    %v2218 = vmul.f32 %v2202, %v2215
    %v2219 = vmul.f32 %v2203, %v2217
    %2220 = vmatprep.subr.mxu0 %v2219
    %2221 = vmatpush1.msra.mxu0 %v2218
    %2222 = vmatprep.subr.mxu0 0.0
    %2223 = vmatpush1.msra.mxu0 0.0
    %2224 = vmatprep.subr.mxu0 0.0
    %2225 = vmatpush1.msra.mxu0 0.0
    %2226 = vmatprep.subr.mxu0 0.0
    %2227 = vmatpush1.msra.mxu0 0.0
    %2228 = vmatprep.subr.mxu0 0.0
    %2229 = vmatpush1.msra.mxu0 0.0
    %2230 = vmatprep.subr.mxu0 0.0
    %2231 = vmatpush1.msra.mxu0 0.0
    %2232 = vmatprep.subr.mxu0 0.0
    %2233 = vmatpush1.msra.mxu0 0.0
    %2234 = vmatprep.subr.mxu0 0.0
    %2235 = vmatpush1.msra.mxu0 0.0
    %2236 = vmatprep.subr.mxu0 0.0
    %2237 = vmatpush1.msra.mxu0 0.0
    %2238 = vmatprep.subr.mxu0 0.0
    %2239 = vmatpush1.msra.mxu0 0.0
    %2240 = vmatprep.subr.mxu0 0.0
    %2241 = vmatpush1.msra.mxu0 0.0
    %2242 = vmatprep.subr.mxu0 0.0
    %2243 = vmatpush1.msra.mxu0 0.0
    %2244 = vmatprep.subr.mxu0 0.0
    %2245 = vmatpush1.msra.mxu0 0.0
    %2246 = vmatprep.subr.mxu0 0.0
    %2247 = vmatpush1.msra.mxu0 0.0
    %2248 = vmatprep.subr.mxu0 0.0
    %2249 = vmatpush1.msra.mxu0 0.0
    %2250 = vmatprep.subr.mxu0 0.0
    %2251 = vmatpush1.msra.mxu0 0.0
    %2252 = vmatprep.subr.mxu0 0.0
    %2253 = vmatpush1.msra.mxu0 0.0
    %2254 = vmatprep.subr.mxu0 0.0
    %2255 = vmatpush1.msra.mxu0 0.0
    %2256 = vmatprep.subr.mxu0 0.0
    %2257 = vmatpush1.msra.mxu0 0.0
    %2258 = vmatprep.subr.mxu0 0.0
    %2259 = vmatpush1.msra.mxu0 0.0
    %2260 = vmatprep.subr.mxu0 0.0
    %2261 = vmatpush1.msra.mxu0 0.0
    %2262 = vmatprep.subr.mxu0 0.0
    %2263 = vmatpush1.msra.mxu0 0.0
    %2264 = vmatprep.subr.mxu0 0.0
    %2265 = vmatpush1.msra.mxu0 0.0
    %2266 = vmatprep.subr.mxu0 0.0
    %2267 = vmatpush1.msra.mxu0 0.0
    %2268 = vmatprep.subr.mxu0 0.0
    %2269 = vmatpush1.msra.mxu0 0.0
    %2270 = vmatprep.subr.mxu0 0.0
    %2271 = vmatpush1.msra.mxu0 0.0
    %2272 = vmatprep.subr.mxu0 0.0
    %2273 = vmatpush1.msra.mxu0 0.0
    %2274 = vmatprep.subr.mxu0 0.0
    %2275 = vmatpush1.msra.mxu0 0.0
    %2276 = vmatprep.subr.mxu0 0.0
    %2277 = vmatpush1.msra.mxu0 0.0
    %2278 = vmatprep.subr.mxu0 0.0
    %2279 = vmatpush1.msra.mxu0 0.0
    %2280 = vmatprep.subr.mxu0 0.0
    %2281 = vmatpush1.msra.mxu0 0.0
    %2282 = vmatprep.subr.mxu0 0.0
    %2283 = vmatpush1.msra.mxu0 0.0
    %2284 = vmatprep.mubr.f32.mxu0 0.0
    %2285 = vmatmul.mubr.f32.gmra.mrb[0].mxu0 %v114
    %v2286 = vpop.f32.mrb[0].mxu0
    %v2287 = vadd.f32 0.0, %v2286
    %v2288 = vpop.f32.mrb[0].mxu0
    %v2289 = vadd.f32 0.0, %v2288
    %2290 = vdwg.mxu0
    %2292 = vrot.lane.b32.xlu0 %v2287, 112
    %v2293 = vpop.permute.xlu0 %2292
    %2294 = vrot.lane.b32.xlu0 %v2287, 96
    %v2295 = vpop.permute.xlu0 %2294
    %2296 = vrot.lane.b32.xlu0 %v2287, 80
    %v2297 = vpop.permute.xlu0 %2296
    %2298 = vrot.lane.b32.xlu0 %v2287, 64
    %v2299 = vpop.permute.xlu0 %2298
    %2300 = vrot.lane.b32.xlu0 %v2287, 48
    %v2301 = vpop.permute.xlu0 %2300
    %2302 = vrot.lane.b32.xlu0 %v2287, 32
    %v2303 = vpop.permute.xlu0 %2302
    %2304 = vrot.lane.b32.xlu0 %v2287, 16
    %v2305 = vpop.permute.xlu0 %2304
    %2307 = vrot.lane.b32.xlu0 %v2289, 112
    %v2308 = vpop.permute.xlu0 %2307
    %2309 = vrot.lane.b32.xlu0 %v2289, 96
    %v2310 = vpop.permute.xlu0 %2309
    %v2311 = vsel %vm207, %v2287, 0
    %v2313 = vsel %vm207, %v2293, 0
    %v2315 = vsel %vm207, %v2295, 0
    %v2317 = vsel %vm207, %v2297, 0
    %v2319 = vsel %vm207, %v2299, 0
    %v2321 = vsel %vm207, %v2301, 0
    %v2323 = vsel %vm207, %v2303, 0
    %v2325 = vsel %vm207, %v2305, 0
    %v2327 = vsel %vm207, %v2289, 0
    %v2329 = vsel %vm207, %v2308, 0
    %v2331 = vsel %vm207, %v2310, 0
    %2333 = vmatprep.subr.mxu0 0.0
    %2334 = vmatpush1.msra.mxu0 %v110
    %2335 = vmatprep.subr.mxu0 0.0
    %2336 = vmatpush1.msra.mxu0 %v111
    %2337 = vmatprep.subr.mxu0 0.0
    %2338 = vmatpush1.msra.mxu0 0.0
    %2339 = vmatprep.subr.mxu0 0.0
    %2340 = vmatpush1.msra.mxu0 0.0
    %2341 = vmatprep.subr.mxu0 0.0
    %2342 = vmatpush1.msra.mxu0 0.0
    %2343 = vmatprep.subr.mxu0 0.0
    %2344 = vmatpush1.msra.mxu0 0.0
    %2345 = vmatprep.subr.mxu0 0.0
    %2346 = vmatpush1.msra.mxu0 0.0
    %2347 = vmatprep.subr.mxu0 0.0
    %2348 = vmatpush1.msra.mxu0 0.0
    %2349 = vmatprep.subr.mxu0 0.0
    %2350 = vmatpush1.msra.mxu0 0.0
    %2351 = vmatprep.subr.mxu0 0.0
    %2352 = vmatpush1.msra.mxu0 0.0
    %2353 = vmatprep.subr.mxu0 0.0
    %2354 = vmatpush1.msra.mxu0 0.0
    %2355 = vmatprep.subr.mxu0 0.0
    %2356 = vmatpush1.msra.mxu0 0.0
    %2357 = vmatprep.subr.mxu0 0.0
    %2358 = vmatpush1.msra.mxu0 0.0
    %2359 = vmatprep.subr.mxu0 0.0
    %2360 = vmatpush1.msra.mxu0 0.0
    %2361 = vmatprep.subr.mxu0 0.0
    %2362 = vmatpush1.msra.mxu0 0.0
    %2363 = vmatprep.subr.mxu0 0.0
    %2364 = vmatpush1.msra.mxu0 0.0
    %2365 = vmatprep.subr.mxu0 0.0
    %2366 = vmatpush1.msra.mxu0 0.0
    %2367 = vmatprep.subr.mxu0 0.0
    %2368 = vmatpush1.msra.mxu0 0.0
    %2369 = vmatprep.subr.mxu0 0.0
    %2370 = vmatpush1.msra.mxu0 0.0
    %2371 = vmatprep.subr.mxu0 0.0
    %2372 = vmatpush1.msra.mxu0 0.0
    %2373 = vmatprep.subr.mxu0 0.0
    %2374 = vmatpush1.msra.mxu0 0.0
    %2375 = vmatprep.subr.mxu0 0.0
    %2376 = vmatpush1.msra.mxu0 0.0
    %2377 = vmatprep.subr.mxu0 0.0
    %2378 = vmatpush1.msra.mxu0 0.0
    %2379 = vmatprep.subr.mxu0 0.0
    %2380 = vmatpush1.msra.mxu0 0.0
    %2381 = vmatprep.subr.mxu0 0.0
    %2382 = vmatpush1.msra.mxu0 0.0
    %2383 = vmatprep.subr.mxu0 0.0
    %2384 = vmatpush1.msra.mxu0 0.0
    %2385 = vmatprep.subr.mxu0 0.0
    %2386 = vmatpush1.msra.mxu0 0.0
    %2387 = vmatprep.subr.mxu0 0.0
    %2388 = vmatpush1.msra.mxu0 0.0
    %2389 = vmatprep.subr.mxu0 0.0
    %2390 = vmatpush1.msra.mxu0 0.0
    %2391 = vmatprep.subr.mxu0 0.0
    %2392 = vmatpush1.msra.mxu0 0.0
    %2393 = vmatprep.subr.mxu0 0.0
    %2394 = vmatpush1.msra.mxu0 0.0
    %2395 = vmatprep.subr.mxu0 0.0
    %2396 = vmatpush1.msra.mxu0 0.0
    %2397 = vmatprep.mubr.f32.mxu0 0.0
    %2398 = vmatmul.mubr.f32.gmra.mrb[0].mxu0 %v2311
    %v2399 = vpop.f32.mrb[0].mxu0
    %v2400 = vadd.f32 0.0, %v2399
    %v2401 = vpop.f32.mrb[0].mxu0
    %2402 = vmatprep.mubr.f32.mxu0 0.0
    %2403 = vmatmul.mubr.f32.gmra.mrb[0].mxu0 %v2313
    %v2404 = vpop.f32.mrb[0].mxu0
    %v2405 = vadd.f32 0.0, %v2404
    %v2406 = vpop.f32.mrb[0].mxu0
    %2407 = vmatprep.mubr.f32.mxu0 0.0
    %2408 = vmatmul.mubr.f32.gmra.mrb[0].mxu0 %v2315
    %v2409 = vpop.f32.mrb[0].mxu0
    %v2410 = vadd.f32 0.0, %v2409
    %v2411 = vpop.f32.mrb[0].mxu0
    %2412 = vmatprep.mubr.f32.mxu0 0.0
    %2413 = vmatmul.mubr.f32.gmra.mrb[0].mxu0 %v2317
    %v2414 = vpop.f32.mrb[0].mxu0
    %v2415 = vadd.f32 0.0, %v2414
    %v2416 = vpop.f32.mrb[0].mxu0
    %2417 = vmatprep.mubr.f32.mxu0 0.0
    %2418 = vmatmul.mubr.f32.gmra.mrb[0].mxu0 %v2319
    %v2419 = vpop.f32.mrb[0].mxu0
    %v2420 = vadd.f32 0.0, %v2419
    %v2421 = vpop.f32.mrb[0].mxu0
    %2422 = vmatprep.mubr.f32.mxu0 0.0
    %2423 = vmatmul.mubr.f32.gmra.mrb[0].mxu0 %v2321
    %v2424 = vpop.f32.mrb[0].mxu0
    %v2425 = vadd.f32 0.0, %v2424
    %v2426 = vpop.f32.mrb[0].mxu0
    %2427 = vmatprep.mubr.f32.mxu0 0.0
    %2428 = vmatmul.mubr.f32.gmra.mrb[0].mxu0 %v2323
    %v2429 = vpop.f32.mrb[0].mxu0
    %v2430 = vadd.f32 0.0, %v2429
    %v2431 = vpop.f32.mrb[0].mxu0
    %2432 = vmatprep.mubr.f32.mxu0 0.0
    %2433 = vmatmul.mubr.f32.gmra.mrb[0].mxu0 %v2325
    %v2434 = vpop.f32.mrb[0].mxu0
    %v2435 = vadd.f32 0.0, %v2434
    %v2436 = vpop.f32.mrb[0].mxu0
    %2437 = vmatprep.mubr.f32.mxu0 0.0
    %2438 = vmatmul.mubr.f32.gmra.mrb[0].mxu0 %v2327
    %v2439 = vpop.f32.mrb[0].mxu0
    %v2440 = vadd.f32 0.0, %v2439
    %v2441 = vpop.f32.mrb[0].mxu0
    %2442 = vmatprep.mubr.f32.mxu0 0.0
    %2443 = vmatmul.mubr.f32.gmra.mrb[0].mxu0 %v2329
    %v2444 = vpop.f32.mrb[0].mxu0
    %v2445 = vadd.f32 0.0, %v2444
    %v2446 = vpop.f32.mrb[0].mxu0
    %2447 = vmatprep.mubr.f32.mxu0 0.0
    %2448 = vmatmul.mubr.f32.gmra.mrb[0].mxu0 %v2331
    %v2449 = vpop.f32.mrb[0].mxu0
    %v2450 = vadd.f32 0.0, %v2449
    %v2451 = vpop.f32.mrb[0].mxu0
    %2452 = vdwg.mxu0
    %2454 = vrot.lane.b32.xlu0 %v2405, 16
    %v2455 = vpop.permute.xlu0 %2454
    %2458 = vrot.lane.b32.xlu0 %v2410, 32
    %v2459 = vpop.permute.xlu0 %2458
    %2462 = vrot.lane.b32.xlu0 %v2415, 48
    %v2463 = vpop.permute.xlu0 %2462
    %2466 = vrot.lane.b32.xlu0 %v2420, 64
    %v2467 = vpop.permute.xlu0 %2466
    %2470 = vrot.lane.b32.xlu0 %v2425, 80
    %v2471 = vpop.permute.xlu0 %2470
    %2474 = vrot.lane.b32.xlu0 %v2430, 96
    %v2475 = vpop.permute.xlu0 %2474
    %2478 = vrot.lane.b32.xlu0 %v2435, 112
    %v2479 = vpop.permute.xlu0 %2478
    %2482 = vrot.lane.b32.xlu0 %v2445, 16
    %v2483 = vpop.permute.xlu0 %2482
    %2486 = vrot.lane.b32.xlu0 %v2450, 32
    %v2487 = vpop.permute.xlu0 %2486
    %v2489 = vsel %vm207, %v2400, %v2455
    %v2490 = vsel %vm387, %v2489, %v2459
    %v2491 = vsel %vm389, %v2490, %v2463
    %v2492 = vsel %vm391, %v2491, %v2467
    %v2493 = vsel %vm393, %v2492, %v2471
    %v2494 = vsel %vm395, %v2493, %v2475
    %v2495 = vsel %vm69, %v2494, %v2479
    %v2496 = vsel %vm207, %v2440, %v2483
    %v2497 = vsel %vm387, %v2496, %v2487
    %v2498 = vadd.f32 %v2495, %v403
    %v2499 = vadd.f32 %v2497, %v403
    %v2500 = vmax.f32 %v2498, 0.0
    %v2501 = vmax.f32 %v2499, 0.0
    %2504 = vrot.lane.b32.xlu0 %v2500, 112
    %v2505 = vpop.permute.xlu0 %2504
    %2506 = vrot.lane.b32.xlu0 %v2501, 112
    %v2507 = vpop.permute.xlu0 %2506
    %v2508 = vsel %vm69, %v2505, %v2507
    %2511 = vmatprep.subr.mxu0 %v2507
    %2512 = vmatpush1.msra.mxu0 %v2508
    %2513 = vmatprep.subr.mxu0 0.0
    %2514 = vmatpush1.msra.mxu0 0.0
    %2515 = vmatprep.subr.mxu0 0.0
    %2516 = vmatpush1.msra.mxu0 0.0
    %2517 = vmatprep.subr.mxu0 0.0
    %2518 = vmatpush1.msra.mxu0 0.0
    %2519 = vmatprep.subr.mxu0 0.0
    %2520 = vmatpush1.msra.mxu0 0.0
    %2521 = vmatprep.subr.mxu0 0.0
    %2522 = vmatpush1.msra.mxu0 0.0
    %2523 = vmatprep.subr.mxu0 0.0
    %2524 = vmatpush1.msra.mxu0 0.0
    %2525 = vmatprep.subr.mxu0 0.0
    %2526 = vmatpush1.msra.mxu0 0.0
    %2527 = vmatprep.subr.mxu0 0.0
    %2528 = vmatpush1.msra.mxu0 0.0
    %2529 = vmatprep.subr.mxu0 0.0
    %2530 = vmatpush1.msra.mxu0 0.0
    %2531 = vmatprep.subr.mxu0 0.0
    %2532 = vmatpush1.msra.mxu0 0.0
    %2533 = vmatprep.subr.mxu0 0.0
    %2534 = vmatpush1.msra.mxu0 0.0
    %2535 = vmatprep.subr.mxu0 0.0
    %2536 = vmatpush1.msra.mxu0 0.0
    %2537 = vmatprep.subr.mxu0 0.0
    %2538 = vmatpush1.msra.mxu0 0.0
    %2539 = vmatprep.subr.mxu0 0.0
    %2540 = vmatpush1.msra.mxu0 0.0
    %2541 = vmatprep.subr.mxu0 0.0
    %2542 = vmatpush1.msra.mxu0 0.0
    %2543 = vmatprep.subr.mxu0 0.0
    %2544 = vmatpush1.msra.mxu0 0.0
    %2545 = vmatprep.subr.mxu0 0.0
    %2546 = vmatpush1.msra.mxu0 0.0
    %2547 = vmatprep.subr.mxu0 0.0
    %2548 = vmatpush1.msra.mxu0 0.0
    %2549 = vmatprep.subr.mxu0 0.0
    %2550 = vmatpush1.msra.mxu0 0.0
    %2551 = vmatprep.subr.mxu0 0.0
    %2552 = vmatpush1.msra.mxu0 0.0
    %2553 = vmatprep.subr.mxu0 0.0
    %2554 = vmatpush1.msra.mxu0 0.0
    %2555 = vmatprep.subr.mxu0 0.0
    %2556 = vmatpush1.msra.mxu0 0.0
    %2557 = vmatprep.subr.mxu0 0.0
    %2558 = vmatpush1.msra.mxu0 0.0
    %2559 = vmatprep.subr.mxu0 0.0
    %2560 = vmatpush1.msra.mxu0 0.0
    %2561 = vmatprep.subr.mxu0 0.0
    %2562 = vmatpush1.msra.mxu0 0.0
    %2563 = vmatprep.subr.mxu0 0.0
    %2564 = vmatpush1.msra.mxu0 0.0
    %2565 = vmatprep.subr.mxu0 0.0
    %2566 = vmatpush1.msra.mxu0 0.0
    %2567 = vmatprep.subr.mxu0 0.0
    %2568 = vmatpush1.msra.mxu0 0.0
    %2569 = vmatprep.subr.mxu0 0.0
    %2570 = vmatpush1.msra.mxu0 0.0
    %2571 = vmatprep.subr.mxu0 0.0
    %2572 = vmatpush1.msra.mxu0 0.0
    %2573 = vmatprep.subr.mxu0 0.0
    %2574 = vmatpush1.msra.mxu0 0.0
    %2575 = vmatprep.mubr.f32.mxu0 0.0
    %2576 = vmatmul.mubr.f32.gmra.mrb[0].mxu0 %v438
    %v2577 = vpop.f32.mrb[0].mxu0
    %v2578 = vadd.f32 0.0, %v2577
    %v2579 = vpop.f32.mrb[0].mxu0
    %v2580 = vadd.f32 0.0, %v2579
    %2581 = vmatprep.mubr.f32.mxu0 0.0
    %2582 = vmatmul.mubr.f32.gmra.mrb[0].mxu0 %v440
    %v2583 = vpop.f32.mrb[0].mxu0
    %v2584 = vadd.f32 0.0, %v2583
    %v2585 = vpop.f32.mrb[0].mxu0
    %v2586 = vadd.f32 0.0, %v2585
    %2587 = vmatprep.mubr.f32.mxu0 0.0
    %2588 = vmatmul.mubr.f32.gmra.mrb[0].mxu0 %v442
    %v2589 = vpop.f32.mrb[0].mxu0
    %v2590 = vadd.f32 0.0, %v2589
    %v2591 = vpop.f32.mrb[0].mxu0
    %v2592 = vadd.f32 0.0, %v2591
    %2593 = vmatprep.mubr.f32.mxu0 0.0
    %2594 = vmatmul.mubr.f32.gmra.mrb[0].mxu0 %v444
    %v2595 = vpop.f32.mrb[0].mxu0
    %v2596 = vadd.f32 0.0, %v2595
    %v2597 = vpop.f32.mrb[0].mxu0
    %v2598 = vadd.f32 0.0, %v2597
    %2599 = vdwg.mxu0
    %2600 = vmatprep.subr.mxu0 %v2501
    %2601 = vmatpush1.msra.mxu0 %v2500
    %2602 = vmatprep.subr.mxu0 0.0
    %2603 = vmatpush1.msra.mxu0 0.0
    %2604 = vmatprep.subr.mxu0 0.0
    %2605 = vmatpush1.msra.mxu0 0.0
    %2606 = vmatprep.subr.mxu0 0.0
    %2607 = vmatpush1.msra.mxu0 0.0
    %2608 = vmatprep.subr.mxu0 0.0
    %2609 = vmatpush1.msra.mxu0 0.0
    %2610 = vmatprep.subr.mxu0 0.0
    %2611 = vmatpush1.msra.mxu0 0.0
    %2612 = vmatprep.subr.mxu0 0.0
    %2613 = vmatpush1.msra.mxu0 0.0
    %2614 = vmatprep.subr.mxu0 0.0
    %2615 = vmatpush1.msra.mxu0 0.0
    %2616 = vmatprep.subr.mxu0 0.0
    %2617 = vmatpush1.msra.mxu0 0.0
    %2618 = vmatprep.subr.mxu0 0.0
    %2619 = vmatpush1.msra.mxu0 0.0
    %2620 = vmatprep.subr.mxu0 0.0
    %2621 = vmatpush1.msra.mxu0 0.0
    %2622 = vmatprep.subr.mxu0 0.0
    %2623 = vmatpush1.msra.mxu0 0.0
    %2624 = vmatprep.subr.mxu0 0.0
    %2625 = vmatpush1.msra.mxu0 0.0
    %2626 = vmatprep.subr.mxu0 0.0
    %2627 = vmatpush1.msra.mxu0 0.0
    %2628 = vmatprep.subr.mxu0 0.0
    %2629 = vmatpush1.msra.mxu0 0.0
    %2630 = vmatprep.subr.mxu0 0.0
    %2631 = vmatpush1.msra.mxu0 0.0
    %2632 = vmatprep.subr.mxu0 0.0
    %2633 = vmatpush1.msra.mxu0 0.0
    %2634 = vmatprep.subr.mxu0 0.0
    %2635 = vmatpush1.msra.mxu0 0.0
    %2636 = vmatprep.subr.mxu0 0.0
    %2637 = vmatpush1.msra.mxu0 0.0
    %2638 = vmatprep.subr.mxu0 0.0
    %2639 = vmatpush1.msra.mxu0 0.0
    %2640 = vmatprep.subr.mxu0 0.0
    %2641 = vmatpush1.msra.mxu0 0.0
    %2642 = vmatprep.subr.mxu0 0.0
    %2643 = vmatpush1.msra.mxu0 0.0
    %2644 = vmatprep.subr.mxu0 0.0
    %2645 = vmatpush1.msra.mxu0 0.0
    %2646 = vmatprep.subr.mxu0 0.0
    %2647 = vmatpush1.msra.mxu0 0.0
    %2648 = vmatprep.subr.mxu0 0.0
    %2649 = vmatpush1.msra.mxu0 0.0
    %2650 = vmatprep.subr.mxu0 0.0
    %2651 = vmatpush1.msra.mxu0 0.0
    %2652 = vmatprep.subr.mxu0 0.0
    %2653 = vmatpush1.msra.mxu0 0.0
    %2654 = vmatprep.subr.mxu0 0.0
    %2655 = vmatpush1.msra.mxu0 0.0
    %2656 = vmatprep.subr.mxu0 0.0
    %2657 = vmatpush1.msra.mxu0 0.0
    %2658 = vmatprep.subr.mxu0 0.0
    %2659 = vmatpush1.msra.mxu0 0.0
    %2660 = vmatprep.subr.mxu0 0.0
    %2661 = vmatpush1.msra.mxu0 0.0
    %2662 = vmatprep.subr.mxu0 0.0
    %2663 = vmatpush1.msra.mxu0 0.0
    %2664 = vmatprep.mubr.f32.mxu0 0.0
    %2665 = vmatmul.mubr.f32.gmra.mrb[0].mxu0 %v535
    %v2666 = vpop.f32.mrb[0].mxu0
    %v2667 = vadd.f32 %v2578, %v2666
    %v2668 = vpop.f32.mrb[0].mxu0
    %v2669 = vadd.f32 %v2580, %v2668
    %2670 = vmatprep.mubr.f32.mxu0 0.0
    %2671 = vmatmul.mubr.f32.gmra.mrb[0].mxu0 %v537
    %v2672 = vpop.f32.mrb[0].mxu0
    %v2673 = vadd.f32 %v2584, %v2672
    %v2674 = vpop.f32.mrb[0].mxu0
    %v2675 = vadd.f32 %v2586, %v2674
    %2676 = vmatprep.mubr.f32.mxu0 0.0
    %2677 = vmatmul.mubr.f32.gmra.mrb[0].mxu0 %v539
    %v2678 = vpop.f32.mrb[0].mxu0
    %v2679 = vadd.f32 %v2590, %v2678
    %v2680 = vpop.f32.mrb[0].mxu0
    %v2681 = vadd.f32 %v2592, %v2680
    %2682 = vmatprep.mubr.f32.mxu0 0.0
    %2683 = vmatmul.mubr.f32.gmra.mrb[0].mxu0 %v541
    %v2684 = vpop.f32.mrb[0].mxu0
    %v2685 = vadd.f32 %v2596, %v2684
    %v2686 = vpop.f32.mrb[0].mxu0
    %v2687 = vadd.f32 %v2598, %v2686
    %2688 = vdwg.mxu0
    %v2689 = vadd.f32 %v2667, %v635
    %v2690 = vadd.f32 %v2669, %v635
    %v2691 = vadd.f32 %v2673, %v640
    %v2692 = vadd.f32 %v2675, %v640
    %v2693 = vadd.f32 %v2679, %v645
    %v2694 = vadd.f32 %v2681, %v645
    %v2695 = vadd.f32 %v2685, %v650
    %v2696 = vadd.f32 %v2687, %v650
    %v2697 = vxor.u32 %v2693, 2147483648
    %v2698 = vxor.u32 %v2694, 2147483648
    %v2699 = vxor.u32 %v2695, 2147483648
    %v2700 = vxor.u32 %v2696, 2147483648
    %v2701 = vmul.f32 %v2697, 1.442695
    %v2702 = vpow.pop %v2701
    %v2703 = vmul.f32 %v2698, 1.442695
    %v2704 = vpow.pop %v2703
    %v2705 = vmul.f32 %v2699, 1.442695
    %v2706 = vpow.pop %v2705
    %v2707 = vmul.f32 %v2700, 1.442695
    %v2708 = vpow.pop %v2707
    %v2709 = vadd.f32 %v2702, 1.0
    %v2710 = vadd.f32 %v2704, 1.0
    %v2711 = vadd.f32 %v2706, 1.0
    %v2712 = vadd.f32 %v2708, 1.0
    %v2713 = vrcp.pop %v2709
    %v2714 = vmul.f32 1.0, %v2713
    %v2715 = vrcp.pop %v2710
    %v2716 = vmul.f32 1.0, %v2715
    %v2717 = vrcp.pop %v2711
    %v2718 = vmul.f32 1.0, %v2717
    %v2719 = vrcp.pop %v2712
    %v2720 = vmul.f32 1.0, %v2719
    %v2721 = vmul.f32 %v2689, %v2714
    %v2722 = vmul.f32 %v2690, %v2716
    %v2723 = vmul.f32 %v2691, %v2718
    %v2724 = vmul.f32 %v2692, %v2720
    %v2725 = vadd.f32 %v2721, %v2723
    %v2726 = vrot.slane %v2725, 4
    %v2727 = vadd.f32 %v2725, %v2726
    %v2728 = vrot.slane %v2727, 2
    %v2729 = vadd.f32 %v2727, %v2728
    %v2730 = vrot.slane %v2729, 1
    %v2731 = vadd.f32 %v2729, %v2730
    %v2732 = vsel %vm387, %v2722, 0.0
    %v2733 = vsel %vm387, %v2724, 0.0
    %v2734 = vadd.f32 %v2732, %v2733
    %v2735 = vrot.slane %v2734, 4
    %v2736 = vadd.f32 %v2734, %v2735
    %v2737 = vrot.slane %v2736, 2
    %v2738 = vadd.f32 %v2736, %v2737
    %v2739 = vrot.slane %v2738, 1
    %v2740 = vadd.f32 %v2738, %v2739
    %v2741 = vmul.f32 %v2721, %v2721
    %v2742 = vmul.f32 %v2722, %v2722
    %v2743 = vmul.f32 %v2723, %v2723
    %v2744 = vmul.f32 %v2724, %v2724
    %v2745 = vadd.f32 %v2741, %v2743
    %v2746 = vrot.slane %v2745, 4
    %v2747 = vadd.f32 %v2745, %v2746
    %v2748 = vrot.slane %v2747, 2
    %v2749 = vadd.f32 %v2747, %v2748
    %v2750 = vrot.slane %v2749, 1
    %v2751 = vadd.f32 %v2749, %v2750
    %v2752 = vsel %vm387, %v2742, 0.0
    %v2753 = vsel %vm387, %v2744, 0.0
    %v2754 = vadd.f32 %v2752, %v2753
    %v2755 = vrot.slane %v2754, 4
    %v2756 = vadd.f32 %v2754, %v2755
    %v2757 = vrot.slane %v2756, 2
    %v2758 = vadd.f32 %v2756, %v2757
    %v2759 = vrot.slane %v2758, 1
    %v2760 = vadd.f32 %v2758, %v2759
    %v2761 = vsel %vm756, %v2731, %v2751
    %v2762 = vsel %vm756, %v2740, %v2760
    %v2764 = vsel %vm387, %v2762, 0
    %2766 = vmatprep.subr.mxu0 0.0
    %2767 = vmatpush1.msra.mxu0 %v696
    %2768 = vmatprep.subr.mxu0 0.0
    %2769 = vmatpush1.msra.mxu0 %v697
    %2770 = vmatprep.subr.mxu0 0.0
    %2771 = vmatpush1.msra.mxu0 %v698
    %2772 = vmatprep.subr.mxu0 0.0
    %2773 = vmatpush1.msra.mxu0 %v699
    %2774 = vmatprep.subr.mxu0 0.0
    %2775 = vmatpush1.msra.mxu0 %v700
    %2776 = vmatprep.subr.mxu0 0.0
    %2777 = vmatpush1.msra.mxu0 %v701
    %2778 = vmatprep.subr.mxu0 0.0
    %2779 = vmatpush1.msra.mxu0 %v702
    %2780 = vmatprep.subr.mxu0 0.0
    %2781 = vmatpush1.msra.mxu0 %v703
    %2782 = vmatprep.subr.mxu0 0.0
    %2783 = vmatpush1.msra.mxu0 %v704
    %2784 = vmatprep.subr.mxu0 0.0
    %2785 = vmatpush1.msra.mxu0 %v705
    %2786 = vmatprep.subr.mxu0 0.0
    %2787 = vmatpush1.msra.mxu0 %v706
    %2788 = vmatprep.subr.mxu0 0.0
    %2789 = vmatpush1.msra.mxu0 %v707
    %2790 = vmatprep.subr.mxu0 0.0
    %2791 = vmatpush1.msra.mxu0 %v708
    %2792 = vmatprep.subr.mxu0 0.0
    %2793 = vmatpush1.msra.mxu0 %v709
    %2794 = vmatprep.subr.mxu0 0.0
    %2795 = vmatpush1.msra.mxu0 %v710
    %2796 = vmatprep.subr.mxu0 0.0
    %2797 = vmatpush1.msra.mxu0 %v711
    %2798 = vmatprep.subr.mxu0 0.0
    %2799 = vmatpush1.msra.mxu0 %v712
    %2800 = vmatprep.subr.mxu0 0.0
    %2801 = vmatpush1.msra.mxu0 %v713
    %2802 = vmatprep.subr.mxu0 0.0
    %2803 = vmatpush1.msra.mxu0 %v714
    %2804 = vmatprep.subr.mxu0 0.0
    %2805 = vmatpush1.msra.mxu0 %v715
    %2806 = vmatprep.subr.mxu0 0.0
    %2807 = vmatpush1.msra.mxu0 0.0
    %2808 = vmatprep.subr.mxu0 0.0
    %2809 = vmatpush1.msra.mxu0 0.0
    %2810 = vmatprep.subr.mxu0 0.0
    %2811 = vmatpush1.msra.mxu0 0.0
    %2812 = vmatprep.subr.mxu0 0.0
    %2813 = vmatpush1.msra.mxu0 0.0
    %2814 = vmatprep.subr.mxu0 0.0
    %2815 = vmatpush1.msra.mxu0 0.0
    %2816 = vmatprep.subr.mxu0 0.0
    %2817 = vmatpush1.msra.mxu0 0.0
    %2818 = vmatprep.subr.mxu0 0.0
    %2819 = vmatpush1.msra.mxu0 0.0
    %2820 = vmatprep.subr.mxu0 0.0
    %2821 = vmatpush1.msra.mxu0 0.0
    %2822 = vmatprep.subr.mxu0 0.0
    %2823 = vmatpush1.msra.mxu0 0.0
    %2824 = vmatprep.subr.mxu0 0.0
    %2825 = vmatpush1.msra.mxu0 0.0
    %2826 = vmatprep.subr.mxu0 0.0
    %2827 = vmatpush1.msra.mxu0 0.0
    %2828 = vmatprep.subr.mxu0 0.0
    %2829 = vmatpush1.msra.mxu0 0.0
    %2830 = vmatprep.mubr.f32.mxu0 %v2764
    %2831 = vmatmul.mubr.f32.gmra.mrb[0].mxu0 %v2761
    %v2832 = vpop.f32.mrb[0].mxu0
    %v2833 = vadd.f32 0.0, %v2832
    %v2834 = vpop.f32.mrb[0].mxu0
    %2835 = vdwg.mxu0
    %v2837 = vsel %vm832, %v2833, 0
    %2839 = vmatprep.subr.mxu0 %v717
    %2840 = vmatpush1.msra.mxu0 %v716
    %2841 = vmatprep.subr.mxu0 %v841
    %2842 = vmatpush1.msra.mxu0 %v838
    %2843 = vmatprep.subr.mxu0 0.0
    %2844 = vmatpush1.msra.mxu0 0.0
    %2845 = vmatprep.subr.mxu0 0.0
    %2846 = vmatpush1.msra.mxu0 0.0
    %2847 = vmatprep.subr.mxu0 0.0
    %2848 = vmatpush1.msra.mxu0 0.0
    %2849 = vmatprep.subr.mxu0 0.0
    %2850 = vmatpush1.msra.mxu0 0.0
    %2851 = vmatprep.subr.mxu0 0.0
    %2852 = vmatpush1.msra.mxu0 0.0
    %2853 = vmatprep.subr.mxu0 0.0
    %2854 = vmatpush1.msra.mxu0 0.0
    %2855 = vmatprep.subr.mxu0 0.0
    %2856 = vmatpush1.msra.mxu0 0.0
    %2857 = vmatprep.subr.mxu0 0.0
    %2858 = vmatpush1.msra.mxu0 0.0
    %2859 = vmatprep.subr.mxu0 0.0
    %2860 = vmatpush1.msra.mxu0 0.0
    %2861 = vmatprep.subr.mxu0 0.0
    %2862 = vmatpush1.msra.mxu0 0.0
    %2863 = vmatprep.subr.mxu0 0.0
    %2864 = vmatpush1.msra.mxu0 0.0
    %2865 = vmatprep.subr.mxu0 0.0
    %2866 = vmatpush1.msra.mxu0 0.0
    %2867 = vmatprep.subr.mxu0 0.0
    %2868 = vmatpush1.msra.mxu0 0.0
    %2869 = vmatprep.subr.mxu0 0.0
    %2870 = vmatpush1.msra.mxu0 0.0
    %2871 = vmatprep.subr.mxu0 0.0
    %2872 = vmatpush1.msra.mxu0 0.0
    %2873 = vmatprep.subr.mxu0 0.0
    %2874 = vmatpush1.msra.mxu0 0.0
    %2875 = vmatprep.subr.mxu0 0.0
    %2876 = vmatpush1.msra.mxu0 0.0
    %2877 = vmatprep.subr.mxu0 0.0
    %2878 = vmatpush1.msra.mxu0 0.0
    %2879 = vmatprep.subr.mxu0 0.0
    %2880 = vmatpush1.msra.mxu0 0.0
    %2881 = vmatprep.subr.mxu0 0.0
    %2882 = vmatpush1.msra.mxu0 0.0
    %2883 = vmatprep.subr.mxu0 0.0
    %2884 = vmatpush1.msra.mxu0 0.0
    %2885 = vmatprep.subr.mxu0 0.0
    %2886 = vmatpush1.msra.mxu0 0.0
    %2887 = vmatprep.subr.mxu0 0.0
    %2888 = vmatpush1.msra.mxu0 0.0
    %2889 = vmatprep.subr.mxu0 0.0
    %2890 = vmatpush1.msra.mxu0 0.0
    %2891 = vmatprep.subr.mxu0 0.0
    %2892 = vmatpush1.msra.mxu0 0.0
    %2893 = vmatprep.subr.mxu0 0.0
    %2894 = vmatpush1.msra.mxu0 0.0
    %2895 = vmatprep.subr.mxu0 0.0
    %2896 = vmatpush1.msra.mxu0 0.0
    %2897 = vmatprep.subr.mxu0 0.0
    %2898 = vmatpush1.msra.mxu0 0.0
    %2899 = vmatprep.subr.mxu0 0.0
    %2900 = vmatpush1.msra.mxu0 0.0
    %2901 = vmatprep.subr.mxu0 0.0
    %2902 = vmatpush1.msra.mxu0 0.0
    %2903 = vmatprep.mubr.f32.mxu0 0.0
    %2904 = vmatmul.mubr.f32.gmra.mrb[0].mxu0 %v2837
    %v2905 = vpop.f32.mrb[0].mxu0
    %v2906 = vadd.f32 0.0, %v2905
    %v2907 = vpop.f32.mrb[0].mxu0
    %v2908 = vadd.f32 0.0, %v2907
    %2909 = vdwg.mxu0
    %v2910 = vmul.f32 %v2906, 0.00390625
    %v2911 = vmul.f32 %v2908, 0.00390625
    %v2912 = vmul.f32 %v2910, %v2910
    %v2913 = vmul.f32 %v2911, %v2911
    %v2916 = vrot.slane %v2912, 7
    %v2917 = vrot.slane %v2913, 7
    %v2920 = vsub.f32 %v2910, %v2916
    %v2921 = vsub.f32 %v2911, %v2917
    %v2922 = vlaneseq
    %v2923 = vshrl.u32 %v2922, 7
    %v2924 = vsub.s32 0, %v2923
    %v2925 = vrot.slane %v2910, %v2924
    %v2926 = vlaneseq
    %v2927 = vshrl.u32 %v2926, 7
    %v2928 = vsub.s32 0, %v2927
    %v2929 = vrot.slane %v2911, %v2928
    %v2930 = vsub.f32 %v2721, %v2925
    %v2931 = vsub.f32 %v2722, %v2929
    %v2932 = vsub.f32 %v2723, %v2925
    %v2933 = vsub.f32 %v2724, %v2929
    %v2934 = vadd.f32 %v2920, 1e-05
    %v2935 = vadd.f32 %v2921, 1e-05
    %v2936 = vrsqrt.pop %v2934
    %v2937 = vrsqrt.pop %v2935
    %v2938 = vlaneseq
    %v2939 = vshrl.u32 %v2938, 7
    %v2940 = vsub.s32 1, %v2939
    %v2941 = vrot.slane %v2936, %v2940
    %v2942 = vlaneseq
    %v2943 = vshrl.u32 %v2942, 7
    %v2944 = vsub.s32 1, %v2943
    %v2945 = vrot.slane %v2937, %v2944
    %v2946 = vmul.f32 %v2930, %v2941
    %v2947 = vmul.f32 %v2931, %v2945
    %v2948 = vmul.f32 %v2932, %v2941
    %v2949 = vmul.f32 %v2933, %v2945
    %v2950 = vmul.f32 %v2946, %v688
    %v2951 = vmul.f32 %v2947, %v689
    %v2952 = vmul.f32 %v2948, %v690
    %v2953 = vmul.f32 %v2949, %v691
    %v2954 = vadd.f32 %v2950, %v692
    %v2955 = vadd.f32 %v2951, %v693
    %v2956 = vadd.f32 %v2952, %v694
    %v2957 = vadd.f32 %v2953, %v695
    %2962 = vrot.lane.b32.xlu0 %v2954, 112
    %v2963 = vpop.permute.xlu0 %2962
    %2964 = vrot.lane.b32.xlu0 %v2955, 112
    %v2965 = vpop.permute.xlu0 %2964
    %2966 = vrot.lane.b32.xlu0 %v2956, 112
    %v2967 = vpop.permute.xlu0 %2966
    %2968 = vrot.lane.b32.xlu0 %v2957, 112
    %v2969 = vpop.permute.xlu0 %2968
    %v2970 = vsel %vm69, %v2963, %v2965
    %v2971 = vsel %vm69, %v2967, %v2969
    %2976 = vmatprep.subr.mxu0 %v2965
    %2977 = vmatpush1.msra.mxu0 %v2970
    %2978 = vmatprep.subr.mxu0 %v2969
    %2979 = vmatpush1.msra.mxu0 %v2971
    %2980 = vmatprep.subr.mxu0 0.0
    %2981 = vmatpush1.msra.mxu0 0.0
    %2982 = vmatprep.subr.mxu0 0.0
    %2983 = vmatpush1.msra.mxu0 0.0
    %2984 = vmatprep.subr.mxu0 0.0
    %2985 = vmatpush1.msra.mxu0 0.0
    %2986 = vmatprep.subr.mxu0 0.0
    %2987 = vmatpush1.msra.mxu0 0.0
    %2988 = vmatprep.subr.mxu0 0.0
    %2989 = vmatpush1.msra.mxu0 0.0
    %2990 = vmatprep.subr.mxu0 0.0
    %2991 = vmatpush1.msra.mxu0 0.0
    %2992 = vmatprep.subr.mxu0 0.0
    %2993 = vmatpush1.msra.mxu0 0.0
    %2994 = vmatprep.subr.mxu0 0.0
    %2995 = vmatpush1.msra.mxu0 0.0
    %2996 = vmatprep.subr.mxu0 0.0
    %2997 = vmatpush1.msra.mxu0 0.0
    %2998 = vmatprep.subr.mxu0 0.0
    %2999 = vmatpush1.msra.mxu0 0.0
    %3000 = vmatprep.subr.mxu0 0.0
    %3001 = vmatpush1.msra.mxu0 0.0
    %3002 = vmatprep.subr.mxu0 0.0
    %3003 = vmatpush1.msra.mxu0 0.0
    %3004 = vmatprep.subr.mxu0 0.0
    %3005 = vmatpush1.msra.mxu0 0.0
    %3006 = vmatprep.subr.mxu0 0.0
    %3007 = vmatpush1.msra.mxu0 0.0
    %3008 = vmatprep.subr.mxu0 0.0
    %3009 = vmatpush1.msra.mxu0 0.0
    %3010 = vmatprep.subr.mxu0 0.0
    %3011 = vmatpush1.msra.mxu0 0.0
    %3012 = vmatprep.subr.mxu0 0.0
    %3013 = vmatpush1.msra.mxu0 0.0
    %3014 = vmatprep.subr.mxu0 0.0
    %3015 = vmatpush1.msra.mxu0 0.0
    %3016 = vmatprep.subr.mxu0 0.0
    %3017 = vmatpush1.msra.mxu0 0.0
    %3018 = vmatprep.subr.mxu0 0.0
    %3019 = vmatpush1.msra.mxu0 0.0
    %3020 = vmatprep.subr.mxu0 0.0
    %3021 = vmatpush1.msra.mxu0 0.0
    %3022 = vmatprep.subr.mxu0 0.0
    %3023 = vmatpush1.msra.mxu0 0.0
    %3024 = vmatprep.subr.mxu0 0.0
    %3025 = vmatpush1.msra.mxu0 0.0
    %3026 = vmatprep.subr.mxu0 0.0
    %3027 = vmatpush1.msra.mxu0 0.0
    %3028 = vmatprep.subr.mxu0 0.0
    %3029 = vmatpush1.msra.mxu0 0.0
    %3030 = vmatprep.subr.mxu0 0.0
    %3031 = vmatpush1.msra.mxu0 0.0
    %3032 = vmatprep.subr.mxu0 0.0
    %3033 = vmatpush1.msra.mxu0 0.0
    %3034 = vmatprep.subr.mxu0 0.0
    %3035 = vmatpush1.msra.mxu0 0.0
    %3036 = vmatprep.subr.mxu0 0.0
    %3037 = vmatpush1.msra.mxu0 0.0
    %3038 = vmatprep.subr.mxu0 0.0
    %3039 = vmatpush1.msra.mxu0 0.0
    %3040 = vmatprep.mubr.f32.mxu0 0.0
    %3041 = vmatmul.mubr.f32.gmra.mrb[0].mxu0 %v990
    %v3042 = vpop.f32.mrb[0].mxu0
    %v3043 = vadd.f32 0.0, %v3042
    %v3044 = vpop.f32.mrb[0].mxu0
    %v3045 = vadd.f32 0.0, %v3044
    %3046 = vmatprep.mubr.f32.mxu0 0.0
    %3047 = vmatmul.mubr.f32.gmra.mrb[0].mxu0 %v992
    %v3048 = vpop.f32.mrb[0].mxu0
    %v3049 = vadd.f32 0.0, %v3048
    %v3050 = vpop.f32.mrb[0].mxu0
    %v3051 = vadd.f32 0.0, %v3050
    %3052 = vdwg.mxu0
    %3053 = vmatprep.subr.mxu0 %v2955
    %3054 = vmatpush1.msra.mxu0 %v2954
    %3055 = vmatprep.subr.mxu0 %v2957
    %3056 = vmatpush1.msra.mxu0 %v2956
    %3057 = vmatprep.subr.mxu0 0.0
    %3058 = vmatpush1.msra.mxu0 0.0
    %3059 = vmatprep.subr.mxu0 0.0
    %3060 = vmatpush1.msra.mxu0 0.0
    %3061 = vmatprep.subr.mxu0 0.0
    %3062 = vmatpush1.msra.mxu0 0.0
    %3063 = vmatprep.subr.mxu0 0.0
    %3064 = vmatpush1.msra.mxu0 0.0
    %3065 = vmatprep.subr.mxu0 0.0
    %3066 = vmatpush1.msra.mxu0 0.0
    %3067 = vmatprep.subr.mxu0 0.0
    %3068 = vmatpush1.msra.mxu0 0.0
    %3069 = vmatprep.subr.mxu0 0.0
    %3070 = vmatpush1.msra.mxu0 0.0
    %3071 = vmatprep.subr.mxu0 0.0
    %3072 = vmatpush1.msra.mxu0 0.0
    %3073 = vmatprep.subr.mxu0 0.0
    %3074 = vmatpush1.msra.mxu0 0.0
    %3075 = vmatprep.subr.mxu0 0.0
    %3076 = vmatpush1.msra.mxu0 0.0
    %3077 = vmatprep.subr.mxu0 0.0
    %3078 = vmatpush1.msra.mxu0 0.0
    %3079 = vmatprep.subr.mxu0 0.0
    %3080 = vmatpush1.msra.mxu0 0.0
    %3081 = vmatprep.subr.mxu0 0.0
    %3082 = vmatpush1.msra.mxu0 0.0
    %3083 = vmatprep.subr.mxu0 0.0
    %3084 = vmatpush1.msra.mxu0 0.0
    %3085 = vmatprep.subr.mxu0 0.0
    %3086 = vmatpush1.msra.mxu0 0.0
    %3087 = vmatprep.subr.mxu0 0.0
    %3088 = vmatpush1.msra.mxu0 0.0
    %3089 = vmatprep.subr.mxu0 0.0
    %3090 = vmatpush1.msra.mxu0 0.0
    %3091 = vmatprep.subr.mxu0 0.0
    %3092 = vmatpush1.msra.mxu0 0.0
    %3093 = vmatprep.subr.mxu0 0.0
    %3094 = vmatpush1.msra.mxu0 0.0
    %3095 = vmatprep.subr.mxu0 0.0
    %3096 = vmatpush1.msra.mxu0 0.0
    %3097 = vmatprep.subr.mxu0 0.0
    %3098 = vmatpush1.msra.mxu0 0.0
    %3099 = vmatprep.subr.mxu0 0.0
    %3100 = vmatpush1.msra.mxu0 0.0
    %3101 = vmatprep.subr.mxu0 0.0
    %3102 = vmatpush1.msra.mxu0 0.0
    %3103 = vmatprep.subr.mxu0 0.0
    %3104 = vmatpush1.msra.mxu0 0.0
    %3105 = vmatprep.subr.mxu0 0.0
    %3106 = vmatpush1.msra.mxu0 0.0
    %3107 = vmatprep.subr.mxu0 0.0
    %3108 = vmatpush1.msra.mxu0 0.0
    %3109 = vmatprep.subr.mxu0 0.0
    %3110 = vmatpush1.msra.mxu0 0.0
    %3111 = vmatprep.subr.mxu0 0.0
    %3112 = vmatpush1.msra.mxu0 0.0
    %3113 = vmatprep.subr.mxu0 0.0
    %3114 = vmatpush1.msra.mxu0 0.0
    %3115 = vmatprep.subr.mxu0 0.0
    %3116 = vmatpush1.msra.mxu0 0.0
    %3117 = vmatprep.mubr.f32.mxu0 0.0
    %3118 = vmatmul.mubr.f32.gmra.mrb[0].mxu0 %v1071
    %v3119 = vpop.f32.mrb[0].mxu0
    %v3120 = vadd.f32 %v3043, %v3119
    %v3121 = vpop.f32.mrb[0].mxu0
    %v3122 = vadd.f32 %v3045, %v3121
    %3123 = vmatprep.mubr.f32.mxu0 0.0
    %3124 = vmatmul.mubr.f32.gmra.mrb[0].mxu0 %v1073
    %v3125 = vpop.f32.mrb[0].mxu0
    %v3126 = vadd.f32 %v3049, %v3125
    %v3127 = vpop.f32.mrb[0].mxu0
    %v3128 = vadd.f32 %v3051, %v3127
    %3129 = vdwg.mxu0
    %v3130 = vadd.f32 %v3120, %v1155
    %v3131 = vadd.f32 %v3122, %v1155
    %v3132 = vadd.f32 %v3126, %v1160
    %v3133 = vadd.f32 %v3128, %v1160
    %v3134 = vxor.u32 %v3132, 2147483648
    %v3135 = vxor.u32 %v3133, 2147483648
    %v3136 = vmul.f32 %v3134, 1.442695
    %v3137 = vpow.pop %v3136
    %v3138 = vmul.f32 %v3135, 1.442695
    %v3139 = vpow.pop %v3138
    %v3140 = vadd.f32 %v3137, 1.0
    %v3141 = vadd.f32 %v3139, 1.0
    %v3142 = vrcp.pop %v3140
    %v3143 = vmul.f32 1.0, %v3142
    %v3144 = vrcp.pop %v3141
    %v3145 = vmul.f32 1.0, %v3144
    %v3146 = vmul.f32 %v3130, %v3143
    %v3147 = vmul.f32 %v3131, %v3145
    %3148 = vmatprep.subr.mxu0 %v3147
    %3149 = vmatpush1.msra.mxu0 %v3146
    %3150 = vmatprep.subr.mxu0 0.0
    %3151 = vmatpush1.msra.mxu0 0.0
    %3152 = vmatprep.subr.mxu0 0.0
    %3153 = vmatpush1.msra.mxu0 0.0
    %3154 = vmatprep.subr.mxu0 0.0
    %3155 = vmatpush1.msra.mxu0 0.0
    %3156 = vmatprep.subr.mxu0 0.0
    %3157 = vmatpush1.msra.mxu0 0.0
    %3158 = vmatprep.subr.mxu0 0.0
    %3159 = vmatpush1.msra.mxu0 0.0
    %3160 = vmatprep.subr.mxu0 0.0
    %3161 = vmatpush1.msra.mxu0 0.0
    %3162 = vmatprep.subr.mxu0 0.0
    %3163 = vmatpush1.msra.mxu0 0.0
    %3164 = vmatprep.subr.mxu0 0.0
    %3165 = vmatpush1.msra.mxu0 0.0
    %3166 = vmatprep.subr.mxu0 0.0
    %3167 = vmatpush1.msra.mxu0 0.0
    %3168 = vmatprep.subr.mxu0 0.0
    %3169 = vmatpush1.msra.mxu0 0.0
    %3170 = vmatprep.subr.mxu0 0.0
    %3171 = vmatpush1.msra.mxu0 0.0
    %3172 = vmatprep.subr.mxu0 0.0
    %3173 = vmatpush1.msra.mxu0 0.0
    %3174 = vmatprep.subr.mxu0 0.0
    %3175 = vmatpush1.msra.mxu0 0.0
    %3176 = vmatprep.subr.mxu0 0.0
    %3177 = vmatpush1.msra.mxu0 0.0
    %3178 = vmatprep.subr.mxu0 0.0
    %3179 = vmatpush1.msra.mxu0 0.0
    %3180 = vmatprep.subr.mxu0 0.0
    %3181 = vmatpush1.msra.mxu0 0.0
    %3182 = vmatprep.subr.mxu0 0.0
    %3183 = vmatpush1.msra.mxu0 0.0
    %3184 = vmatprep.subr.mxu0 0.0
    %3185 = vmatpush1.msra.mxu0 0.0
    %3186 = vmatprep.subr.mxu0 0.0
    %3187 = vmatpush1.msra.mxu0 0.0
    %3188 = vmatprep.subr.mxu0 0.0
    %3189 = vmatpush1.msra.mxu0 0.0
    %3190 = vmatprep.subr.mxu0 0.0
    %3191 = vmatpush1.msra.mxu0 0.0
    %3192 = vmatprep.subr.mxu0 0.0
    %3193 = vmatpush1.msra.mxu0 0.0
    %3194 = vmatprep.subr.mxu0 0.0
    %3195 = vmatpush1.msra.mxu0 0.0
    %3196 = vmatprep.subr.mxu0 0.0
    %3197 = vmatpush1.msra.mxu0 0.0
    %3198 = vmatprep.subr.mxu0 0.0
    %3199 = vmatpush1.msra.mxu0 0.0
    %3200 = vmatprep.subr.mxu0 0.0
    %3201 = vmatpush1.msra.mxu0 0.0
    %3202 = vmatprep.subr.mxu0 0.0
    %3203 = vmatpush1.msra.mxu0 0.0
    %3204 = vmatprep.subr.mxu0 0.0
    %3205 = vmatpush1.msra.mxu0 0.0
    %3206 = vmatprep.subr.mxu0 0.0
    %3207 = vmatpush1.msra.mxu0 0.0
    %3208 = vmatprep.subr.mxu0 0.0
    %3209 = vmatpush1.msra.mxu0 0.0
    %3210 = vmatprep.subr.mxu0 0.0
    %3211 = vmatpush1.msra.mxu0 0.0
    %3212 = vmatprep.mubr.f32.mxu0 0.0
    %3213 = vmatmul.mubr.f32.gmra.mrb[0].mxu0 %v1183
    %v3214 = vpop.f32.mrb[0].mxu0
    %v3215 = vadd.f32 0.0, %v3214
    %v3216 = vpop.f32.mrb[0].mxu0
    %v3217 = vadd.f32 0.0, %v3216
    %3218 = vdwg.mxu0
    %3220 = vrot.lane.b32.xlu0 %v3215, 112
    %v3221 = vpop.permute.xlu0 %3220
    %3222 = vrot.lane.b32.xlu0 %v3215, 96
    %v3223 = vpop.permute.xlu0 %3222
    %3224 = vrot.lane.b32.xlu0 %v3215, 80
    %v3225 = vpop.permute.xlu0 %3224
    %3226 = vrot.lane.b32.xlu0 %v3215, 64
    %v3227 = vpop.permute.xlu0 %3226
    %3228 = vrot.lane.b32.xlu0 %v3215, 48
    %v3229 = vpop.permute.xlu0 %3228
    %3230 = vrot.lane.b32.xlu0 %v3215, 32
    %v3231 = vpop.permute.xlu0 %3230
    %3232 = vrot.lane.b32.xlu0 %v3215, 16
    %v3233 = vpop.permute.xlu0 %3232
    %v3234 = vsel %vm207, %v3215, 0
    %v3236 = vsel %vm207, %v3221, 0
    %v3238 = vsel %vm207, %v3223, 0
    %v3240 = vsel %vm207, %v3225, 0
    %v3242 = vsel %vm207, %v3227, 0
    %v3244 = vsel %vm207, %v3229, 0
    %v3246 = vsel %vm207, %v3231, 0
    %v3248 = vsel %vm207, %v3233, 0
    %v3251 = vsel %vm207, %v3217, 0
    %3253 = vmatprep.subr.mxu0 0.0
    %3254 = vmatpush1.msra.mxu0 %v110
    %3255 = vmatprep.subr.mxu0 0.0
    %3256 = vmatpush1.msra.mxu0 %v111
    %3257 = vmatprep.subr.mxu0 0.0
    %3258 = vmatpush1.msra.mxu0 0.0
    %3259 = vmatprep.subr.mxu0 0.0
    %3260 = vmatpush1.msra.mxu0 0.0
    %3261 = vmatprep.subr.mxu0 0.0
    %3262 = vmatpush1.msra.mxu0 0.0
    %3263 = vmatprep.subr.mxu0 0.0
    %3264 = vmatpush1.msra.mxu0 0.0
    %3265 = vmatprep.subr.mxu0 0.0
    %3266 = vmatpush1.msra.mxu0 0.0
    %3267 = vmatprep.subr.mxu0 0.0
    %3268 = vmatpush1.msra.mxu0 0.0
    %3269 = vmatprep.subr.mxu0 0.0
    %3270 = vmatpush1.msra.mxu0 0.0
    %3271 = vmatprep.subr.mxu0 0.0
    %3272 = vmatpush1.msra.mxu0 0.0
    %3273 = vmatprep.subr.mxu0 0.0
    %3274 = vmatpush1.msra.mxu0 0.0
    %3275 = vmatprep.subr.mxu0 0.0
    %3276 = vmatpush1.msra.mxu0 0.0
    %3277 = vmatprep.subr.mxu0 0.0
    %3278 = vmatpush1.msra.mxu0 0.0
    %3279 = vmatprep.subr.mxu0 0.0
    %3280 = vmatpush1.msra.mxu0 0.0
    %3281 = vmatprep.subr.mxu0 0.0
    %3282 = vmatpush1.msra.mxu0 0.0
    %3283 = vmatprep.subr.mxu0 0.0
    %3284 = vmatpush1.msra.mxu0 0.0
    %3285 = vmatprep.subr.mxu0 0.0
    %3286 = vmatpush1.msra.mxu0 0.0
    %3287 = vmatprep.subr.mxu0 0.0
    %3288 = vmatpush1.msra.mxu0 0.0
    %3289 = vmatprep.subr.mxu0 0.0
    %3290 = vmatpush1.msra.mxu0 0.0
    %3291 = vmatprep.subr.mxu0 0.0
    %3292 = vmatpush1.msra.mxu0 0.0
    %3293 = vmatprep.subr.mxu0 0.0
    %3294 = vmatpush1.msra.mxu0 0.0
    %3295 = vmatprep.subr.mxu0 0.0
    %3296 = vmatpush1.msra.mxu0 0.0
    %3297 = vmatprep.subr.mxu0 0.0
    %3298 = vmatpush1.msra.mxu0 0.0
    %3299 = vmatprep.subr.mxu0 0.0
    %3300 = vmatpush1.msra.mxu0 0.0
    %3301 = vmatprep.subr.mxu0 0.0
    %3302 = vmatpush1.msra.mxu0 0.0
    %3303 = vmatprep.subr.mxu0 0.0
    %3304 = vmatpush1.msra.mxu0 0.0
    %3305 = vmatprep.subr.mxu0 0.0
    %3306 = vmatpush1.msra.mxu0 0.0
    %3307 = vmatprep.subr.mxu0 0.0
    %3308 = vmatpush1.msra.mxu0 0.0
    %3309 = vmatprep.subr.mxu0 0.0
    %3310 = vmatpush1.msra.mxu0 0.0
    %3311 = vmatprep.subr.mxu0 0.0
    %3312 = vmatpush1.msra.mxu0 0.0
    %3313 = vmatprep.subr.mxu0 0.0
    %3314 = vmatpush1.msra.mxu0 0.0
    %3315 = vmatprep.subr.mxu0 0.0
    %3316 = vmatpush1.msra.mxu0 0.0
    %3317 = vmatprep.mubr.f32.mxu0 0.0
    %3318 = vmatmul.mubr.f32.gmra.mrb[0].mxu0 %v3234
    %v3319 = vpop.f32.mrb[0].mxu0
    %v3320 = vadd.f32 0.0, %v3319
    %v3321 = vpop.f32.mrb[0].mxu0
    %3322 = vmatprep.mubr.f32.mxu0 0.0
    %3323 = vmatmul.mubr.f32.gmra.mrb[0].mxu0 %v3236
    %v3324 = vpop.f32.mrb[0].mxu0
    %v3325 = vadd.f32 0.0, %v3324
    %v3326 = vpop.f32.mrb[0].mxu0
    %3327 = vmatprep.mubr.f32.mxu0 0.0
    %3328 = vmatmul.mubr.f32.gmra.mrb[0].mxu0 %v3238
    %v3329 = vpop.f32.mrb[0].mxu0
    %v3330 = vadd.f32 0.0, %v3329
    %v3331 = vpop.f32.mrb[0].mxu0
    %3332 = vmatprep.mubr.f32.mxu0 0.0
    %3333 = vmatmul.mubr.f32.gmra.mrb[0].mxu0 %v3240
    %v3334 = vpop.f32.mrb[0].mxu0
    %v3335 = vadd.f32 0.0, %v3334
    %v3336 = vpop.f32.mrb[0].mxu0
    %3337 = vmatprep.mubr.f32.mxu0 0.0
    %3338 = vmatmul.mubr.f32.gmra.mrb[0].mxu0 %v3242
    %v3339 = vpop.f32.mrb[0].mxu0
    %v3340 = vadd.f32 0.0, %v3339
    %v3341 = vpop.f32.mrb[0].mxu0
    %3342 = vmatprep.mubr.f32.mxu0 0.0
    %3343 = vmatmul.mubr.f32.gmra.mrb[0].mxu0 %v3244
    %v3344 = vpop.f32.mrb[0].mxu0
    %v3345 = vadd.f32 0.0, %v3344
    %v3346 = vpop.f32.mrb[0].mxu0
    %3347 = vmatprep.mubr.f32.mxu0 0.0
    %3348 = vmatmul.mubr.f32.gmra.mrb[0].mxu0 %v3246
    %v3349 = vpop.f32.mrb[0].mxu0
    %v3350 = vadd.f32 0.0, %v3349
    %v3351 = vpop.f32.mrb[0].mxu0
    %3352 = vmatprep.mubr.f32.mxu0 0.0
    %3353 = vmatmul.mubr.f32.gmra.mrb[0].mxu0 %v3248
    %v3354 = vpop.f32.mrb[0].mxu0
    %v3355 = vadd.f32 0.0, %v3354
    %v3356 = vpop.f32.mrb[0].mxu0
    %3357 = vmatprep.mubr.f32.mxu0 0.0
    %3358 = vmatmul.mubr.f32.gmra.mrb[0].mxu0 %v3251
    %v3359 = vpop.f32.mrb[0].mxu0
    %v3360 = vadd.f32 0.0, %v3359
    %v3361 = vpop.f32.mrb[0].mxu0
    %3362 = vdwg.mxu0
    %3364 = vrot.lane.b32.xlu0 %v3325, 16
    %v3365 = vpop.permute.xlu0 %3364
    %3368 = vrot.lane.b32.xlu0 %v3330, 32
    %v3369 = vpop.permute.xlu0 %3368
    %3372 = vrot.lane.b32.xlu0 %v3335, 48
    %v3373 = vpop.permute.xlu0 %3372
    %3376 = vrot.lane.b32.xlu0 %v3340, 64
    %v3377 = vpop.permute.xlu0 %3376
    %3380 = vrot.lane.b32.xlu0 %v3345, 80
    %v3381 = vpop.permute.xlu0 %3380
    %3384 = vrot.lane.b32.xlu0 %v3350, 96
    %v3385 = vpop.permute.xlu0 %3384
    %3388 = vrot.lane.b32.xlu0 %v3355, 112
    %v3389 = vpop.permute.xlu0 %3388
    %v3391 = vsel %vm207, %v3320, %v3365
    %v3392 = vsel %vm387, %v3391, %v3369
    %v3393 = vsel %vm389, %v3392, %v3373
    %v3394 = vsel %vm391, %v3393, %v3377
    %v3395 = vsel %vm393, %v3394, %v3381
    %v3396 = vsel %vm395, %v3395, %v3385
    %v3397 = vsel %vm69, %v3396, %v3389
    %v3398 = vadd.f32 %v3397, %v1438
    %v3399 = vadd.f32 %v3360, %v1438
    %v3400 = vmax.f32 %v3398, 0.0
    %v3401 = vmax.f32 %v3399, 0.0
    %3404 = vrot.lane.b32.xlu0 %v3400, 112
    %v3405 = vpop.permute.xlu0 %3404
    %3406 = vrot.lane.b32.xlu0 %v3401, 112
    %v3407 = vpop.permute.xlu0 %3406
    %v3408 = vsel %vm69, %v3405, %v3407
    %3410 = vmatprep.subr.mxu0 0.0
    %3411 = vmatpush1.msra.mxu0 %v3408
    %3412 = vmatprep.subr.mxu0 0.0
    %3413 = vmatpush1.msra.mxu0 0.0
    %3414 = vmatprep.subr.mxu0 0.0
    %3415 = vmatpush1.msra.mxu0 0.0
    %3416 = vmatprep.subr.mxu0 0.0
    %3417 = vmatpush1.msra.mxu0 0.0
    %3418 = vmatprep.subr.mxu0 0.0
    %3419 = vmatpush1.msra.mxu0 0.0
    %3420 = vmatprep.subr.mxu0 0.0
    %3421 = vmatpush1.msra.mxu0 0.0
    %3422 = vmatprep.subr.mxu0 0.0
    %3423 = vmatpush1.msra.mxu0 0.0
    %3424 = vmatprep.subr.mxu0 0.0
    %3425 = vmatpush1.msra.mxu0 0.0
    %3426 = vmatprep.subr.mxu0 0.0
    %3427 = vmatpush1.msra.mxu0 0.0
    %3428 = vmatprep.subr.mxu0 0.0
    %3429 = vmatpush1.msra.mxu0 0.0
    %3430 = vmatprep.subr.mxu0 0.0
    %3431 = vmatpush1.msra.mxu0 0.0
    %3432 = vmatprep.subr.mxu0 0.0
    %3433 = vmatpush1.msra.mxu0 0.0
    %3434 = vmatprep.subr.mxu0 0.0
    %3435 = vmatpush1.msra.mxu0 0.0
    %3436 = vmatprep.subr.mxu0 0.0
    %3437 = vmatpush1.msra.mxu0 0.0
    %3438 = vmatprep.subr.mxu0 0.0
    %3439 = vmatpush1.msra.mxu0 0.0
    %3440 = vmatprep.subr.mxu0 0.0
    %3441 = vmatpush1.msra.mxu0 0.0
    %3442 = vmatprep.subr.mxu0 0.0
    %3443 = vmatpush1.msra.mxu0 0.0
    %3444 = vmatprep.subr.mxu0 0.0
    %3445 = vmatpush1.msra.mxu0 0.0
    %3446 = vmatprep.subr.mxu0 0.0
    %3447 = vmatpush1.msra.mxu0 0.0
    %3448 = vmatprep.subr.mxu0 0.0
    %3449 = vmatpush1.msra.mxu0 0.0
    %3450 = vmatprep.subr.mxu0 0.0
    %3451 = vmatpush1.msra.mxu0 0.0
    %3452 = vmatprep.subr.mxu0 0.0
    %3453 = vmatpush1.msra.mxu0 0.0
    %3454 = vmatprep.subr.mxu0 0.0
    %3455 = vmatpush1.msra.mxu0 0.0
    %3456 = vmatprep.subr.mxu0 0.0
    %3457 = vmatpush1.msra.mxu0 0.0
    %3458 = vmatprep.subr.mxu0 0.0
    %3459 = vmatpush1.msra.mxu0 0.0
    %3460 = vmatprep.subr.mxu0 0.0
    %3461 = vmatpush1.msra.mxu0 0.0
    %3462 = vmatprep.subr.mxu0 0.0
    %3463 = vmatpush1.msra.mxu0 0.0
    %3464 = vmatprep.subr.mxu0 0.0
    %3465 = vmatpush1.msra.mxu0 0.0
    %3466 = vmatprep.subr.mxu0 0.0
    %3467 = vmatpush1.msra.mxu0 0.0
    %3468 = vmatprep.subr.mxu0 0.0
    %3469 = vmatpush1.msra.mxu0 0.0
    %3470 = vmatprep.subr.mxu0 0.0
    %3471 = vmatpush1.msra.mxu0 0.0
    %3472 = vmatprep.subr.mxu0 0.0
    %3473 = vmatpush1.msra.mxu0 0.0
    %3474 = vmatprep.mubr.f32.mxu0 0.0
    %3475 = vmatmul.mubr.f32.gmra.mrb[0].mxu0 %v1472
    %v3476 = vpop.f32.mrb[0].mxu0
    %v3477 = vadd.f32 0.0, %v3476
    %v3478 = vpop.f32.mrb[0].mxu0
    %3479 = vmatprep.mubr.f32.mxu0 0.0
    %3480 = vmatmul.mubr.f32.gmra.mrb[0].mxu0 %v1474
    %v3481 = vpop.f32.mrb[0].mxu0
    %v3482 = vadd.f32 0.0, %v3481
    %v3483 = vpop.f32.mrb[0].mxu0
    %3484 = vmatprep.mubr.f32.mxu0 0.0
    %3485 = vmatmul.mubr.f32.gmra.mrb[0].mxu0 %v1476
    %v3486 = vpop.f32.mrb[0].mxu0
    %v3487 = vadd.f32 0.0, %v3486
    %v3488 = vpop.f32.mrb[0].mxu0
    %3489 = vmatprep.mubr.f32.mxu0 0.0
    %3490 = vmatmul.mubr.f32.gmra.mrb[0].mxu0 %v1478
    %v3491 = vpop.f32.mrb[0].mxu0
    %v3492 = vadd.f32 0.0, %v3491
    %v3493 = vpop.f32.mrb[0].mxu0
    %3494 = vdwg.mxu0
    %3495 = vmatprep.subr.mxu0 0.0
    %3496 = vmatpush1.msra.mxu0 %v3400
    %3497 = vmatprep.subr.mxu0 0.0
    %3498 = vmatpush1.msra.mxu0 0.0
    %3499 = vmatprep.subr.mxu0 0.0
    %3500 = vmatpush1.msra.mxu0 0.0
    %3501 = vmatprep.subr.mxu0 0.0
    %3502 = vmatpush1.msra.mxu0 0.0
    %3503 = vmatprep.subr.mxu0 0.0
    %3504 = vmatpush1.msra.mxu0 0.0
    %3505 = vmatprep.subr.mxu0 0.0
    %3506 = vmatpush1.msra.mxu0 0.0
    %3507 = vmatprep.subr.mxu0 0.0
    %3508 = vmatpush1.msra.mxu0 0.0
    %3509 = vmatprep.subr.mxu0 0.0
    %3510 = vmatpush1.msra.mxu0 0.0
    %3511 = vmatprep.subr.mxu0 0.0
    %3512 = vmatpush1.msra.mxu0 0.0
    %3513 = vmatprep.subr.mxu0 0.0
    %3514 = vmatpush1.msra.mxu0 0.0
    %3515 = vmatprep.subr.mxu0 0.0
    %3516 = vmatpush1.msra.mxu0 0.0
    %3517 = vmatprep.subr.mxu0 0.0
    %3518 = vmatpush1.msra.mxu0 0.0
    %3519 = vmatprep.subr.mxu0 0.0
    %3520 = vmatpush1.msra.mxu0 0.0
    %3521 = vmatprep.subr.mxu0 0.0
    %3522 = vmatpush1.msra.mxu0 0.0
    %3523 = vmatprep.subr.mxu0 0.0
    %3524 = vmatpush1.msra.mxu0 0.0
    %3525 = vmatprep.subr.mxu0 0.0
    %3526 = vmatpush1.msra.mxu0 0.0
    %3527 = vmatprep.subr.mxu0 0.0
    %3528 = vmatpush1.msra.mxu0 0.0
    %3529 = vmatprep.subr.mxu0 0.0
    %3530 = vmatpush1.msra.mxu0 0.0
    %3531 = vmatprep.subr.mxu0 0.0
    %3532 = vmatpush1.msra.mxu0 0.0
    %3533 = vmatprep.subr.mxu0 0.0
    %3534 = vmatpush1.msra.mxu0 0.0
    %3535 = vmatprep.subr.mxu0 0.0
    %3536 = vmatpush1.msra.mxu0 0.0
    %3537 = vmatprep.subr.mxu0 0.0
    %3538 = vmatpush1.msra.mxu0 0.0
    %3539 = vmatprep.subr.mxu0 0.0
    %3540 = vmatpush1.msra.mxu0 0.0
    %3541 = vmatprep.subr.mxu0 0.0
    %3542 = vmatpush1.msra.mxu0 0.0
    %3543 = vmatprep.subr.mxu0 0.0
    %3544 = vmatpush1.msra.mxu0 0.0
    %3545 = vmatprep.subr.mxu0 0.0
    %3546 = vmatpush1.msra.mxu0 0.0
    %3547 = vmatprep.subr.mxu0 0.0
    %3548 = vmatpush1.msra.mxu0 0.0
    %3549 = vmatprep.subr.mxu0 0.0
    %3550 = vmatpush1.msra.mxu0 0.0
    %3551 = vmatprep.subr.mxu0 0.0
    %3552 = vmatpush1.msra.mxu0 0.0
    %3553 = vmatprep.subr.mxu0 0.0
    %3554 = vmatpush1.msra.mxu0 0.0
    %3555 = vmatprep.subr.mxu0 0.0
    %3556 = vmatpush1.msra.mxu0 0.0
    %3557 = vmatprep.subr.mxu0 0.0
    %3558 = vmatpush1.msra.mxu0 0.0
    %3559 = vmatprep.mubr.f32.mxu0 0.0
    %3560 = vmatmul.mubr.f32.gmra.mrb[0].mxu0 %v1565
    %v3561 = vpop.f32.mrb[0].mxu0
    %v3562 = vadd.f32 %v3477, %v3561
    %v3563 = vpop.f32.mrb[0].mxu0
    %3564 = vmatprep.mubr.f32.mxu0 0.0
    %3565 = vmatmul.mubr.f32.gmra.mrb[0].mxu0 %v1567
    %v3566 = vpop.f32.mrb[0].mxu0
    %v3567 = vadd.f32 %v3482, %v3566
    %v3568 = vpop.f32.mrb[0].mxu0
    %3569 = vmatprep.mubr.f32.mxu0 0.0
    %3570 = vmatmul.mubr.f32.gmra.mrb[0].mxu0 %v1569
    %v3571 = vpop.f32.mrb[0].mxu0
    %v3572 = vadd.f32 %v3487, %v3571
    %v3573 = vpop.f32.mrb[0].mxu0
    %3574 = vmatprep.mubr.f32.mxu0 0.0
    %3575 = vmatmul.mubr.f32.gmra.mrb[0].mxu0 %v1571
    %v3576 = vpop.f32.mrb[0].mxu0
    %v3577 = vadd.f32 %v3492, %v3576
    %v3578 = vpop.f32.mrb[0].mxu0
    %3579 = vdwg.mxu0
    %v3580 = vadd.f32 %v3562, %v1661
    %v3581 = vadd.f32 %v3567, %v1666
    %v3582 = vadd.f32 %v3572, %v1671
    %v3583 = vadd.f32 %v3577, %v1676
    %v3584 = vxor.u32 %v3582, 2147483648
    %v3585 = vxor.u32 %v3583, 2147483648
    %v3586 = vmul.f32 %v3584, 1.442695
    %v3587 = vpow.pop %v3586
    %v3588 = vmul.f32 %v3585, 1.442695
    %v3589 = vpow.pop %v3588
    %v3590 = vadd.f32 %v3587, 1.0
    %v3591 = vadd.f32 %v3589, 1.0
    %v3592 = vrcp.pop %v3590
    %v3593 = vmul.f32 1.0, %v3592
    %v3594 = vrcp.pop %v3591
    %v3595 = vmul.f32 1.0, %v3594
    %v3596 = vmul.f32 %v3580, %v3593
    %v3597 = vmul.f32 %v3581, %v3595
    %v3598 = vadd.f32 %v3596, %v3597
    %v3599 = vrot.slane %v3598, 4
    %v3600 = vadd.f32 %v3598, %v3599
    %v3601 = vrot.slane %v3600, 2
    %v3602 = vadd.f32 %v3600, %v3601
    %v3603 = vrot.slane %v3602, 1
    %v3604 = vadd.f32 %v3602, %v3603
    %v3605 = vmul.f32 %v3596, %v3596
    %v3606 = vmul.f32 %v3597, %v3597
    %v3607 = vadd.f32 %v3605, %v3606
    %v3608 = vrot.slane %v3607, 4
    %v3609 = vadd.f32 %v3607, %v3608
    %v3610 = vrot.slane %v3609, 2
    %v3611 = vadd.f32 %v3609, %v3610
    %v3612 = vrot.slane %v3611, 1
    %v3613 = vadd.f32 %v3611, %v3612
    %v3614 = vsel %vm756, %v3604, %v3613
    %3615 = vmatprep.subr.mxu0 0.0
    %3616 = vmatpush1.msra.mxu0 %v1700
    %3617 = vmatprep.subr.mxu0 0.0
    %3618 = vmatpush1.msra.mxu0 %v1701
    %3619 = vmatprep.subr.mxu0 0.0
    %3620 = vmatpush1.msra.mxu0 %v1702
    %3621 = vmatprep.subr.mxu0 0.0
    %3622 = vmatpush1.msra.mxu0 %v1703
    %3623 = vmatprep.subr.mxu0 0.0
    %3624 = vmatpush1.msra.mxu0 %v1704
    %3625 = vmatprep.subr.mxu0 0.0
    %3626 = vmatpush1.msra.mxu0 %v1705
    %3627 = vmatprep.subr.mxu0 0.0
    %3628 = vmatpush1.msra.mxu0 %v1706
    %3629 = vmatprep.subr.mxu0 0.0
    %3630 = vmatpush1.msra.mxu0 %v1707
    %3631 = vmatprep.subr.mxu0 0.0
    %3632 = vmatpush1.msra.mxu0 %v1708
    %3633 = vmatprep.subr.mxu0 0.0
    %3634 = vmatpush1.msra.mxu0 %v1709
    %3635 = vmatprep.subr.mxu0 0.0
    %3636 = vmatpush1.msra.mxu0 %v1710
    %3637 = vmatprep.subr.mxu0 0.0
    %3638 = vmatpush1.msra.mxu0 %v1711
    %3639 = vmatprep.subr.mxu0 0.0
    %3640 = vmatpush1.msra.mxu0 %v1712
    %3641 = vmatprep.subr.mxu0 0.0
    %3642 = vmatpush1.msra.mxu0 %v1713
    %3643 = vmatprep.subr.mxu0 0.0
    %3644 = vmatpush1.msra.mxu0 %v1714
    %3645 = vmatprep.subr.mxu0 0.0
    %3646 = vmatpush1.msra.mxu0 %v1715
    %3647 = vmatprep.subr.mxu0 0.0
    %3648 = vmatpush1.msra.mxu0 0.0
    %3649 = vmatprep.subr.mxu0 0.0
    %3650 = vmatpush1.msra.mxu0 0.0
    %3651 = vmatprep.subr.mxu0 0.0
    %3652 = vmatpush1.msra.mxu0 0.0
    %3653 = vmatprep.subr.mxu0 0.0
    %3654 = vmatpush1.msra.mxu0 0.0
    %3655 = vmatprep.subr.mxu0 0.0
    %3656 = vmatpush1.msra.mxu0 0.0
    %3657 = vmatprep.subr.mxu0 0.0
    %3658 = vmatpush1.msra.mxu0 0.0
    %3659 = vmatprep.subr.mxu0 0.0
    %3660 = vmatpush1.msra.mxu0 0.0
    %3661 = vmatprep.subr.mxu0 0.0
    %3662 = vmatpush1.msra.mxu0 0.0
    %3663 = vmatprep.subr.mxu0 0.0
    %3664 = vmatpush1.msra.mxu0 0.0
    %3665 = vmatprep.subr.mxu0 0.0
    %3666 = vmatpush1.msra.mxu0 0.0
    %3667 = vmatprep.subr.mxu0 0.0
    %3668 = vmatpush1.msra.mxu0 0.0
    %3669 = vmatprep.subr.mxu0 0.0
    %3670 = vmatpush1.msra.mxu0 0.0
    %3671 = vmatprep.subr.mxu0 0.0
    %3672 = vmatpush1.msra.mxu0 0.0
    %3673 = vmatprep.subr.mxu0 0.0
    %3674 = vmatpush1.msra.mxu0 0.0
    %3675 = vmatprep.subr.mxu0 0.0
    %3676 = vmatpush1.msra.mxu0 0.0
    %3677 = vmatprep.subr.mxu0 0.0
    %3678 = vmatpush1.msra.mxu0 0.0
    %3679 = vmatprep.mubr.f32.mxu0 0.0
    %3680 = vmatmul.mubr.f32.gmra.mrb[0].mxu0 %v3614
    %v3681 = vpop.f32.mrb[0].mxu0
    %v3682 = vadd.f32 0.0, %v3681
    %v3683 = vpop.f32.mrb[0].mxu0
    %3684 = vdwg.mxu0
    %v3686 = vsel %vm112, %v3682, 0
    %3688 = vmatprep.subr.mxu0 0.0
    %3689 = vmatpush1.msra.mxu0 %v1716
    %3690 = vmatprep.subr.mxu0 0.0
    %3691 = vmatpush1.msra.mxu0 0.0
    %3692 = vmatprep.subr.mxu0 0.0
    %3693 = vmatpush1.msra.mxu0 0.0
    %3694 = vmatprep.subr.mxu0 0.0
    %3695 = vmatpush1.msra.mxu0 0.0
    %3696 = vmatprep.subr.mxu0 0.0
    %3697 = vmatpush1.msra.mxu0 0.0
    %3698 = vmatprep.subr.mxu0 0.0
    %3699 = vmatpush1.msra.mxu0 0.0
    %3700 = vmatprep.subr.mxu0 0.0
    %3701 = vmatpush1.msra.mxu0 0.0
    %3702 = vmatprep.subr.mxu0 0.0
    %3703 = vmatpush1.msra.mxu0 0.0
    %3704 = vmatprep.subr.mxu0 0.0
    %3705 = vmatpush1.msra.mxu0 0.0
    %3706 = vmatprep.subr.mxu0 0.0
    %3707 = vmatpush1.msra.mxu0 0.0
    %3708 = vmatprep.subr.mxu0 0.0
    %3709 = vmatpush1.msra.mxu0 0.0
    %3710 = vmatprep.subr.mxu0 0.0
    %3711 = vmatpush1.msra.mxu0 0.0
    %3712 = vmatprep.subr.mxu0 0.0
    %3713 = vmatpush1.msra.mxu0 0.0
    %3714 = vmatprep.subr.mxu0 0.0
    %3715 = vmatpush1.msra.mxu0 0.0
    %3716 = vmatprep.subr.mxu0 0.0
    %3717 = vmatpush1.msra.mxu0 0.0
    %3718 = vmatprep.subr.mxu0 0.0
    %3719 = vmatpush1.msra.mxu0 0.0
    %3720 = vmatprep.subr.mxu0 0.0
    %3721 = vmatpush1.msra.mxu0 0.0
    %3722 = vmatprep.subr.mxu0 0.0
    %3723 = vmatpush1.msra.mxu0 0.0
    %3724 = vmatprep.subr.mxu0 0.0
    %3725 = vmatpush1.msra.mxu0 0.0
    %3726 = vmatprep.subr.mxu0 0.0
    %3727 = vmatpush1.msra.mxu0 0.0
    %3728 = vmatprep.subr.mxu0 0.0
    %3729 = vmatpush1.msra.mxu0 0.0
    %3730 = vmatprep.subr.mxu0 0.0
    %3731 = vmatpush1.msra.mxu0 0.0
    %3732 = vmatprep.subr.mxu0 0.0
    %3733 = vmatpush1.msra.mxu0 0.0
    %3734 = vmatprep.subr.mxu0 0.0
    %3735 = vmatpush1.msra.mxu0 0.0
    %3736 = vmatprep.subr.mxu0 0.0
    %3737 = vmatpush1.msra.mxu0 0.0
    %3738 = vmatprep.subr.mxu0 0.0
    %3739 = vmatpush1.msra.mxu0 0.0
    %3740 = vmatprep.subr.mxu0 0.0
    %3741 = vmatpush1.msra.mxu0 0.0
    %3742 = vmatprep.subr.mxu0 0.0
    %3743 = vmatpush1.msra.mxu0 0.0
    %3744 = vmatprep.subr.mxu0 0.0
    %3745 = vmatpush1.msra.mxu0 0.0
    %3746 = vmatprep.subr.mxu0 0.0
    %3747 = vmatpush1.msra.mxu0 0.0
    %3748 = vmatprep.subr.mxu0 0.0
    %3749 = vmatpush1.msra.mxu0 0.0
    %3750 = vmatprep.subr.mxu0 0.0
    %3751 = vmatpush1.msra.mxu0 0.0
    %3752 = vmatprep.mubr.f32.mxu0 0.0
    %3753 = vmatmul.mubr.f32.gmra.mrb[0].mxu0 %v3686
    %v3754 = vpop.f32.mrb[0].mxu0
    %v3755 = vadd.f32 0.0, %v3754
    %v3756 = vpop.f32.mrb[0].mxu0
    %3757 = vdwg.mxu0
    %v3758 = vmul.f32 %v3755, 0.00390625
    %v3759 = vmul.f32 %v3758, %v3758
    %v3761 = vrot.slane %v3759, 7
    %v3763 = vsub.f32 %v3758, %v3761
    %v3764 = vlaneseq
    %v3765 = vshrl.u32 %v3764, 7
    %v3766 = vsub.s32 0, %v3765
    %v3767 = vrot.slane %v3758, %v3766
    %v3768 = vsub.f32 %v3596, %v3767
    %v3769 = vsub.f32 %v3597, %v3767
    %v3770 = vadd.f32 %v3763, 1e-05
    %v3771 = vrsqrt.pop %v3770
    %v3772 = vlaneseq
    %v3773 = vshrl.u32 %v3772, 7
    %v3774 = vsub.s32 1, %v3773
    %v3775 = vrot.slane %v3771, %v3774
    %v3776 = vmul.f32 %v3768, %v3775
    %v3777 = vmul.f32 %v3769, %v3775
    %v3778 = vmul.f32 %v3776, %v1696
    %v3779 = vmul.f32 %v3777, %v1697
    %v3780 = vadd.f32 %v3778, %v1698
    %v3781 = vadd.f32 %v3779, %v1699
    %3784 = vrot.lane.b32.xlu0 %v3780, 112
    %v3785 = vpop.permute.xlu0 %3784
    %3786 = vrot.lane.b32.xlu0 %v3781, 112
    %v3787 = vpop.permute.xlu0 %3786
    %3790 = vrot.lane.b32.xlu0 %v3780, 96
    %v3791 = vpop.permute.xlu0 %3790
    %3792 = vrot.lane.b32.xlu0 %v3781, 96
    %v3793 = vpop.permute.xlu0 %3792
    %3796 = vrot.lane.b32.xlu0 %v3780, 80
    %v3797 = vpop.permute.xlu0 %3796
    %3798 = vrot.lane.b32.xlu0 %v3781, 80
    %v3799 = vpop.permute.xlu0 %3798
    %3802 = vrot.lane.b32.xlu0 %v3780, 64
    %v3803 = vpop.permute.xlu0 %3802
    %3804 = vrot.lane.b32.xlu0 %v3781, 64
    %v3805 = vpop.permute.xlu0 %3804
    %3808 = vrot.lane.b32.xlu0 %v3780, 48
    %v3809 = vpop.permute.xlu0 %3808
    %3810 = vrot.lane.b32.xlu0 %v3781, 48
    %v3811 = vpop.permute.xlu0 %3810
    %3814 = vrot.lane.b32.xlu0 %v3780, 32
    %v3815 = vpop.permute.xlu0 %3814
    %3816 = vrot.lane.b32.xlu0 %v3781, 32
    %v3817 = vpop.permute.xlu0 %3816
    %3820 = vrot.lane.b32.xlu0 %v3780, 16
    %v3821 = vpop.permute.xlu0 %3820
    %3822 = vrot.lane.b32.xlu0 %v3781, 16
    %v3823 = vpop.permute.xlu0 %3822
    %3826 = vmatprep.subr.mxu0 0.0
    %3827 = vmatpush1.msra.mxu0 %v3780
    %3828 = vmatprep.subr.mxu0 0.0
    %3829 = vmatpush1.msra.mxu0 %v3781
    %3830 = vmatprep.subr.mxu0 0.0
    %3831 = vmatpush1.msra.mxu0 %v3785
    %3832 = vmatprep.subr.mxu0 0.0
    %3833 = vmatpush1.msra.mxu0 %v3787
    %3834 = vmatprep.subr.mxu0 0.0
    %3835 = vmatpush1.msra.mxu0 %v3791
    %3836 = vmatprep.subr.mxu0 0.0
    %3837 = vmatpush1.msra.mxu0 %v3793
    %3838 = vmatprep.subr.mxu0 0.0
    %3839 = vmatpush1.msra.mxu0 %v3797
    %3840 = vmatprep.subr.mxu0 0.0
    %3841 = vmatpush1.msra.mxu0 %v3799
    %3842 = vmatprep.subr.mxu0 0.0
    %3843 = vmatpush1.msra.mxu0 %v3803
    %3844 = vmatprep.subr.mxu0 0.0
    %3845 = vmatpush1.msra.mxu0 %v3805
    %3846 = vmatprep.subr.mxu0 0.0
    %3847 = vmatpush1.msra.mxu0 %v3809
    %3848 = vmatprep.subr.mxu0 0.0
    %3849 = vmatpush1.msra.mxu0 %v3811
    %3850 = vmatprep.subr.mxu0 0.0
    %3851 = vmatpush1.msra.mxu0 %v3815
    %3852 = vmatprep.subr.mxu0 0.0
    %3853 = vmatpush1.msra.mxu0 %v3817
    %3854 = vmatprep.subr.mxu0 0.0
    %3855 = vmatpush1.msra.mxu0 %v3821
    %3856 = vmatprep.subr.mxu0 0.0
    %3857 = vmatpush1.msra.mxu0 %v3823
    %3858 = vmatprep.subr.mxu0 0.0
    %3859 = vmatpush1.msra.mxu0 0.0
    %3860 = vmatprep.subr.mxu0 0.0
    %3861 = vmatpush1.msra.mxu0 0.0
    %3862 = vmatprep.subr.mxu0 0.0
    %3863 = vmatpush1.msra.mxu0 0.0
    %3864 = vmatprep.subr.mxu0 0.0
    %3865 = vmatpush1.msra.mxu0 0.0
    %3866 = vmatprep.subr.mxu0 0.0
    %3867 = vmatpush1.msra.mxu0 0.0
    %3868 = vmatprep.subr.mxu0 0.0
    %3869 = vmatpush1.msra.mxu0 0.0
    %3870 = vmatprep.subr.mxu0 0.0
    %3871 = vmatpush1.msra.mxu0 0.0
    %3872 = vmatprep.subr.mxu0 0.0
    %3873 = vmatpush1.msra.mxu0 0.0
    %3874 = vmatprep.subr.mxu0 0.0
    %3875 = vmatpush1.msra.mxu0 0.0
    %3876 = vmatprep.subr.mxu0 0.0
    %3877 = vmatpush1.msra.mxu0 0.0
    %3878 = vmatprep.subr.mxu0 0.0
    %3879 = vmatpush1.msra.mxu0 0.0
    %3880 = vmatprep.subr.mxu0 0.0
    %3881 = vmatpush1.msra.mxu0 0.0
    %3882 = vmatprep.subr.mxu0 0.0
    %3883 = vmatpush1.msra.mxu0 0.0
    %3884 = vmatprep.subr.mxu0 0.0
    %3885 = vmatpush1.msra.mxu0 0.0
    %3886 = vmatprep.subr.mxu0 0.0
    %3887 = vmatpush1.msra.mxu0 0.0
    %3888 = vmatprep.subr.mxu0 0.0
    %3889 = vmatpush1.msra.mxu0 0.0
    %3890 = vmatprep.mubr.f32.mxu0 0.0
    %3891 = vmatmul.mubr.f32.gmra.mrb[0].mxu0 %v1901
    %v3892 = vpop.f32.mrb[0].mxu0
    %v3893 = vadd.f32 %v1958, %v3892
    %v3894 = vpop.f32.mrb[0].mxu0
    %3895 = vmatprep.mubr.f32.mxu0 0.0
    %3896 = vmatmul.mubr.f32.gmra.mrb[0].mxu0 %v1902
    %v3897 = vpop.f32.mrb[0].mxu0
    %v3898 = vadd.f32 %v1963, %v3897
    %v3899 = vpop.f32.mrb[0].mxu0
    %3900 = vdwg.mxu0
    %v3901 = vsel %vm207, %v3893, 0.0
    %v3902 = vsel %vm207, %v3898, 0.0
    %v3903 = vadd.f32 %v3901, %v3902
    %3904 = vadd.xlane.f32.xlu0 %v3903
    %v3905 = vpop.xlane.xlu0 %3904
    %v3906 = vrot.slane %v3905, 4
    %v3907 = vadd.f32 %v3905, %v3906
    %v3908 = vrot.slane %v3907, 2
    %v3909 = vadd.f32 %v3907, %v3908
    %v3910 = vrot.slane %v3909, 1
    %v3911 = vadd.f32 %v3909, %v3910
    %s3912 = vtos %v3911
    %v3913 = vstv %s3912
    %v3914 = vmul.f32 %v3913, %v2053
    %v3915 = vsub.f32 %v3893, %v3914
    %v3916 = vsub.f32 %v3898, %v3914
    %v3917 = vmul.f32 %v3915, %v3915
    %v3918 = vmul.f32 %v3916, %v3916
    %v3919 = vsel %vm207, %v3917, 0.0
    %v3920 = vsel %vm207, %v3918, 0.0
    %v3921 = vadd.f32 %v3919, %v3920
    %3922 = vadd.xlane.f32.xlu0 %v3921
    %v3923 = vpop.xlane.xlu0 %3922
    %v3924 = vrot.slane %v3923, 4
    %v3925 = vadd.f32 %v3923, %v3924
    %v3926 = vrot.slane %v3925, 2
    %v3927 = vadd.f32 %v3925, %v3926
    %v3928 = vrot.slane %v3927, 1
    %v3929 = vadd.f32 %v3927, %v3928
    %s3930 = vtos %v3929
    %v3931 = vstv %s3930
    %v3932 = vmul.f32 %v3931, %v2053
    %v3933 = vadd.f32 %v3932, 1e-05
    %v3934 = vrsqrt.pop %v3933
    %v3935 = vmul.f32 %v3915, %v3934
    %v3936 = vmul.f32 %v3916, %v3934
    %v3937 = vmul.f32 %v3935, %v1905
    %v3938 = vmul.f32 %v3936, %v1906
    %v3939 = vadd.f32 %v3937, %v1907
    %v3940 = vadd.f32 %v3938, %v1908
    %3941 = vmatprep.subr.mxu0 0.0
    %3942 = vmatpush1.msra.mxu0 %v3939
    %3943 = vmatprep.subr.mxu0 0.0
    %3944 = vmatpush1.msra.mxu0 %v3940
    %3945 = vmatprep.subr.mxu0 0.0
    %3946 = vmatpush1.msra.mxu0 0.0
    %3947 = vmatprep.subr.mxu0 0.0
    %3948 = vmatpush1.msra.mxu0 0.0
    %3949 = vmatprep.subr.mxu0 0.0
    %3950 = vmatpush1.msra.mxu0 0.0
    %3951 = vmatprep.subr.mxu0 0.0
    %3952 = vmatpush1.msra.mxu0 0.0
    %3953 = vmatprep.subr.mxu0 0.0
    %3954 = vmatpush1.msra.mxu0 0.0
    %3955 = vmatprep.subr.mxu0 0.0
    %3956 = vmatpush1.msra.mxu0 0.0
    %3957 = vmatprep.subr.mxu0 0.0
    %3958 = vmatpush1.msra.mxu0 0.0
    %3959 = vmatprep.subr.mxu0 0.0
    %3960 = vmatpush1.msra.mxu0 0.0
    %3961 = vmatprep.subr.mxu0 0.0
    %3962 = vmatpush1.msra.mxu0 0.0
    %3963 = vmatprep.subr.mxu0 0.0
    %3964 = vmatpush1.msra.mxu0 0.0
    %3965 = vmatprep.subr.mxu0 0.0
    %3966 = vmatpush1.msra.mxu0 0.0
    %3967 = vmatprep.subr.mxu0 0.0
    %3968 = vmatpush1.msra.mxu0 0.0
    %3969 = vmatprep.subr.mxu0 0.0
    %3970 = vmatpush1.msra.mxu0 0.0
    %3971 = vmatprep.subr.mxu0 0.0
    %3972 = vmatpush1.msra.mxu0 0.0
    %3973 = vmatprep.subr.mxu0 0.0
    %3974 = vmatpush1.msra.mxu0 0.0
    %3975 = vmatprep.subr.mxu0 0.0
    %3976 = vmatpush1.msra.mxu0 0.0
    %3977 = vmatprep.subr.mxu0 0.0
    %3978 = vmatpush1.msra.mxu0 0.0
    %3979 = vmatprep.subr.mxu0 0.0
    %3980 = vmatpush1.msra.mxu0 0.0
    %3981 = vmatprep.subr.mxu0 0.0
    %3982 = vmatpush1.msra.mxu0 0.0
    %3983 = vmatprep.subr.mxu0 0.0
    %3984 = vmatpush1.msra.mxu0 0.0
    %3985 = vmatprep.subr.mxu0 0.0
    %3986 = vmatpush1.msra.mxu0 0.0
    %3987 = vmatprep.subr.mxu0 0.0
    %3988 = vmatpush1.msra.mxu0 0.0
    %3989 = vmatprep.subr.mxu0 0.0
    %3990 = vmatpush1.msra.mxu0 0.0
    %3991 = vmatprep.subr.mxu0 0.0
    %3992 = vmatpush1.msra.mxu0 0.0
    %3993 = vmatprep.subr.mxu0 0.0
    %3994 = vmatpush1.msra.mxu0 0.0
    %3995 = vmatprep.subr.mxu0 0.0
    %3996 = vmatpush1.msra.mxu0 0.0
    %3997 = vmatprep.subr.mxu0 0.0
    %3998 = vmatpush1.msra.mxu0 0.0
    %3999 = vmatprep.subr.mxu0 0.0
    %4000 = vmatpush1.msra.mxu0 0.0
    %4001 = vmatprep.subr.mxu0 0.0
    %4002 = vmatpush1.msra.mxu0 0.0
    %4003 = vmatprep.subr.mxu0 0.0
    %4004 = vmatpush1.msra.mxu0 0.0
    %4005 = vmatprep.mubr.f32.mxu0 0.0
    %4006 = vmatmul.mubr.f32.gmra.mrb[0].mxu0 %v2087
    %v4007 = vpop.f32.mrb[0].mxu0
    %v4008 = vadd.f32 %v2084, %v4007
    %v4009 = vpop.f32.mrb[0].mxu0
    %4010 = vdwg.mxu0
    %v4012 = vrot.slane %v4008, 7
    %v4014 = vsel %vm756, %v2156, %v4012
    %vm4015 = vcmask 123904
    %4016 = vst.msk [vmem:[#allocation2] sm:$0x3] %vm4015, %v4014
    // Predicated region
    $region14: #{tpu_custom_call.1} parent=1 // pred_check
      _
    $region15: #{tpu_custom_call.1} parent=1 // pred_check_branch
      %4018 = sbr.rel (0) target = $region17
    $region16: #{tpu_custom_call.1} parent=1 // pred_region
      %s4020 = ssub.s32 32, 32
      %4021 = vsyncadd [#allocation3], %s4020
      %s4023 = sshll.u32 [#allocation2], 4
      %s4024 = int_to_ptr.vmem [resolvable:$true] %s4023
      %4026 = dma.vmem_to_hbm [thread:$0]  %s4024, 32, %s3, [#allocation3]
    $region17: #{tpu_custom_call.1} parent=1 // pred_fallthru
      _
    // Predicated region
    $region18: #{tpu_custom_call.1} parent=1 // pred_check
      _
    $region19: #{tpu_custom_call.1} parent=1 // pred_check_branch
      %4028 = sbr.rel (0) target = $region21
    $region20: #{tpu_custom_call.1} parent=1 // pred_region
      %4029 = dma.done [#allocation3], 32
    $region21: #{tpu_custom_call.1} parent=1 // pred_fallthru
      _
    %4030 = vsyncpa [#allocation3], 1

</llo_original>
